<compile_context>
chip_gen: v6e
topology: v6e:2x2x1
jax: 0.10.0
libtpu: 0.0.40
codegen_flags: <defaults>
</compile_context>

<pallas_src>
import jax
import jax.numpy as jnp
from jax.experimental import pallas as pl
from jax.experimental.pallas import tpu as pltpu

LATENT_DIM = 256
XRD_DIM = 512
NUM_BLOCKS = 4
GROWTH = 8
EPS = 1e-5


def _bn_feat(h):
    # training-mode BatchNorm1d on (B, F): batch stats, biased var, one pass.
    mean = jnp.mean(h, axis=0, keepdims=True)
    ex2 = jnp.mean(h * h, axis=0, keepdims=True)
    var = ex2 - mean * mean
    return (h - mean) * jax.lax.rsqrt(var + EPS)


def _bn_chan(h):
    # training-mode BatchNorm1d on (C, B*L): per-channel stats over batch+length.
    mean = jnp.mean(h, axis=1, keepdims=True)
    ex2 = jnp.mean(h * h, axis=1, keepdims=True)
    var = ex2 - mean * mean
    return (h - mean) * jax.lax.rsqrt(var + EPS)


def _xrd_kernel(x_ref, w1_ref, b1_ref, w2_ref, b2_ref,
                cw0_ref, cw1_ref, cw2_ref, cw3_ref, cw4_ref, cwf_ref,
                o_ref, taps_ref):
    B = x_ref.shape[0]
    BL = B * XRD_DIM

    # Batch boundaries sit at lane positions that are multiples of 512
    # (lane-tile aligned -> mask is cheap).  Masks zero the wrapped taps.
    lane = jax.lax.broadcasted_iota(jnp.int32, (1, BL), 1)
    pos = jnp.bitwise_and(lane, XRD_DIM - 1)            # lane % 512
    m_prev = (pos != 0).astype(jnp.float32)             # zero at l == 0
    m_next = (pos != XRD_DIM - 1).astype(jnp.float32)   # zero at l == 511

    def shift_prev(a):   # result[l] = a[l-1], zero at each batch start (XLU)
        return pltpu.roll(a, shift=1, axis=1) * m_prev

    def shift_next(a):   # result[l] = a[l+1], zero at each batch end (XLU)
        # pltpu.roll requires a non-negative shift; rotating by L-1 is the
        # same as rotating by -1, and the wrapped lanes are masked anyway.
        return pltpu.roll(a, shift=BL - 1, axis=1) * m_next

    # ---- high_dim_proj: Linear -> BN -> ReLU -> Linear -> BN -> ReLU ----
    x = x_ref[...]
    h = jnp.dot(x.astype(jnp.bfloat16), w1_ref[...],
                preferred_element_type=jnp.float32) + b1_ref[...]
    h = jnp.maximum(_bn_feat(h), 0.0)
    h = jnp.dot(h.astype(jnp.bfloat16), w2_ref[...],
                preferred_element_type=jnp.float32) + b2_ref[...]
    h = jnp.maximum(_bn_feat(h), 0.0)                   # (B, 512)

    # ---- fold batch into lanes: (B, 512) -> (1, B*512), lane-aligned ----
    x1 = jnp.concatenate([h[b:b + 1, :] for b in range(B)], axis=1)   # (1, BL)

    # ---- first_conv (Cin=1): degenerate K=1 matmul -> VPU multiply-adds ----
    x1p = shift_prev(x1)
    x1n = shift_next(x1)
    w0 = cw0_ref[...]                                   # (8, 3): taps prev/cur/next
    a = w0[:, 0:1] * x1p + w0[:, 1:2] * x1 + w0[:, 2:3] * x1n         # (8, BL)
    a = jnp.maximum(_bn_chan(a), 0.0)

    def write_slab(slab_idx, act):
        # Cache [prev; cur; next] taps for this 8-channel slab exactly once.
        base = 3 * GROWTH * slab_idx
        taps_ref[base:base + GROWTH, :] = shift_prev(act)
        taps_ref[base + GROWTH:base + 2 * GROWTH, :] = act
        taps_ref[base + 2 * GROWTH:base + 3 * GROWTH, :] = shift_next(act)

    write_slab(0, a)

    # ---- dense blocks: one (8, 24j) x (24j, B*512) MXU matmul per block ----
    cw_refs = (cw1_ref, cw2_ref, cw3_ref, cw4_ref)
    for j in range(1, NUM_BLOCKS + 1):
        rows = 3 * GROWTH * j
        t = taps_ref[0:rows, :]                         # contiguous static slice
        z = jnp.dot(cw_refs[j - 1][...], t, preferred_element_type=jnp.float32)
        a = jnp.maximum(_bn_chan(z), 0.0)               # (8, BL)
        if j < NUM_BLOCKS:
            write_slab(j, a)        # last block's slab is never read as history

    # ---- final_conv (Cout=1): weighted sublane sum, no M=1 matmul ----
    ap = shift_prev(a)
    an = shift_next(a)
    wf = cwf_ref[...]                                   # (8, 3)
    y = jnp.sum(wf[:, 0:1] * ap + wf[:, 1:2] * a + wf[:, 2:3] * an,
                axis=0, keepdims=True)                  # (1, BL)

    # ---- unfold lanes back to (B, 512); per-row min-max normalization ----
    y = jnp.concatenate(
        [y[0:1, b * XRD_DIM:(b + 1) * XRD_DIM] for b in range(B)], axis=0)
    y_max = jnp.max(y, axis=1, keepdims=True)
    y_min = jnp.min(y, axis=1, keepdims=True)
    o_ref[...] = (y - y_min) * pl.reciprocal(y_max - y_min, approx=True)


def init_params(key):
    """Deterministic, PyTorch-default-like (uniform +-1/sqrt(fan_in)) init,
    generated in PyTorch layouts (conv weights are (Cout, Cin, K))."""
    ks = jax.random.split(key, 12)

    def uinit(k, shape, fan_in):
        bound = 1.0 / (float(fan_in) ** 0.5)
        return jax.random.uniform(k, shape, jnp.float32, -bound, bound)

    params = {
        "w1": uinit(ks[0], (LATENT_DIM, XRD_DIM), LATENT_DIM),
        "b1": uinit(ks[1], (1, XRD_DIM), LATENT_DIM),
        "w2": uinit(ks[2], (XRD_DIM, XRD_DIM), XRD_DIM),
        "b2": uinit(ks[3], (1, XRD_DIM), XRD_DIM),
        "cw0": uinit(ks[4], (GROWTH, 1, 3), 1 * 3),
        "cw_blocks": tuple(
            uinit(ks[4 + i], (GROWTH, GROWTH * i, 3), GROWTH * i * 3)
            for i in range(1, NUM_BLOCKS + 1)),
        "cwf": uinit(ks[9], (1, GROWTH, 3), GROWTH * 3),
    }
    # BatchNorm gamma=1 / beta=0 (PyTorch defaults) are folded into the kernel.
    return params


def pack_params(params):
    """PyTorch-layout params -> kernel layout (merged taps, bf16 big weights)."""
    def pack_block(w):
        # (Cout, Cin, K) -> (Cout, n_slabs, 8, 3) -> (Cout, n_slabs, 3, 8)
        # -> (Cout, 24*n_slabs), matching taps-scratch row order
        # r = 24*slab + 8*tap + channel.
        cout, cin, k = w.shape
        s = cin // GROWTH
        w = w.reshape(cout, s, GROWTH, k)
        w = jnp.transpose(w, (0, 1, 3, 2))
        return w.reshape(cout, s * k * GROWTH).astype(jnp.float32)

    return (
        params["w1"].astype(jnp.bfloat16),
        params["b1"].astype(jnp.float32),
        params["w2"].astype(jnp.bfloat16),
        params["b2"].astype(jnp.float32),
        params["cw0"][:, 0, :].astype(jnp.float32),      # (8, 3)
        *[pack_block(w) for w in params["cw_blocks"]],   # (8, 24j)
        params["cwf"][0].astype(jnp.float32),            # (8, 3)
    )


def xrd_dense_regressor(x, kernel_params):
    B = x.shape[0]
    args = (x,) + tuple(kernel_params)
    in_specs = [pl.BlockSpec(memory_space=pltpu.MemorySpace.VMEM) for _ in args]
    return pl.pallas_call(
        _xrd_kernel,
        out_shape=jax.ShapeDtypeStruct((B, XRD_DIM), jnp.float32),
        in_specs=in_specs,
        out_specs=pl.BlockSpec(memory_space=pltpu.MemorySpace.VMEM),
        scratch_shapes=[
            pltpu.VMEM((3 * GROWTH * NUM_BLOCKS, B * XRD_DIM), jnp.float32)],
        compiler_params=pltpu.CompilerParams(vmem_limit_bytes=16 << 20),
    )(*args)


if __name__ == "__main__":
    key = jax.random.PRNGKey(0)
    pkey, xkey = jax.random.split(key)
    params = init_params(pkey)
    kargs = pack_params(params)

    batch = 2
    x = jax.random.normal(xkey, (batch, LATENT_DIM), jnp.float32)

    fn = jax.jit(lambda v: xrd_dense_regressor(v, kargs))
    out = jax.block_until_ready(fn(x))

    assert out.shape == (batch, XRD_DIM)
    assert bool(jnp.isfinite(out).all())
    # per-row min-max normalized; bf16 weights + approx reciprocal -> loose tol
    assert bool(jnp.allclose(jnp.min(out, axis=1), 0.0, atol=1e-2))
    assert bool(jnp.allclose(jnp.max(out, axis=1), 1.0, atol=1e-2))
    print("KERNEL_OK")
</pallas_src>

<mosaic_0001>
module attributes {stable_mosaic.version = 11 : i64} {
  func.func @_xrd_kernel(%arg0: memref<2x256xf32, #tpu.memory_space<vmem>>, %arg1: memref<256x512xbf16, #tpu.memory_space<vmem>>, %arg2: memref<1x512xf32, #tpu.memory_space<vmem>>, %arg3: memref<512x512xbf16, #tpu.memory_space<vmem>>, %arg4: memref<1x512xf32, #tpu.memory_space<vmem>>, %arg5: memref<8x3xf32, #tpu.memory_space<vmem>>, %arg6: memref<8x24xf32, #tpu.memory_space<vmem>>, %arg7: memref<8x48xf32, #tpu.memory_space<vmem>>, %arg8: memref<8x72xf32, #tpu.memory_space<vmem>>, %arg9: memref<8x96xf32, #tpu.memory_space<vmem>>, %arg10: memref<8x3xf32, #tpu.memory_space<vmem>>, %arg11: memref<2x512xf32, #tpu.memory_space<vmem>>, %arg12: memref<96x1024xf32, #tpu.memory_space<vmem>>) attributes {dimension_semantics = [], scalar_prefetch = 0 : i64, scratch_operands = 1 : i64, tpu.core_type = #tpu.core_type<tc>} {
    %0 = tpu.iota {dimensions = array<i32: 1>} : vector<1x1024xi32>
    %c511_i32 = arith.constant 511 : i32
    %1 = vector.broadcast %c511_i32 : i32 to vector<1x1024xi32>
    %2 = arith.andi %0, %1 : vector<1x1024xi32>
    %c0_i32 = arith.constant 0 : i32
    %3 = vector.broadcast %c0_i32 : i32 to vector<1x1024xi32>
    %4 = arith.cmpi ne, %2, %3 : vector<1x1024xi32>
    %5 = arith.extui %4 : vector<1x1024xi1> to vector<1x1024xi32>
    %6 = arith.sitofp %5 : vector<1x1024xi32> to vector<1x1024xf32>
    %c511_i32_0 = arith.constant 511 : i32
    %7 = vector.broadcast %c511_i32_0 : i32 to vector<1x1024xi32>
    %8 = arith.cmpi ne, %2, %7 : vector<1x1024xi32>
    %9 = arith.extui %8 : vector<1x1024xi1> to vector<1x1024xi32>
    %10 = arith.sitofp %9 : vector<1x1024xi32> to vector<1x1024xf32>
    %c0 = arith.constant 0 : index
    %c0_1 = arith.constant 0 : index
    %11 = vector.load %arg0[%c0, %c0_1] : memref<2x256xf32, #tpu.memory_space<vmem>>, vector<2x256xf32>
    %12 = arith.truncf %11 : vector<2x256xf32> to vector<2x256xbf16>
    %c0_2 = arith.constant 0 : index
    %c0_3 = arith.constant 0 : index
    %13 = vector.load %arg1[%c0_2, %c0_3] : memref<256x512xbf16, #tpu.memory_space<vmem>>, vector<256x512xbf16>
    %cst = arith.constant dense<0.000000e+00> : vector<2x512xf32>
    %14 = tpu.matmul %12, %13, %cst {dimension_numbers = #tpu.dot_dimension_numbers<[1], [0], [0], [1], [0, 0, 1, 1], [], []>} : vector<2x256xbf16>, vector<256x512xbf16>, vector<2x512xf32> -> vector<2x512xf32>
    %c0_4 = arith.constant 0 : index
    %c0_5 = arith.constant 0 : index
    %15 = vector.load %arg2[%c0_4, %c0_5] : memref<1x512xf32, #tpu.memory_space<vmem>>, vector<1x512xf32>
    %16 = vector.broadcast %15 : vector<1x512xf32> to vector<2x512xf32>
    %17 = arith.addf %14, %16 : vector<2x512xf32>
    %cst_6 = arith.constant dense<0.000000e+00> : vector<512xf32>
    %18 = vector.multi_reduction <add>, %17, %cst_6 [0] : vector<2x512xf32> to vector<512xf32>
    %19 = vector.shape_cast %18 : vector<512xf32> to vector<1x512xf32>
    %cst_7 = arith.constant 2.000000e+00 : f32
    %20 = vector.broadcast %cst_7 : f32 to vector<1x512xf32>
    %21 = arith.divf %19, %20 : vector<1x512xf32>
    %22 = arith.mulf %17, %17 : vector<2x512xf32>
    %cst_8 = arith.constant dense<0.000000e+00> : vector<512xf32>
    %23 = vector.multi_reduction <add>, %22, %cst_8 [0] : vector<2x512xf32> to vector<512xf32>
    %24 = vector.shape_cast %23 : vector<512xf32> to vector<1x512xf32>
    %cst_9 = arith.constant 2.000000e+00 : f32
    %25 = vector.broadcast %cst_9 : f32 to vector<1x512xf32>
    %26 = arith.divf %24, %25 : vector<1x512xf32>
    %27 = arith.mulf %21, %21 : vector<1x512xf32>
    %28 = arith.subf %26, %27 : vector<1x512xf32>
    %29 = vector.broadcast %21 : vector<1x512xf32> to vector<2x512xf32>
    %30 = arith.subf %17, %29 : vector<2x512xf32>
    %cst_10 = arith.constant 9.99999974E-6 : f32
    %31 = vector.broadcast %cst_10 : f32 to vector<1x512xf32>
    %32 = arith.addf %28, %31 : vector<1x512xf32>
    %33 = math.rsqrt %32 : vector<1x512xf32>
    %34 = vector.broadcast %33 : vector<1x512xf32> to vector<2x512xf32>
    %35 = arith.mulf %30, %34 : vector<2x512xf32>
    %cst_11 = arith.constant 0.000000e+00 : f32
    %36 = vector.broadcast %cst_11 : f32 to vector<2x512xf32>
    %37 = arith.maximumf %35, %36 : vector<2x512xf32>
    %38 = arith.truncf %37 : vector<2x512xf32> to vector<2x512xbf16>
    %c0_12 = arith.constant 0 : index
    %c0_13 = arith.constant 0 : index
    %39 = vector.load %arg3[%c0_12, %c0_13] : memref<512x512xbf16, #tpu.memory_space<vmem>>, vector<512x512xbf16>
    %cst_14 = arith.constant dense<0.000000e+00> : vector<2x512xf32>
    %40 = tpu.matmul %38, %39, %cst_14 {dimension_numbers = #tpu.dot_dimension_numbers<[1], [0], [0], [1], [0, 0, 1, 1], [], []>} : vector<2x512xbf16>, vector<512x512xbf16>, vector<2x512xf32> -> vector<2x512xf32>
    %c0_15 = arith.constant 0 : index
    %c0_16 = arith.constant 0 : index
    %41 = vector.load %arg4[%c0_15, %c0_16] : memref<1x512xf32, #tpu.memory_space<vmem>>, vector<1x512xf32>
    %42 = vector.broadcast %41 : vector<1x512xf32> to vector<2x512xf32>
    %43 = arith.addf %40, %42 : vector<2x512xf32>
    %cst_17 = arith.constant dense<0.000000e+00> : vector<512xf32>
    %44 = vector.multi_reduction <add>, %43, %cst_17 [0] : vector<2x512xf32> to vector<512xf32>
    %45 = vector.shape_cast %44 : vector<512xf32> to vector<1x512xf32>
    %cst_18 = arith.constant 2.000000e+00 : f32
    %46 = vector.broadcast %cst_18 : f32 to vector<1x512xf32>
    %47 = arith.divf %45, %46 : vector<1x512xf32>
    %48 = arith.mulf %43, %43 : vector<2x512xf32>
    %cst_19 = arith.constant dense<0.000000e+00> : vector<512xf32>
    %49 = vector.multi_reduction <add>, %48, %cst_19 [0] : vector<2x512xf32> to vector<512xf32>
    %50 = vector.shape_cast %49 : vector<512xf32> to vector<1x512xf32>
    %cst_20 = arith.constant 2.000000e+00 : f32
    %51 = vector.broadcast %cst_20 : f32 to vector<1x512xf32>
    %52 = arith.divf %50, %51 : vector<1x512xf32>
    %53 = arith.mulf %47, %47 : vector<1x512xf32>
    %54 = arith.subf %52, %53 : vector<1x512xf32>
    %55 = vector.broadcast %47 : vector<1x512xf32> to vector<2x512xf32>
    %56 = arith.subf %43, %55 : vector<2x512xf32>
    %cst_21 = arith.constant 9.99999974E-6 : f32
    %57 = vector.broadcast %cst_21 : f32 to vector<1x512xf32>
    %58 = arith.addf %54, %57 : vector<1x512xf32>
    %59 = math.rsqrt %58 : vector<1x512xf32>
    %60 = vector.broadcast %59 : vector<1x512xf32> to vector<2x512xf32>
    %61 = arith.mulf %56, %60 : vector<2x512xf32>
    %cst_22 = arith.constant 0.000000e+00 : f32
    %62 = vector.broadcast %cst_22 : f32 to vector<2x512xf32>
    %63 = arith.maximumf %61, %62 : vector<2x512xf32>
    %64 = vector.extract_strided_slice %63 {offsets = [0, 0], sizes = [1, 512], strides = [1, 1]} : vector<2x512xf32> to vector<1x512xf32>
    %65 = vector.extract_strided_slice %63 {offsets = [1, 0], sizes = [1, 512], strides = [1, 1]} : vector<2x512xf32> to vector<1x512xf32>
    %66 = tpu.concatenate %64, %65 in 1 : vector<1x512xf32>, vector<1x512xf32> -> vector<1x1024xf32>
    %c1_i32 = arith.constant 1 : i32
    %67 = tpu.dynamic_rotate %66 by %c1_i32 dim 1 : vector<1x1024xf32>, i32 -> vector<1x1024xf32>
    %68 = arith.mulf %67, %6 : vector<1x1024xf32>
    %c1023_i32 = arith.constant 1023 : i32
    %69 = tpu.dynamic_rotate %66 by %c1023_i32 dim 1 : vector<1x1024xf32>, i32 -> vector<1x1024xf32>
    %70 = arith.mulf %69, %10 : vector<1x1024xf32>
    %c0_23 = arith.constant 0 : index
    %c0_24 = arith.constant 0 : index
    %71 = vector.load %arg5[%c0_23, %c0_24] : memref<8x3xf32, #tpu.memory_space<vmem>>, vector<8x3xf32>
    %72 = vector.extract_strided_slice %71 {offsets = [0, 0], sizes = [8, 1], strides = [1, 1]} : vector<8x3xf32> to vector<8x1xf32>
    %73 = vector.broadcast %72 : vector<8x1xf32> to vector<8x1024xf32>
    %74 = vector.broadcast %68 : vector<1x1024xf32> to vector<8x1024xf32>
    %75 = arith.mulf %73, %74 : vector<8x1024xf32>
    %76 = vector.extract_strided_slice %71 {offsets = [0, 1], sizes = [8, 1], strides = [1, 1]} : vector<8x3xf32> to vector<8x1xf32>
    %77 = vector.broadcast %76 : vector<8x1xf32> to vector<8x1024xf32>
    %78 = vector.broadcast %66 : vector<1x1024xf32> to vector<8x1024xf32>
    %79 = arith.mulf %77, %78 : vector<8x1024xf32>
    %80 = arith.addf %75, %79 : vector<8x1024xf32>
    %81 = vector.extract_strided_slice %71 {offsets = [0, 2], sizes = [8, 1], strides = [1, 1]} : vector<8x3xf32> to vector<8x1xf32>
    %82 = vector.broadcast %81 : vector<8x1xf32> to vector<8x1024xf32>
    %83 = vector.broadcast %70 : vector<1x1024xf32> to vector<8x1024xf32>
    %84 = arith.mulf %82, %83 : vector<8x1024xf32>
    %85 = arith.addf %80, %84 : vector<8x1024xf32>
    %cst_25 = arith.constant dense<0.000000e+00> : vector<8xf32>
    %86 = vector.multi_reduction <add>, %85, %cst_25 [1] : vector<8x1024xf32> to vector<8xf32>
    %87 = vector.shape_cast %86 : vector<8xf32> to vector<8x1xf32>
    %cst_26 = arith.constant 1.024000e+03 : f32
    %88 = vector.broadcast %cst_26 : f32 to vector<8x1xf32>
    %89 = arith.divf %87, %88 : vector<8x1xf32>
    %90 = arith.mulf %85, %85 : vector<8x1024xf32>
    %cst_27 = arith.constant dense<0.000000e+00> : vector<8xf32>
    %91 = vector.multi_reduction <add>, %90, %cst_27 [1] : vector<8x1024xf32> to vector<8xf32>
    %92 = vector.shape_cast %91 : vector<8xf32> to vector<8x1xf32>
    %cst_28 = arith.constant 1.024000e+03 : f32
    %93 = vector.broadcast %cst_28 : f32 to vector<8x1xf32>
    %94 = arith.divf %92, %93 : vector<8x1xf32>
    %95 = arith.mulf %89, %89 : vector<8x1xf32>
    %96 = arith.subf %94, %95 : vector<8x1xf32>
    %97 = vector.broadcast %89 : vector<8x1xf32> to vector<8x1024xf32>
    %98 = arith.subf %85, %97 : vector<8x1024xf32>
    %cst_29 = arith.constant 9.99999974E-6 : f32
    %99 = vector.broadcast %cst_29 : f32 to vector<8x1xf32>
    %100 = arith.addf %96, %99 : vector<8x1xf32>
    %101 = math.rsqrt %100 : vector<8x1xf32>
    %102 = vector.broadcast %101 : vector<8x1xf32> to vector<8x1024xf32>
    %103 = arith.mulf %98, %102 : vector<8x1024xf32>
    %cst_30 = arith.constant 0.000000e+00 : f32
    %104 = vector.broadcast %cst_30 : f32 to vector<8x1024xf32>
    %105 = arith.maximumf %103, %104 : vector<8x1024xf32>
    %c1_i32_31 = arith.constant 1 : i32
    %106 = tpu.dynamic_rotate %105 by %c1_i32_31 dim 1 : vector<8x1024xf32>, i32 -> vector<8x1024xf32>
    %107 = vector.broadcast %6 : vector<1x1024xf32> to vector<8x1024xf32>
    %108 = arith.mulf %106, %107 : vector<8x1024xf32>
    %c0_32 = arith.constant 0 : index
    %c0_33 = arith.constant 0 : index
    %109 = vector.load %arg12[%c0_32, %c0_33] : memref<96x1024xf32, #tpu.memory_space<vmem>>, vector<8x1024xf32>
    tpu.vector_store %arg12[%c0_32, %c0_33], %108 {strides = array<i32>} : memref<96x1024xf32, #tpu.memory_space<vmem>>, vector<8x1024xf32>,
    %c8 = arith.constant 8 : index
    %c0_34 = arith.constant 0 : index
    %110 = vector.load %arg12[%c8, %c0_34] : memref<96x1024xf32, #tpu.memory_space<vmem>>, vector<8x1024xf32>
    tpu.vector_store %arg12[%c8, %c0_34], %105 {strides = array<i32>} : memref<96x1024xf32, #tpu.memory_space<vmem>>, vector<8x1024xf32>,
    %c1023_i32_35 = arith.constant 1023 : i32
    %111 = tpu.dynamic_rotate %105 by %c1023_i32_35 dim 1 : vector<8x1024xf32>, i32 -> vector<8x1024xf32>
    %112 = vector.broadcast %10 : vector<1x1024xf32> to vector<8x1024xf32>
    %113 = arith.mulf %111, %112 : vector<8x1024xf32>
    %c16 = arith.constant 16 : index
    %c0_36 = arith.constant 0 : index
    %114 = vector.load %arg12[%c16, %c0_36] : memref<96x1024xf32, #tpu.memory_space<vmem>>, vector<8x1024xf32>
    tpu.vector_store %arg12[%c16, %c0_36], %113 {strides = array<i32>} : memref<96x1024xf32, #tpu.memory_space<vmem>>, vector<8x1024xf32>,
    %c0_37 = arith.constant 0 : index
    %c0_38 = arith.constant 0 : index
    %115 = vector.load %arg12[%c0_37, %c0_38] : memref<96x1024xf32, #tpu.memory_space<vmem>>, vector<24x1024xf32>
    %c0_39 = arith.constant 0 : index
    %c0_40 = arith.constant 0 : index
    %116 = vector.load %arg6[%c0_39, %c0_40] : memref<8x24xf32, #tpu.memory_space<vmem>>, vector<8x24xf32>
    %cst_41 = arith.constant dense<0.000000e+00> : vector<8x1024xf32>
    %117 = tpu.matmul %116, %115, %cst_41 {dimension_numbers = #tpu.dot_dimension_numbers<[1], [0], [0], [1], [0, 0, 1, 1], [], []>} : vector<8x24xf32>, vector<24x1024xf32>, vector<8x1024xf32> -> vector<8x1024xf32>
    %cst_42 = arith.constant dense<0.000000e+00> : vector<8xf32>
    %118 = vector.multi_reduction <add>, %117, %cst_42 [1] : vector<8x1024xf32> to vector<8xf32>
    %119 = vector.shape_cast %118 : vector<8xf32> to vector<8x1xf32>
    %cst_43 = arith.constant 1.024000e+03 : f32
    %120 = vector.broadcast %cst_43 : f32 to vector<8x1xf32>
    %121 = arith.divf %119, %120 : vector<8x1xf32>
    %122 = arith.mulf %117, %117 : vector<8x1024xf32>
    %cst_44 = arith.constant dense<0.000000e+00> : vector<8xf32>
    %123 = vector.multi_reduction <add>, %122, %cst_44 [1] : vector<8x1024xf32> to vector<8xf32>
    %124 = vector.shape_cast %123 : vector<8xf32> to vector<8x1xf32>
    %cst_45 = arith.constant 1.024000e+03 : f32
    %125 = vector.broadcast %cst_45 : f32 to vector<8x1xf32>
    %126 = arith.divf %124, %125 : vector<8x1xf32>
    %127 = arith.mulf %121, %121 : vector<8x1xf32>
    %128 = arith.subf %126, %127 : vector<8x1xf32>
    %129 = vector.broadcast %121 : vector<8x1xf32> to vector<8x1024xf32>
    %130 = arith.subf %117, %129 : vector<8x1024xf32>
    %cst_46 = arith.constant 9.99999974E-6 : f32
    %131 = vector.broadcast %cst_46 : f32 to vector<8x1xf32>
    %132 = arith.addf %128, %131 : vector<8x1xf32>
    %133 = math.rsqrt %132 : vector<8x1xf32>
    %134 = vector.broadcast %133 : vector<8x1xf32> to vector<8x1024xf32>
    %135 = arith.mulf %130, %134 : vector<8x1024xf32>
    %cst_47 = arith.constant 0.000000e+00 : f32
    %136 = vector.broadcast %cst_47 : f32 to vector<8x1024xf32>
    %137 = arith.maximumf %135, %136 : vector<8x1024xf32>
    %c1_i32_48 = arith.constant 1 : i32
    %138 = tpu.dynamic_rotate %137 by %c1_i32_48 dim 1 : vector<8x1024xf32>, i32 -> vector<8x1024xf32>
    %139 = vector.broadcast %6 : vector<1x1024xf32> to vector<8x1024xf32>
    %140 = arith.mulf %138, %139 : vector<8x1024xf32>
    %c24 = arith.constant 24 : index
    %c0_49 = arith.constant 0 : index
    %141 = vector.load %arg12[%c24, %c0_49] : memref<96x1024xf32, #tpu.memory_space<vmem>>, vector<8x1024xf32>
    tpu.vector_store %arg12[%c24, %c0_49], %140 {strides = array<i32>} : memref<96x1024xf32, #tpu.memory_space<vmem>>, vector<8x1024xf32>,
    %c32 = arith.constant 32 : index
    %c0_50 = arith.constant 0 : index
    %142 = vector.load %arg12[%c32, %c0_50] : memref<96x1024xf32, #tpu.memory_space<vmem>>, vector<8x1024xf32>
    tpu.vector_store %arg12[%c32, %c0_50], %137 {strides = array<i32>} : memref<96x1024xf32, #tpu.memory_space<vmem>>, vector<8x1024xf32>,
    %c1023_i32_51 = arith.constant 1023 : i32
    %143 = tpu.dynamic_rotate %137 by %c1023_i32_51 dim 1 : vector<8x1024xf32>, i32 -> vector<8x1024xf32>
    %144 = vector.broadcast %10 : vector<1x1024xf32> to vector<8x1024xf32>
    %145 = arith.mulf %143, %144 : vector<8x1024xf32>
    %c40 = arith.constant 40 : index
    %c0_52 = arith.constant 0 : index
    %146 = vector.load %arg12[%c40, %c0_52] : memref<96x1024xf32, #tpu.memory_space<vmem>>, vector<8x1024xf32>
    tpu.vector_store %arg12[%c40, %c0_52], %145 {strides = array<i32>} : memref<96x1024xf32, #tpu.memory_space<vmem>>, vector<8x1024xf32>,
    %c0_53 = arith.constant 0 : index
    %c0_54 = arith.constant 0 : index
    %147 = vector.load %arg12[%c0_53, %c0_54] : memref<96x1024xf32, #tpu.memory_space<vmem>>, vector<48x1024xf32>
    %c0_55 = arith.constant 0 : index
    %c0_56 = arith.constant 0 : index
    %148 = vector.load %arg7[%c0_55, %c0_56] : memref<8x48xf32, #tpu.memory_space<vmem>>, vector<8x48xf32>
    %cst_57 = arith.constant dense<0.000000e+00> : vector<8x1024xf32>
    %149 = tpu.matmul %148, %147, %cst_57 {dimension_numbers = #tpu.dot_dimension_numbers<[1], [0], [0], [1], [0, 0, 1, 1], [], []>} : vector<8x48xf32>, vector<48x1024xf32>, vector<8x1024xf32> -> vector<8x1024xf32>
    %cst_58 = arith.constant dense<0.000000e+00> : vector<8xf32>
    %150 = vector.multi_reduction <add>, %149, %cst_58 [1] : vector<8x1024xf32> to vector<8xf32>
    %151 = vector.shape_cast %150 : vector<8xf32> to vector<8x1xf32>
    %cst_59 = arith.constant 1.024000e+03 : f32
    %152 = vector.broadcast %cst_59 : f32 to vector<8x1xf32>
    %153 = arith.divf %151, %152 : vector<8x1xf32>
    %154 = arith.mulf %149, %149 : vector<8x1024xf32>
    %cst_60 = arith.constant dense<0.000000e+00> : vector<8xf32>
    %155 = vector.multi_reduction <add>, %154, %cst_60 [1] : vector<8x1024xf32> to vector<8xf32>
    %156 = vector.shape_cast %155 : vector<8xf32> to vector<8x1xf32>
    %cst_61 = arith.constant 1.024000e+03 : f32
    %157 = vector.broadcast %cst_61 : f32 to vector<8x1xf32>
    %158 = arith.divf %156, %157 : vector<8x1xf32>
    %159 = arith.mulf %153, %153 : vector<8x1xf32>
    %160 = arith.subf %158, %159 : vector<8x1xf32>
    %161 = vector.broadcast %153 : vector<8x1xf32> to vector<8x1024xf32>
    %162 = arith.subf %149, %161 : vector<8x1024xf32>
    %cst_62 = arith.constant 9.99999974E-6 : f32
    %163 = vector.broadcast %cst_62 : f32 to vector<8x1xf32>
    %164 = arith.addf %160, %163 : vector<8x1xf32>
    %165 = math.rsqrt %164 : vector<8x1xf32>
    %166 = vector.broadcast %165 : vector<8x1xf32> to vector<8x1024xf32>
    %167 = arith.mulf %162, %166 : vector<8x1024xf32>
    %cst_63 = arith.constant 0.000000e+00 : f32
    %168 = vector.broadcast %cst_63 : f32 to vector<8x1024xf32>
    %169 = arith.maximumf %167, %168 : vector<8x1024xf32>
    %c1_i32_64 = arith.constant 1 : i32
    %170 = tpu.dynamic_rotate %169 by %c1_i32_64 dim 1 : vector<8x1024xf32>, i32 -> vector<8x1024xf32>
    %171 = vector.broadcast %6 : vector<1x1024xf32> to vector<8x1024xf32>
    %172 = arith.mulf %170, %171 : vector<8x1024xf32>
    %c48 = arith.constant 48 : index
    %c0_65 = arith.constant 0 : index
    %173 = vector.load %arg12[%c48, %c0_65] : memref<96x1024xf32, #tpu.memory_space<vmem>>, vector<8x1024xf32>
    tpu.vector_store %arg12[%c48, %c0_65], %172 {strides = array<i32>} : memref<96x1024xf32, #tpu.memory_space<vmem>>, vector<8x1024xf32>,
    %c56 = arith.constant 56 : index
    %c0_66 = arith.constant 0 : index
    %174 = vector.load %arg12[%c56, %c0_66] : memref<96x1024xf32, #tpu.memory_space<vmem>>, vector<8x1024xf32>
    tpu.vector_store %arg12[%c56, %c0_66], %169 {strides = array<i32>} : memref<96x1024xf32, #tpu.memory_space<vmem>>, vector<8x1024xf32>,
    %c1023_i32_67 = arith.constant 1023 : i32
    %175 = tpu.dynamic_rotate %169 by %c1023_i32_67 dim 1 : vector<8x1024xf32>, i32 -> vector<8x1024xf32>
    %176 = vector.broadcast %10 : vector<1x1024xf32> to vector<8x1024xf32>
    %177 = arith.mulf %175, %176 : vector<8x1024xf32>
    %c64 = arith.constant 64 : index
    %c0_68 = arith.constant 0 : index
    %178 = vector.load %arg12[%c64, %c0_68] : memref<96x1024xf32, #tpu.memory_space<vmem>>, vector<8x1024xf32>
    tpu.vector_store %arg12[%c64, %c0_68], %177 {strides = array<i32>} : memref<96x1024xf32, #tpu.memory_space<vmem>>, vector<8x1024xf32>,
    %c0_69 = arith.constant 0 : index
    %c0_70 = arith.constant 0 : index
    %179 = vector.load %arg12[%c0_69, %c0_70] : memref<96x1024xf32, #tpu.memory_space<vmem>>, vector<72x1024xf32>
    %c0_71 = arith.constant 0 : index
    %c0_72 = arith.constant 0 : index
    %180 = vector.load %arg8[%c0_71, %c0_72] : memref<8x72xf32, #tpu.memory_space<vmem>>, vector<8x72xf32>
    %cst_73 = arith.constant dense<0.000000e+00> : vector<8x1024xf32>
    %181 = tpu.matmul %180, %179, %cst_73 {dimension_numbers = #tpu.dot_dimension_numbers<[1], [0], [0], [1], [0, 0, 1, 1], [], []>} : vector<8x72xf32>, vector<72x1024xf32>, vector<8x1024xf32> -> vector<8x1024xf32>
    %cst_74 = arith.constant dense<0.000000e+00> : vector<8xf32>
    %182 = vector.multi_reduction <add>, %181, %cst_74 [1] : vector<8x1024xf32> to vector<8xf32>
    %183 = vector.shape_cast %182 : vector<8xf32> to vector<8x1xf32>
    %cst_75 = arith.constant 1.024000e+03 : f32
    %184 = vector.broadcast %cst_75 : f32 to vector<8x1xf32>
    %185 = arith.divf %183, %184 : vector<8x1xf32>
    %186 = arith.mulf %181, %181 : vector<8x1024xf32>
    %cst_76 = arith.constant dense<0.000000e+00> : vector<8xf32>
    %187 = vector.multi_reduction <add>, %186, %cst_76 [1] : vector<8x1024xf32> to vector<8xf32>
    %188 = vector.shape_cast %187 : vector<8xf32> to vector<8x1xf32>
    %cst_77 = arith.constant 1.024000e+03 : f32
    %189 = vector.broadcast %cst_77 : f32 to vector<8x1xf32>
    %190 = arith.divf %188, %189 : vector<8x1xf32>
    %191 = arith.mulf %185, %185 : vector<8x1xf32>
    %192 = arith.subf %190, %191 : vector<8x1xf32>
    %193 = vector.broadcast %185 : vector<8x1xf32> to vector<8x1024xf32>
    %194 = arith.subf %181, %193 : vector<8x1024xf32>
    %cst_78 = arith.constant 9.99999974E-6 : f32
    %195 = vector.broadcast %cst_78 : f32 to vector<8x1xf32>
    %196 = arith.addf %192, %195 : vector<8x1xf32>
    %197 = math.rsqrt %196 : vector<8x1xf32>
    %198 = vector.broadcast %197 : vector<8x1xf32> to vector<8x1024xf32>
    %199 = arith.mulf %194, %198 : vector<8x1024xf32>
    %cst_79 = arith.constant 0.000000e+00 : f32
    %200 = vector.broadcast %cst_79 : f32 to vector<8x1024xf32>
    %201 = arith.maximumf %199, %200 : vector<8x1024xf32>
    %c1_i32_80 = arith.constant 1 : i32
    %202 = tpu.dynamic_rotate %201 by %c1_i32_80 dim 1 : vector<8x1024xf32>, i32 -> vector<8x1024xf32>
    %203 = vector.broadcast %6 : vector<1x1024xf32> to vector<8x1024xf32>
    %204 = arith.mulf %202, %203 : vector<8x1024xf32>
    %c72 = arith.constant 72 : index
    %c0_81 = arith.constant 0 : index
    %205 = vector.load %arg12[%c72, %c0_81] : memref<96x1024xf32, #tpu.memory_space<vmem>>, vector<8x1024xf32>
    tpu.vector_store %arg12[%c72, %c0_81], %204 {strides = array<i32>} : memref<96x1024xf32, #tpu.memory_space<vmem>>, vector<8x1024xf32>,
    %c80 = arith.constant 80 : index
    %c0_82 = arith.constant 0 : index
    %206 = vector.load %arg12[%c80, %c0_82] : memref<96x1024xf32, #tpu.memory_space<vmem>>, vector<8x1024xf32>
    tpu.vector_store %arg12[%c80, %c0_82], %201 {strides = array<i32>} : memref<96x1024xf32, #tpu.memory_space<vmem>>, vector<8x1024xf32>,
    %c1023_i32_83 = arith.constant 1023 : i32
    %207 = tpu.dynamic_rotate %201 by %c1023_i32_83 dim 1 : vector<8x1024xf32>, i32 -> vector<8x1024xf32>
    %208 = vector.broadcast %10 : vector<1x1024xf32> to vector<8x1024xf32>
    %209 = arith.mulf %207, %208 : vector<8x1024xf32>
    %c88 = arith.constant 88 : index
    %c0_84 = arith.constant 0 : index
    %210 = vector.load %arg12[%c88, %c0_84] : memref<96x1024xf32, #tpu.memory_space<vmem>>, vector<8x1024xf32>
    tpu.vector_store %arg12[%c88, %c0_84], %209 {strides = array<i32>} : memref<96x1024xf32, #tpu.memory_space<vmem>>, vector<8x1024xf32>,
    %c0_85 = arith.constant 0 : index
    %c0_86 = arith.constant 0 : index
    %211 = vector.load %arg12[%c0_85, %c0_86] : memref<96x1024xf32, #tpu.memory_space<vmem>>, vector<96x1024xf32>
    %c0_87 = arith.constant 0 : index
    %c0_88 = arith.constant 0 : index
    %212 = vector.load %arg9[%c0_87, %c0_88] : memref<8x96xf32, #tpu.memory_space<vmem>>, vector<8x96xf32>
    %cst_89 = arith.constant dense<0.000000e+00> : vector<8x1024xf32>
    %213 = tpu.matmul %212, %211, %cst_89 {dimension_numbers = #tpu.dot_dimension_numbers<[1], [0], [0], [1], [0, 0, 1, 1], [], []>} : vector<8x96xf32>, vector<96x1024xf32>, vector<8x1024xf32> -> vector<8x1024xf32>
    %cst_90 = arith.constant dense<0.000000e+00> : vector<8xf32>
    %214 = vector.multi_reduction <add>, %213, %cst_90 [1] : vector<8x1024xf32> to vector<8xf32>
    %215 = vector.shape_cast %214 : vector<8xf32> to vector<8x1xf32>
    %cst_91 = arith.constant 1.024000e+03 : f32
    %216 = vector.broadcast %cst_91 : f32 to vector<8x1xf32>
    %217 = arith.divf %215, %216 : vector<8x1xf32>
    %218 = arith.mulf %213, %213 : vector<8x1024xf32>
    %cst_92 = arith.constant dense<0.000000e+00> : vector<8xf32>
    %219 = vector.multi_reduction <add>, %218, %cst_92 [1] : vector<8x1024xf32> to vector<8xf32>
    %220 = vector.shape_cast %219 : vector<8xf32> to vector<8x1xf32>
    %cst_93 = arith.constant 1.024000e+03 : f32
    %221 = vector.broadcast %cst_93 : f32 to vector<8x1xf32>
    %222 = arith.divf %220, %221 : vector<8x1xf32>
    %223 = arith.mulf %217, %217 : vector<8x1xf32>
    %224 = arith.subf %222, %223 : vector<8x1xf32>
    %225 = vector.broadcast %217 : vector<8x1xf32> to vector<8x1024xf32>
    %226 = arith.subf %213, %225 : vector<8x1024xf32>
    %cst_94 = arith.constant 9.99999974E-6 : f32
    %227 = vector.broadcast %cst_94 : f32 to vector<8x1xf32>
    %228 = arith.addf %224, %227 : vector<8x1xf32>
    %229 = math.rsqrt %228 : vector<8x1xf32>
    %230 = vector.broadcast %229 : vector<8x1xf32> to vector<8x1024xf32>
    %231 = arith.mulf %226, %230 : vector<8x1024xf32>
    %cst_95 = arith.constant 0.000000e+00 : f32
    %232 = vector.broadcast %cst_95 : f32 to vector<8x1024xf32>
    %233 = arith.maximumf %231, %232 : vector<8x1024xf32>
    %c1_i32_96 = arith.constant 1 : i32
    %234 = tpu.dynamic_rotate %233 by %c1_i32_96 dim 1 : vector<8x1024xf32>, i32 -> vector<8x1024xf32>
    %235 = vector.broadcast %6 : vector<1x1024xf32> to vector<8x1024xf32>
    %236 = arith.mulf %234, %235 : vector<8x1024xf32>
    %c1023_i32_97 = arith.constant 1023 : i32
    %237 = tpu.dynamic_rotate %233 by %c1023_i32_97 dim 1 : vector<8x1024xf32>, i32 -> vector<8x1024xf32>
    %238 = vector.broadcast %10 : vector<1x1024xf32> to vector<8x1024xf32>
    %239 = arith.mulf %237, %238 : vector<8x1024xf32>
    %c0_98 = arith.constant 0 : index
    %c0_99 = arith.constant 0 : index
    %240 = vector.load %arg10[%c0_98, %c0_99] : memref<8x3xf32, #tpu.memory_space<vmem>>, vector<8x3xf32>
    %241 = vector.extract_strided_slice %240 {offsets = [0, 0], sizes = [8, 1], strides = [1, 1]} : vector<8x3xf32> to vector<8x1xf32>
    %242 = vector.broadcast %241 : vector<8x1xf32> to vector<8x1024xf32>
    %243 = arith.mulf %242, %236 : vector<8x1024xf32>
    %244 = vector.extract_strided_slice %240 {offsets = [0, 1], sizes = [8, 1], strides = [1, 1]} : vector<8x3xf32> to vector<8x1xf32>
    %245 = vector.broadcast %244 : vector<8x1xf32> to vector<8x1024xf32>
    %246 = arith.mulf %245, %233 : vector<8x1024xf32>
    %247 = arith.addf %243, %246 : vector<8x1024xf32>
    %248 = vector.extract_strided_slice %240 {offsets = [0, 2], sizes = [8, 1], strides = [1, 1]} : vector<8x3xf32> to vector<8x1xf32>
    %249 = vector.broadcast %248 : vector<8x1xf32> to vector<8x1024xf32>
    %250 = arith.mulf %249, %239 : vector<8x1024xf32>
    %251 = arith.addf %247, %250 : vector<8x1024xf32>
    %cst_100 = arith.constant dense<0.000000e+00> : vector<1024xf32>
    %252 = vector.multi_reduction <add>, %251, %cst_100 [0] : vector<8x1024xf32> to vector<1024xf32>
    %253 = vector.shape_cast %252 : vector<1024xf32> to vector<1x1024xf32>
    %254 = vector.extract_strided_slice %253 {offsets = [0, 0], sizes = [1, 512], strides = [1, 1]} : vector<1x1024xf32> to vector<1x512xf32>
    %255 = vector.extract_strided_slice %253 {offsets = [0, 512], sizes = [1, 512], strides = [1, 1]} : vector<1x1024xf32> to vector<1x512xf32>
    %256 = tpu.concatenate %254, %255 in 0 : vector<1x512xf32>, vector<1x512xf32> -> vector<2x512xf32>
    %cst_101 = arith.constant dense<0xFF800000> : vector<2xf32>
    %257 = vector.multi_reduction <maximumf>, %256, %cst_101 [1] : vector<2x512xf32> to vector<2xf32>
    %258 = vector.shape_cast %257 : vector<2xf32> to vector<2x1xf32>
    %cst_102 = arith.constant dense<0x7F800000> : vector<2xf32>
    %259 = vector.multi_reduction <minimumf>, %256, %cst_102 [1] : vector<2x512xf32> to vector<2xf32>
    %260 = vector.shape_cast %259 : vector<2xf32> to vector<2x1xf32>
    %261 = vector.broadcast %260 : vector<2x1xf32> to vector<2x512xf32>
    %262 = arith.subf %256, %261 : vector<2x512xf32>
    %263 = arith.subf %258, %260 : vector<2x1xf32>
    %264 = tpu.reciprocal %263 {approx = true} : vector<2x1xf32> -> vector<2x1xf32>
    %265 = vector.broadcast %264 : vector<2x1xf32> to vector<2x512xf32>
    %266 = arith.mulf %262, %265 : vector<2x512xf32>
    %c0_103 = arith.constant 0 : index
    %c0_104 = arith.constant 0 : index
    %267 = vector.load %arg11[%c0_103, %c0_104] : memref<2x512xf32, #tpu.memory_space<vmem>>, vector<2x512xf32>
    tpu.vector_store %arg11[%c0_103, %c0_104], %266 {strides = array<i32>} : memref<2x512xf32, #tpu.memory_space<vmem>>, vector<2x512xf32>,
    return
  }
}

</mosaic_0001>

<llo_original>
// kernel: _lambda_.1
$region0: #{_lambda_.1}
  #allocation0 [shape = 'u32[]', space=smem, size = 0x4, offset = 0x4, fixed_abs, tag = 'smem constant byte address 0x4 - core index']
  #allocation1 [shape = 'u32[144,128]{1,0:T(1,128)}', space=vmem, size = 0x12000, scoped, tag = 'internal scratch']
  #allocation2 [shape = 'f32[96,1024]{1,0:T(8,128)}', space=vmem, size = 0x60000, scoped, tag = 'scratch operand']
  %s0 = inlined_call_operand.hbm [shape: f32[2,256], index: 0, kind: input, shape index: {}]
  %s1 = inlined_call_operand.hbm [shape: bf16[256,512], index: 1, kind: input, shape index: {}]
  %s2 = inlined_call_operand.hbm [shape: f32[1,512], index: 2, kind: input, shape index: {}]
  %s3 = inlined_call_operand.hbm [shape: bf16[512,512], index: 3, kind: input, shape index: {}]
  %s4 = inlined_call_operand.hbm [shape: f32[1,512], index: 4, kind: input, shape index: {}]
  %s5 = inlined_call_operand.hbm [shape: f32[8,3], index: 5, kind: input, shape index: {}]
  %s6 = inlined_call_operand.hbm [shape: f32[8,24], index: 6, kind: input, shape index: {}]
  %s7 = inlined_call_operand.hbm [shape: f32[8,48], index: 7, kind: input, shape index: {}]
  %s8 = inlined_call_operand.hbm [shape: f32[8,72], index: 8, kind: input, shape index: {}]
  %s9 = inlined_call_operand.vmem [shape: f32[8,96], index: 9, kind: input, shape index: {}]
  %s10 = inlined_call_operand.vmem [shape: f32[8,3], index: 10, kind: input, shape index: {}]
  %s11 = inlined_call_operand.hbm [shape: f32[2,512], index: 11, kind: output, shape index: {}]
  %s12 = sld [smem:[#allocation0]]
  $region90: #{_lambda_.1} parent=0
    _
  %s14 = ssub.s32 1, %s12
  %s15 = scalar_select 0, %s14, %s12
  $region1: #{_lambda_.1} parent=0
    #allocation3 [shape = 'u8[2048]{0}', space=vmem, size = 0x800, scoped, tag = 'input window, operand 0, single buffered']
    #allocation4 [shape = 's32[1]{0}', space=sflag, size = 0x4, scoped, tag = 'scoped memory for _lambda_.1']
    #allocation5 [shape = 's32[1]{0}', space=sflag, size = 0x4, scoped, tag = 'scoped memory for _lambda_.1']
    #allocation6 [shape = 'u8[262144]{0}', space=vmem, size = 0x40000, scoped, tag = 'input window, operand 1, single buffered']
    #allocation7 [shape = 's32[1]{0}', space=sflag, size = 0x4, scoped, tag = 'scoped memory for _lambda_.1']
    #allocation8 [shape = 'u8[2048]{0}', space=vmem, size = 0x800, scoped, tag = 'input window, operand 2, single buffered']
    #allocation9 [shape = 'u8[524288]{0}', space=vmem, size = 0x80000, scoped, tag = 'input window, operand 3, single buffered']
    #allocation10 [shape = 's32[1]{0}', space=sflag, size = 0x4, scoped, tag = 'scoped memory for _lambda_.1']
    #allocation11 [shape = 'u8[2048]{0}', space=vmem, size = 0x800, scoped, tag = 'input window, operand 4, single buffered']
    #allocation12 [shape = 'u8[4096]{0}', space=vmem, size = 0x1000, scoped, tag = 'input window, operand 5, single buffered']
    #allocation13 [shape = 's32[1]{0}', space=sflag, size = 0x4, scoped, tag = 'scoped memory for _lambda_.1']
    #allocation14 [shape = 'u8[4096]{0}', space=vmem, size = 0x1000, scoped, tag = 'input window, operand 6, single buffered']
    #allocation15 [shape = 'u8[4096]{0}', space=vmem, size = 0x1000, scoped, tag = 'input window, operand 7, single buffered']
    #allocation16 [shape = 's32[1]{0}', space=sflag, size = 0x4, scoped, tag = 'scoped memory for _lambda_.1']
    #allocation17 [shape = 'u8[4096]{0}', space=vmem, size = 0x1000, scoped, tag = 'input window, operand 8, single buffered']
    #allocation18 [shape = 'u8[4096]{0}', space=vmem, size = 0x1000, scoped, tag = 'output window, operand 0, single buffered']
    %16 = vsyncpa [#allocation4], 0
    %17 = vsyncpa [#allocation7], 0
    %18 = vsyncpa [#allocation10], 0
    %19 = vsyncpa [#allocation13], 0
    %20 = vsyncpa [#allocation16], 0
    %21 = vsyncpa [#allocation5], 0
    // Predicated region
    $region2: #{_lambda_.1} parent=1 // pred_check
      _
    $region3: #{_lambda_.1} parent=1 // pred_check_branch
      %23 = sbr.rel (0) target = $region5
    $region4: #{_lambda_.1} parent=1 // pred_region
      %s25 = ssub.s32 64, 64
      %26 = vsyncadd [#allocation4], %s25
      %s28 = sshll.u32 [#allocation3], 4
      %s29 = int_to_ptr.vmem [resolvable:$true] %s28
      %31 = dma.hbm_to_vmem [thread:$0]  %s0, 64, %s29, [#allocation4]
    $region5: #{_lambda_.1} parent=1 // pred_fallthru
      _
    // Predicated region
    $region6: #{_lambda_.1} parent=1 // pred_check
      _
    $region7: #{_lambda_.1} parent=1 // pred_check_branch
      %33 = sbr.rel (0) target = $region9
    $region8: #{_lambda_.1} parent=1 // pred_region
      %s35 = ssub.s32 8192, 8192
      %36 = vsyncadd [#allocation7], %s35
      %s37 = sshll.u32 [#allocation6], 4
      %s38 = int_to_ptr.vmem [resolvable:$true] %s37
      %43 = dma.hbm_to_vmem [thread:$0]  %s1, 8192, %s38, [#allocation7], 256, 256, 16
    $region9: #{_lambda_.1} parent=1 // pred_fallthru
      _
    // Predicated region
    $region10: #{_lambda_.1} parent=1 // pred_check
      _
    $region11: #{_lambda_.1} parent=1 // pred_check_branch
      %45 = sbr.rel (0) target = $region13
    $region12: #{_lambda_.1} parent=1 // pred_region
      %s47 = ssub.s32 64, 64
      %48 = vsyncadd [#allocation7], %s47
      %s50 = sshll.u32 [#allocation8], 4
      %s51 = int_to_ptr.vmem [resolvable:$true] %s50
      %53 = dma.hbm_to_vmem [thread:$0]  %s2, 64, %s51, [#allocation7]
    $region13: #{_lambda_.1} parent=1 // pred_fallthru
      _
    // Predicated region
    $region14: #{_lambda_.1} parent=1 // pred_check
      _
    $region15: #{_lambda_.1} parent=1 // pred_check_branch
      %55 = sbr.rel (0) target = $region17
    $region16: #{_lambda_.1} parent=1 // pred_region
      %s57 = ssub.s32 16384, 16384
      %58 = vsyncadd [#allocation10], %s57
      %s59 = sshll.u32 [#allocation9], 4
      %s60 = int_to_ptr.vmem [resolvable:$true] %s59
      %65 = dma.hbm_to_vmem [thread:$0]  %s3, 16384, %s60, [#allocation10], 256, 256, 16
    $region17: #{_lambda_.1} parent=1 // pred_fallthru
      _
    // Predicated region
    $region18: #{_lambda_.1} parent=1 // pred_check
      _
    $region19: #{_lambda_.1} parent=1 // pred_check_branch
      %67 = sbr.rel (0) target = $region21
    $region20: #{_lambda_.1} parent=1 // pred_region
      %s69 = ssub.s32 64, 64
      %70 = vsyncadd [#allocation10], %s69
      %s72 = sshll.u32 [#allocation11], 4
      %s73 = int_to_ptr.vmem [resolvable:$true] %s72
      %75 = dma.hbm_to_vmem [thread:$0]  %s4, 64, %s73, [#allocation10]
    $region21: #{_lambda_.1} parent=1 // pred_fallthru
      _
    // Predicated region
    $region22: #{_lambda_.1} parent=1 // pred_check
      _
    $region23: #{_lambda_.1} parent=1 // pred_check_branch
      %77 = sbr.rel (0) target = $region25
    $region24: #{_lambda_.1} parent=1 // pred_region
      %s79 = ssub.s32 128, 128
      %80 = vsyncadd [#allocation13], %s79
      %s82 = sshll.u32 [#allocation12], 4
      %s83 = int_to_ptr.vmem [resolvable:$true] %s82
      %85 = dma.hbm_to_vmem [thread:$0]  %s5, 128, %s83, [#allocation13]
    $region25: #{_lambda_.1} parent=1 // pred_fallthru
      _
    // Predicated region
    $region26: #{_lambda_.1} parent=1 // pred_check
      _
    $region27: #{_lambda_.1} parent=1 // pred_check_branch
      %87 = sbr.rel (0) target = $region29
    $region28: #{_lambda_.1} parent=1 // pred_region
      %s89 = ssub.s32 128, 128
      %90 = vsyncadd [#allocation13], %s89
      %s92 = sshll.u32 [#allocation14], 4
      %s93 = int_to_ptr.vmem [resolvable:$true] %s92
      %95 = dma.hbm_to_vmem [thread:$0]  %s6, 128, %s93, [#allocation13]
    $region29: #{_lambda_.1} parent=1 // pred_fallthru
      _
    // Predicated region
    $region30: #{_lambda_.1} parent=1 // pred_check
      _
    $region31: #{_lambda_.1} parent=1 // pred_check_branch
      %97 = sbr.rel (0) target = $region33
    $region32: #{_lambda_.1} parent=1 // pred_region
      %s99 = ssub.s32 128, 128
      %100 = vsyncadd [#allocation16], %s99
      %s102 = sshll.u32 [#allocation15], 4
      %s103 = int_to_ptr.vmem [resolvable:$true] %s102
      %105 = dma.hbm_to_vmem [thread:$0]  %s7, 128, %s103, [#allocation16]
    $region33: #{_lambda_.1} parent=1 // pred_fallthru
      _
    // Predicated region
    $region34: #{_lambda_.1} parent=1 // pred_check
      _
    $region35: #{_lambda_.1} parent=1 // pred_check_branch
      %107 = sbr.rel (0) target = $region37
    $region36: #{_lambda_.1} parent=1 // pred_region
      %s109 = ssub.s32 128, 128
      %110 = vsyncadd [#allocation16], %s109
      %s112 = sshll.u32 [#allocation17], 4
      %s113 = int_to_ptr.vmem [resolvable:$true] %s112
      %115 = dma.hbm_to_vmem [thread:$0]  %s8, 128, %s113, [#allocation16]
    $region37: #{_lambda_.1} parent=1 // pred_fallthru
      _
    // Predicated region
    $region38: #{_lambda_.1} parent=1 // pred_check
      _
    $region39: #{_lambda_.1} parent=1 // pred_check_branch
      %117 = sbr.rel (0) target = $region41
    $region40: #{_lambda_.1} parent=1 // pred_region
      _
    $region41: #{_lambda_.1} parent=1 // pred_fallthru
      _
    // Predicated region
    $region42: #{_lambda_.1} parent=1 // pred_check
      _
    $region43: #{_lambda_.1} parent=1 // pred_check_branch
      %119 = sbr.rel (0) target = $region45
    $region44: #{_lambda_.1} parent=1 // pred_region
      _
    $region45: #{_lambda_.1} parent=1 // pred_fallthru
      _
    // Predicated region
    $region46: #{_lambda_.1} parent=1 // pred_check
      _
    $region47: #{_lambda_.1} parent=1 // pred_check_branch
      %121 = sbr.rel (0) target = $region49
    $region48: #{_lambda_.1} parent=1 // pred_region
      %122 = dma.done [#allocation4], 64
    $region49: #{_lambda_.1} parent=1 // pred_fallthru
      _
    // Predicated region
    $region50: #{_lambda_.1} parent=1 // pred_check
      _
    $region51: #{_lambda_.1} parent=1 // pred_check_branch
      %124 = sbr.rel (0) target = $region53
    $region52: #{_lambda_.1} parent=1 // pred_region
      %125 = dma.done [#allocation7], 8192
    $region53: #{_lambda_.1} parent=1 // pred_fallthru
      _
    // Predicated region
    $region54: #{_lambda_.1} parent=1 // pred_check
      _
    $region55: #{_lambda_.1} parent=1 // pred_check_branch
      %127 = sbr.rel (0) target = $region57
    $region56: #{_lambda_.1} parent=1 // pred_region
      %128 = dma.done [#allocation7], 64
    $region57: #{_lambda_.1} parent=1 // pred_fallthru
      _
    // Predicated region
    $region58: #{_lambda_.1} parent=1 // pred_check
      _
    $region59: #{_lambda_.1} parent=1 // pred_check_branch
      %130 = sbr.rel (0) target = $region61
    $region60: #{_lambda_.1} parent=1 // pred_region
      %131 = dma.done [#allocation10], 16384
    $region61: #{_lambda_.1} parent=1 // pred_fallthru
      _
    // Predicated region
    $region62: #{_lambda_.1} parent=1 // pred_check
      _
    $region63: #{_lambda_.1} parent=1 // pred_check_branch
      %133 = sbr.rel (0) target = $region65
    $region64: #{_lambda_.1} parent=1 // pred_region
      %134 = dma.done [#allocation10], 64
    $region65: #{_lambda_.1} parent=1 // pred_fallthru
      _
    // Predicated region
    $region66: #{_lambda_.1} parent=1 // pred_check
      _
    $region67: #{_lambda_.1} parent=1 // pred_check_branch
      %136 = sbr.rel (0) target = $region69
    $region68: #{_lambda_.1} parent=1 // pred_region
      %137 = dma.done [#allocation13], 128
    $region69: #{_lambda_.1} parent=1 // pred_fallthru
      _
    // Predicated region
    $region70: #{_lambda_.1} parent=1 // pred_check
      _
    $region71: #{_lambda_.1} parent=1 // pred_check_branch
      %139 = sbr.rel (0) target = $region73
    $region72: #{_lambda_.1} parent=1 // pred_region
      %140 = dma.done [#allocation13], 128
    $region73: #{_lambda_.1} parent=1 // pred_fallthru
      _
    // Predicated region
    $region74: #{_lambda_.1} parent=1 // pred_check
      _
    $region75: #{_lambda_.1} parent=1 // pred_check_branch
      %142 = sbr.rel (0) target = $region77
    $region76: #{_lambda_.1} parent=1 // pred_region
      %143 = dma.done [#allocation16], 128
    $region77: #{_lambda_.1} parent=1 // pred_fallthru
      _
    // Predicated region
    $region78: #{_lambda_.1} parent=1 // pred_check
      _
    $region79: #{_lambda_.1} parent=1 // pred_check_branch
      %145 = sbr.rel (0) target = $region81
    $region80: #{_lambda_.1} parent=1 // pred_region
      %146 = dma.done [#allocation16], 128
    $region81: #{_lambda_.1} parent=1 // pred_fallthru
      _
    %v147 = vlaneseq
    %v148 = vand.u32 %v147, 127
    %v149 = vadd.s32 %v148, 128
    %v150 = vadd.s32 %v148, 256
    %v151 = vadd.s32 %v148, 384
    %v152 = vadd.s32 %v148, 512
    %v153 = vadd.s32 %v148, 640
    %v154 = vadd.s32 %v148, 768
    %v155 = vadd.s32 %v148, 896
    %v156 = vand.u32 %v148, 511
    %v157 = vand.u32 %v149, 511
    %v158 = vand.u32 %v150, 511
    %v159 = vand.u32 %v151, 511
    %v160 = vand.u32 %v152, 511
    %v161 = vand.u32 %v153, 511
    %v162 = vand.u32 %v154, 511
    %v163 = vand.u32 %v155, 511
    %vm164 = vcmp.ne.s32.totalorder %v156, 0
    %vm165 = vcmp.ne.s32.totalorder %v157, 0
    %vm166 = vcmp.ne.s32.totalorder %v158, 0
    %vm167 = vcmp.ne.s32.totalorder %v159, 0
    %vm168 = vcmp.ne.s32.totalorder %v160, 0
    %vm169 = vcmp.ne.s32.totalorder %v161, 0
    %vm170 = vcmp.ne.s32.totalorder %v162, 0
    %vm171 = vcmp.ne.s32.totalorder %v163, 0
    %v172 = vsel %vm164, 1, 0
    %v173 = vsel %vm165, 1, 0
    %v174 = vsel %vm166, 1, 0
    %v175 = vsel %vm167, 1, 0
    %v176 = vsel %vm168, 1, 0
    %v177 = vsel %vm169, 1, 0
    %v178 = vsel %vm170, 1, 0
    %v179 = vsel %vm171, 1, 0
    %v180 = vcvt.s32.f32 %v172
    %v181 = vcvt.s32.f32 %v173
    %v182 = vcvt.s32.f32 %v174
    %v183 = vcvt.s32.f32 %v175
    %v184 = vcvt.s32.f32 %v176
    %v185 = vcvt.s32.f32 %v177
    %v186 = vcvt.s32.f32 %v178
    %v187 = vcvt.s32.f32 %v179
    %vm188 = vcmp.ne.s32.totalorder %v156, 511
    %vm189 = vcmp.ne.s32.totalorder %v157, 511
    %vm190 = vcmp.ne.s32.totalorder %v158, 511
    %vm191 = vcmp.ne.s32.totalorder %v159, 511
    %vm192 = vcmp.ne.s32.totalorder %v160, 511
    %vm193 = vcmp.ne.s32.totalorder %v161, 511
    %vm194 = vcmp.ne.s32.totalorder %v162, 511
    %vm195 = vcmp.ne.s32.totalorder %v163, 511
    %v196 = vsel %vm188, 1, 0
    %v197 = vsel %vm189, 1, 0
    %v198 = vsel %vm190, 1, 0
    %v199 = vsel %vm191, 1, 0
    %v200 = vsel %vm192, 1, 0
    %v201 = vsel %vm193, 1, 0
    %v202 = vsel %vm194, 1, 0
    %v203 = vsel %vm195, 1, 0
    %v204 = vcvt.s32.f32 %v196
    %v205 = vcvt.s32.f32 %v197
    %v206 = vcvt.s32.f32 %v198
    %v207 = vcvt.s32.f32 %v199
    %v208 = vcvt.s32.f32 %v200
    %v209 = vcvt.s32.f32 %v201
    %v210 = vcvt.s32.f32 %v202
    %v211 = vcvt.s32.f32 %v203
    %v212 = vld [vmem:[#allocation3] sm:$0xf]
    %v215 = vunpack.c.l.s4 1983009808
    %v216 = vunpack.c.0.s8 %v215
    %v217 = vlaneseq
    %v218 = vshrl.u32 %v217, 7
    %v219 = vsub.s32 %v216, %v218
    %v220 = vrot.slane %v212, %v219
    %v221 = vcombine.high %v220, %v220
    %v224 = vpack.c.bf16 %v220, %v220
    %v225 = vpack.c.bf16 %v221, %v221
    %v226 = vld [vmem:[#allocation6] sm:$0xff]
    %v227 = vld [vmem:[#allocation6 + $0x8] sm:$0xff]
    %v228 = vld [vmem:[#allocation6 + $0x10] sm:$0xff]
    %v229 = vld [vmem:[#allocation6 + $0x18] sm:$0xff]
    %v230 = vld [vmem:[#allocation6 + $0x20] sm:$0xff]
    %v231 = vld [vmem:[#allocation6 + $0x28] sm:$0xff]
    %v232 = vld [vmem:[#allocation6 + $0x30] sm:$0xff]
    %v233 = vld [vmem:[#allocation6 + $0x38] sm:$0xff]
    %v234 = vld [vmem:[#allocation6 + $0x40] sm:$0xff]
    %v235 = vld [vmem:[#allocation6 + $0x48] sm:$0xff]
    %v236 = vld [vmem:[#allocation6 + $0x50] sm:$0xff]
    %v237 = vld [vmem:[#allocation6 + $0x58] sm:$0xff]
    %v238 = vld [vmem:[#allocation6 + $0x60] sm:$0xff]
    %v239 = vld [vmem:[#allocation6 + $0x68] sm:$0xff]
    %v240 = vld [vmem:[#allocation6 + $0x70] sm:$0xff]
    %v241 = vld [vmem:[#allocation6 + $0x78] sm:$0xff]
    %v242 = vld [vmem:[#allocation6 + $0x80] sm:$0xff]
    %v243 = vld [vmem:[#allocation6 + $0x88] sm:$0xff]
    %v244 = vld [vmem:[#allocation6 + $0x90] sm:$0xff]
    %v245 = vld [vmem:[#allocation6 + $0x98] sm:$0xff]
    %v246 = vld [vmem:[#allocation6 + $0xa0] sm:$0xff]
    %v247 = vld [vmem:[#allocation6 + $0xa8] sm:$0xff]
    %v248 = vld [vmem:[#allocation6 + $0xb0] sm:$0xff]
    %v249 = vld [vmem:[#allocation6 + $0xb8] sm:$0xff]
    %v250 = vld [vmem:[#allocation6 + $0xc0] sm:$0xff]
    %v251 = vld [vmem:[#allocation6 + $0xc8] sm:$0xff]
    %v252 = vld [vmem:[#allocation6 + $0xd0] sm:$0xff]
    %v253 = vld [vmem:[#allocation6 + $0xd8] sm:$0xff]
    %v254 = vld [vmem:[#allocation6 + $0xe0] sm:$0xff]
    %v255 = vld [vmem:[#allocation6 + $0xe8] sm:$0xff]
    %v256 = vld [vmem:[#allocation6 + $0xf0] sm:$0xff]
    %v257 = vld [vmem:[#allocation6 + $0xf8] sm:$0xff]
    %v258 = vld [vmem:[#allocation6 + $0x100] sm:$0xff]
    %v259 = vld [vmem:[#allocation6 + $0x108] sm:$0xff]
    %v260 = vld [vmem:[#allocation6 + $0x110] sm:$0xff]
    %v261 = vld [vmem:[#allocation6 + $0x118] sm:$0xff]
    %v262 = vld [vmem:[#allocation6 + $0x120] sm:$0xff]
    %v263 = vld [vmem:[#allocation6 + $0x128] sm:$0xff]
    %v264 = vld [vmem:[#allocation6 + $0x130] sm:$0xff]
    %v265 = vld [vmem:[#allocation6 + $0x138] sm:$0xff]
    %v266 = vld [vmem:[#allocation6 + $0x140] sm:$0xff]
    %v267 = vld [vmem:[#allocation6 + $0x148] sm:$0xff]
    %v268 = vld [vmem:[#allocation6 + $0x150] sm:$0xff]
    %v269 = vld [vmem:[#allocation6 + $0x158] sm:$0xff]
    %v270 = vld [vmem:[#allocation6 + $0x160] sm:$0xff]
    %v271 = vld [vmem:[#allocation6 + $0x168] sm:$0xff]
    %v272 = vld [vmem:[#allocation6 + $0x170] sm:$0xff]
    %v273 = vld [vmem:[#allocation6 + $0x178] sm:$0xff]
    %v274 = vld [vmem:[#allocation6 + $0x180] sm:$0xff]
    %v275 = vld [vmem:[#allocation6 + $0x188] sm:$0xff]
    %v276 = vld [vmem:[#allocation6 + $0x190] sm:$0xff]
    %v277 = vld [vmem:[#allocation6 + $0x198] sm:$0xff]
    %v278 = vld [vmem:[#allocation6 + $0x1a0] sm:$0xff]
    %v279 = vld [vmem:[#allocation6 + $0x1a8] sm:$0xff]
    %v280 = vld [vmem:[#allocation6 + $0x1b0] sm:$0xff]
    %v281 = vld [vmem:[#allocation6 + $0x1b8] sm:$0xff]
    %v282 = vld [vmem:[#allocation6 + $0x1c0] sm:$0xff]
    %v283 = vld [vmem:[#allocation6 + $0x1c8] sm:$0xff]
    %v284 = vld [vmem:[#allocation6 + $0x1d0] sm:$0xff]
    %v285 = vld [vmem:[#allocation6 + $0x1d8] sm:$0xff]
    %v286 = vld [vmem:[#allocation6 + $0x1e0] sm:$0xff]
    %v287 = vld [vmem:[#allocation6 + $0x1e8] sm:$0xff]
    %v288 = vld [vmem:[#allocation6 + $0x1f0] sm:$0xff]
    %v289 = vld [vmem:[#allocation6 + $0x1f8] sm:$0xff]
    %v290 = vld [vmem:[#allocation8] sm:$0xf]
    %v292 = vlaneseq
    %v293 = vshrl.u32 %v292, 7
    %v294 = vsub.s32 0, %v293
    %v295 = vrot.slane %v290, %v294
    %v296 = vlaneseq
    %v297 = vshrl.u32 %v296, 7
    %v298 = vsub.s32 1, %v297
    %v299 = vrot.slane %v290, %v298
    %v300 = vlaneseq
    %v301 = vshrl.u32 %v300, 7
    %v302 = vsub.s32 2, %v301
    %v303 = vrot.slane %v290, %v302
    %v304 = vlaneseq
    %v305 = vshrl.u32 %v304, 7
    %v306 = vsub.s32 3, %v305
    %v307 = vrot.slane %v290, %v306
    %v376 = vunpack.c.l.b16 %v226
    %v377 = vunpack.c.h.b16 %v226
    %v378 = vunpack.c.l.b16 %v227
    %v379 = vunpack.c.h.b16 %v227
    %v380 = vunpack.c.l.b16 %v228
    %v381 = vunpack.c.h.b16 %v228
    %v382 = vunpack.c.l.b16 %v229
    %v383 = vunpack.c.h.b16 %v229
    %v384 = vunpack.c.l.b16 %v230
    %v385 = vunpack.c.h.b16 %v230
    %v386 = vunpack.c.l.b16 %v231
    %v387 = vunpack.c.h.b16 %v231
    %v388 = vunpack.c.l.b16 %v232
    %v389 = vunpack.c.h.b16 %v232
    %v390 = vunpack.c.l.b16 %v233
    %v391 = vunpack.c.h.b16 %v233
    %v392 = vunpack.c.l.b16 %v234
    %v393 = vunpack.c.h.b16 %v234
    %v394 = vunpack.c.l.b16 %v235
    %v395 = vunpack.c.h.b16 %v235
    %v396 = vunpack.c.l.b16 %v236
    %v397 = vunpack.c.h.b16 %v236
    %v398 = vunpack.c.l.b16 %v237
    %v399 = vunpack.c.h.b16 %v237
    %v400 = vunpack.c.l.b16 %v238
    %v401 = vunpack.c.h.b16 %v238
    %v402 = vunpack.c.l.b16 %v239
    %v403 = vunpack.c.h.b16 %v239
    %v404 = vunpack.c.l.b16 %v240
    %v405 = vunpack.c.h.b16 %v240
    %v406 = vunpack.c.l.b16 %v241
    %v407 = vunpack.c.h.b16 %v241
    %v408 = vunpack.c.l.b16 %v242
    %v409 = vunpack.c.h.b16 %v242
    %v410 = vunpack.c.l.b16 %v243
    %v411 = vunpack.c.h.b16 %v243
    %v412 = vunpack.c.l.b16 %v244
    %v413 = vunpack.c.h.b16 %v244
    %v414 = vunpack.c.l.b16 %v245
    %v415 = vunpack.c.h.b16 %v245
    %v416 = vunpack.c.l.b16 %v246
    %v417 = vunpack.c.h.b16 %v246
    %v418 = vunpack.c.l.b16 %v247
    %v419 = vunpack.c.h.b16 %v247
    %v420 = vunpack.c.l.b16 %v248
    %v421 = vunpack.c.h.b16 %v248
    %v422 = vunpack.c.l.b16 %v249
    %v423 = vunpack.c.h.b16 %v249
    %v424 = vunpack.c.l.b16 %v250
    %v425 = vunpack.c.h.b16 %v250
    %v426 = vunpack.c.l.b16 %v251
    %v427 = vunpack.c.h.b16 %v251
    %v428 = vunpack.c.l.b16 %v252
    %v429 = vunpack.c.h.b16 %v252
    %v430 = vunpack.c.l.b16 %v253
    %v431 = vunpack.c.h.b16 %v253
    %v432 = vunpack.c.l.b16 %v254
    %v433 = vunpack.c.h.b16 %v254
    %v434 = vunpack.c.l.b16 %v255
    %v435 = vunpack.c.h.b16 %v255
    %v436 = vunpack.c.l.b16 %v256
    %v437 = vunpack.c.h.b16 %v256
    %v438 = vunpack.c.l.b16 %v257
    %v439 = vunpack.c.h.b16 %v257
    %v440 = vunpack.c.l.b16 %v258
    %v441 = vunpack.c.h.b16 %v258
    %v442 = vunpack.c.l.b16 %v259
    %v443 = vunpack.c.h.b16 %v259
    %v444 = vunpack.c.l.b16 %v260
    %v445 = vunpack.c.h.b16 %v260
    %v446 = vunpack.c.l.b16 %v261
    %v447 = vunpack.c.h.b16 %v261
    %v448 = vunpack.c.l.b16 %v262
    %v449 = vunpack.c.h.b16 %v262
    %v450 = vunpack.c.l.b16 %v263
    %v451 = vunpack.c.h.b16 %v263
    %v452 = vunpack.c.l.b16 %v264
    %v453 = vunpack.c.h.b16 %v264
    %v454 = vunpack.c.l.b16 %v265
    %v455 = vunpack.c.h.b16 %v265
    %v456 = vunpack.c.l.b16 %v266
    %v457 = vunpack.c.h.b16 %v266
    %v458 = vunpack.c.l.b16 %v267
    %v459 = vunpack.c.h.b16 %v267
    %v460 = vunpack.c.l.b16 %v268
    %v461 = vunpack.c.h.b16 %v268
    %v462 = vunpack.c.l.b16 %v269
    %v463 = vunpack.c.h.b16 %v269
    %v464 = vunpack.c.l.b16 %v270
    %v465 = vunpack.c.h.b16 %v270
    %v466 = vunpack.c.l.b16 %v271
    %v467 = vunpack.c.h.b16 %v271
    %v468 = vunpack.c.l.b16 %v272
    %v469 = vunpack.c.h.b16 %v272
    %v470 = vunpack.c.l.b16 %v273
    %v471 = vunpack.c.h.b16 %v273
    %v472 = vunpack.c.l.b16 %v274
    %v473 = vunpack.c.h.b16 %v274
    %v474 = vunpack.c.l.b16 %v275
    %v475 = vunpack.c.h.b16 %v275
    %v476 = vunpack.c.l.b16 %v276
    %v477 = vunpack.c.h.b16 %v276
    %v478 = vunpack.c.l.b16 %v277
    %v479 = vunpack.c.h.b16 %v277
    %v480 = vunpack.c.l.b16 %v278
    %v481 = vunpack.c.h.b16 %v278
    %v482 = vunpack.c.l.b16 %v279
    %v483 = vunpack.c.h.b16 %v279
    %v484 = vunpack.c.l.b16 %v280
    %v485 = vunpack.c.h.b16 %v280
    %v486 = vunpack.c.l.b16 %v281
    %v487 = vunpack.c.h.b16 %v281
    %v488 = vunpack.c.l.b16 %v282
    %v489 = vunpack.c.h.b16 %v282
    %v490 = vunpack.c.l.b16 %v283
    %v491 = vunpack.c.h.b16 %v283
    %v492 = vunpack.c.l.b16 %v284
    %v493 = vunpack.c.h.b16 %v284
    %v494 = vunpack.c.l.b16 %v285
    %v495 = vunpack.c.h.b16 %v285
    %v496 = vunpack.c.l.b16 %v286
    %v497 = vunpack.c.h.b16 %v286
    %v498 = vunpack.c.l.b16 %v287
    %v499 = vunpack.c.h.b16 %v287
    %v500 = vunpack.c.l.b16 %v288
    %v501 = vunpack.c.h.b16 %v288
    %v502 = vunpack.c.l.b16 %v289
    %v503 = vunpack.c.h.b16 %v289
    %v504 = vpack.c.b16 %v380, %v376
    %v505 = vpack.c.b16 %v381, %v377
    %v506 = vpack.c.b16 %v382, %v378
    %v507 = vpack.c.b16 %v383, %v379
    %v508 = vpack.c.b16 %v388, %v384
    %v509 = vpack.c.b16 %v389, %v385
    %v510 = vpack.c.b16 %v390, %v386
    %v511 = vpack.c.b16 %v391, %v387
    %v512 = vpack.c.b16 %v396, %v392
    %v513 = vpack.c.b16 %v397, %v393
    %v514 = vpack.c.b16 %v398, %v394
    %v515 = vpack.c.b16 %v399, %v395
    %v516 = vpack.c.b16 %v404, %v400
    %v517 = vpack.c.b16 %v405, %v401
    %v518 = vpack.c.b16 %v406, %v402
    %v519 = vpack.c.b16 %v407, %v403
    %v520 = vpack.c.b16 %v412, %v408
    %v521 = vpack.c.b16 %v413, %v409
    %v522 = vpack.c.b16 %v414, %v410
    %v523 = vpack.c.b16 %v415, %v411
    %v524 = vpack.c.b16 %v420, %v416
    %v525 = vpack.c.b16 %v421, %v417
    %v526 = vpack.c.b16 %v422, %v418
    %v527 = vpack.c.b16 %v423, %v419
    %v528 = vpack.c.b16 %v428, %v424
    %v529 = vpack.c.b16 %v429, %v425
    %v530 = vpack.c.b16 %v430, %v426
    %v531 = vpack.c.b16 %v431, %v427
    %v532 = vpack.c.b16 %v436, %v432
    %v533 = vpack.c.b16 %v437, %v433
    %v534 = vpack.c.b16 %v438, %v434
    %v535 = vpack.c.b16 %v439, %v435
    %v536 = vpack.c.b16 %v444, %v440
    %v537 = vpack.c.b16 %v445, %v441
    %v538 = vpack.c.b16 %v446, %v442
    %v539 = vpack.c.b16 %v447, %v443
    %v540 = vpack.c.b16 %v452, %v448
    %v541 = vpack.c.b16 %v453, %v449
    %v542 = vpack.c.b16 %v454, %v450
    %v543 = vpack.c.b16 %v455, %v451
    %v544 = vpack.c.b16 %v460, %v456
    %v545 = vpack.c.b16 %v461, %v457
    %v546 = vpack.c.b16 %v462, %v458
    %v547 = vpack.c.b16 %v463, %v459
    %v548 = vpack.c.b16 %v468, %v464
    %v549 = vpack.c.b16 %v469, %v465
    %v550 = vpack.c.b16 %v470, %v466
    %v551 = vpack.c.b16 %v471, %v467
    %v552 = vpack.c.b16 %v476, %v472
    %v553 = vpack.c.b16 %v477, %v473
    %v554 = vpack.c.b16 %v478, %v474
    %v555 = vpack.c.b16 %v479, %v475
    %v556 = vpack.c.b16 %v484, %v480
    %v557 = vpack.c.b16 %v485, %v481
    %v558 = vpack.c.b16 %v486, %v482
    %v559 = vpack.c.b16 %v487, %v483
    %v560 = vpack.c.b16 %v492, %v488
    %v561 = vpack.c.b16 %v493, %v489
    %v562 = vpack.c.b16 %v494, %v490
    %v563 = vpack.c.b16 %v495, %v491
    %v564 = vpack.c.b16 %v500, %v496
    %v565 = vpack.c.b16 %v501, %v497
    %v566 = vpack.c.b16 %v502, %v498
    %v567 = vpack.c.b16 %v503, %v499
    %632 = vmatprep.subr.bf16.mxu0 %v533
    %633 = vmatpush1.bf16.msra.mxu0 %v532
    %634 = vmatprep.subr.bf16.mxu0 %v529
    %635 = vmatpush1.bf16.msra.mxu0 %v528
    %636 = vmatprep.subr.bf16.mxu0 %v525
    %637 = vmatpush1.bf16.msra.mxu0 %v524
    %638 = vmatprep.subr.bf16.mxu0 %v521
    %639 = vmatpush1.bf16.msra.mxu0 %v520
    %640 = vmatprep.subr.bf16.mxu0 %v517
    %641 = vmatpush1.bf16.msra.mxu0 %v516
    %642 = vmatprep.subr.bf16.mxu0 %v513
    %643 = vmatpush1.bf16.msra.mxu0 %v512
    %644 = vmatprep.subr.bf16.mxu0 %v509
    %645 = vmatpush1.bf16.msra.mxu0 %v508
    %646 = vmatprep.subr.bf16.mxu0 %v505
    %647 = vmatpush1.bf16.msra.mxu0 %v504
    %648 = vmatprep.subr.bf16.mxu0 %v565
    %649 = vmatpush2.bf16.msra.mxu0 %v564
    %650 = vmatprep.subr.bf16.mxu0 %v561
    %651 = vmatpush2.bf16.msra.mxu0 %v560
    %652 = vmatprep.subr.bf16.mxu0 %v557
    %653 = vmatpush2.bf16.msra.mxu0 %v556
    %654 = vmatprep.subr.bf16.mxu0 %v553
    %655 = vmatpush2.bf16.msra.mxu0 %v552
    %656 = vmatprep.subr.bf16.mxu0 %v549
    %657 = vmatpush2.bf16.msra.mxu0 %v548
    %658 = vmatprep.subr.bf16.mxu0 %v545
    %659 = vmatpush2.bf16.msra.mxu0 %v544
    %660 = vmatprep.subr.bf16.mxu0 %v541
    %661 = vmatpush2.bf16.msra.mxu0 %v540
    %662 = vmatprep.subr.bf16.mxu0 %v537
    %663 = vmatpush2.bf16.msra.mxu0 %v536
    %664 = vmatprep.mubr.bf16.mxu0 %v225
    %665 = vmatmul.mubr.bf16.gmra.mxu0 %v224
    %v666 = vpop.f32.mrf.mxu0
    %v667 = vadd.f32 %v295, %v666
    %v668 = vpop.f32.mrf.mxu0
    %v669 = vadd.f32 %v299, %v668
    %v670 = vpop.f32.mrf.mxu0
    %v671 = vpop.f32.mrf.mxu0
    %672 = vdwg.mxu0
    %673 = vmatprep.subr.bf16.mxu0 %v535
    %674 = vmatpush1.bf16.msra.mxu0 %v534
    %675 = vmatprep.subr.bf16.mxu0 %v531
    %676 = vmatpush1.bf16.msra.mxu0 %v530
    %677 = vmatprep.subr.bf16.mxu0 %v527
    %678 = vmatpush1.bf16.msra.mxu0 %v526
    %679 = vmatprep.subr.bf16.mxu0 %v523
    %680 = vmatpush1.bf16.msra.mxu0 %v522
    %681 = vmatprep.subr.bf16.mxu0 %v519
    %682 = vmatpush1.bf16.msra.mxu0 %v518
    %683 = vmatprep.subr.bf16.mxu0 %v515
    %684 = vmatpush1.bf16.msra.mxu0 %v514
    %685 = vmatprep.subr.bf16.mxu0 %v511
    %686 = vmatpush1.bf16.msra.mxu0 %v510
    %687 = vmatprep.subr.bf16.mxu0 %v507
    %688 = vmatpush1.bf16.msra.mxu0 %v506
    %689 = vmatprep.subr.bf16.mxu0 %v567
    %690 = vmatpush2.bf16.msra.mxu0 %v566
    %691 = vmatprep.subr.bf16.mxu0 %v563
    %692 = vmatpush2.bf16.msra.mxu0 %v562
    %693 = vmatprep.subr.bf16.mxu0 %v559
    %694 = vmatpush2.bf16.msra.mxu0 %v558
    %695 = vmatprep.subr.bf16.mxu0 %v555
    %696 = vmatpush2.bf16.msra.mxu0 %v554
    %697 = vmatprep.subr.bf16.mxu0 %v551
    %698 = vmatpush2.bf16.msra.mxu0 %v550
    %699 = vmatprep.subr.bf16.mxu0 %v547
    %700 = vmatpush2.bf16.msra.mxu0 %v546
    %701 = vmatprep.subr.bf16.mxu0 %v543
    %702 = vmatpush2.bf16.msra.mxu0 %v542
    %703 = vmatprep.subr.bf16.mxu0 %v539
    %704 = vmatpush2.bf16.msra.mxu0 %v538
    %705 = vmatprep.mubr.bf16.mxu0 %v225
    %706 = vmatmul.mubr.bf16.gmra.mxu0 %v224
    %v707 = vpop.f32.mrf.mxu0
    %v708 = vadd.f32 %v303, %v707
    %v709 = vpop.f32.mrf.mxu0
    %v710 = vadd.f32 %v307, %v709
    %v711 = vpop.f32.mrf.mxu0
    %v712 = vpop.f32.mrf.mxu0
    %713 = vdwg.mxu0
    %vm714 = vcmask 1041408
    %v715 = vsel %vm714, %v667, 0.0
    %v716 = vrot.slane %v715, 4
    %v717 = vadd.f32 %v715, %v716
    %v718 = vrot.slane %v717, 2
    %v719 = vadd.f32 %v717, %v718
    %v720 = vrot.slane %v719, 1
    %v721 = vadd.f32 %v719, %v720
    %v722 = vsel %vm714, %v669, 0.0
    %v723 = vrot.slane %v722, 4
    %v724 = vadd.f32 %v722, %v723
    %v725 = vrot.slane %v724, 2
    %v726 = vadd.f32 %v724, %v725
    %v727 = vrot.slane %v726, 1
    %v728 = vadd.f32 %v726, %v727
    %v729 = vsel %vm714, %v708, 0.0
    %v730 = vrot.slane %v729, 4
    %v731 = vadd.f32 %v729, %v730
    %v732 = vrot.slane %v731, 2
    %v733 = vadd.f32 %v731, %v732
    %v734 = vrot.slane %v733, 1
    %v735 = vadd.f32 %v733, %v734
    %v736 = vsel %vm714, %v710, 0.0
    %v737 = vrot.slane %v736, 4
    %v738 = vadd.f32 %v736, %v737
    %v739 = vrot.slane %v738, 2
    %v740 = vadd.f32 %v738, %v739
    %v741 = vrot.slane %v740, 1
    %v742 = vadd.f32 %v740, %v741
    %v743 = vrcp.pop 2.0
    %v744 = vmul.f32 %v721, %v743
    %v745 = vmul.f32 %v728, %v743
    %v746 = vmul.f32 %v735, %v743
    %v747 = vmul.f32 %v742, %v743
    %v748 = vmul.f32 %v667, %v667
    %v749 = vmul.f32 %v669, %v669
    %v750 = vmul.f32 %v708, %v708
    %v751 = vmul.f32 %v710, %v710
    %v752 = vsel %vm714, %v748, 0.0
    %v753 = vrot.slane %v752, 4
    %v754 = vadd.f32 %v752, %v753
    %v755 = vrot.slane %v754, 2
    %v756 = vadd.f32 %v754, %v755
    %v757 = vrot.slane %v756, 1
    %v758 = vadd.f32 %v756, %v757
    %v759 = vsel %vm714, %v749, 0.0
    %v760 = vrot.slane %v759, 4
    %v761 = vadd.f32 %v759, %v760
    %v762 = vrot.slane %v761, 2
    %v763 = vadd.f32 %v761, %v762
    %v764 = vrot.slane %v763, 1
    %v765 = vadd.f32 %v763, %v764
    %v766 = vsel %vm714, %v750, 0.0
    %v767 = vrot.slane %v766, 4
    %v768 = vadd.f32 %v766, %v767
    %v769 = vrot.slane %v768, 2
    %v770 = vadd.f32 %v768, %v769
    %v771 = vrot.slane %v770, 1
    %v772 = vadd.f32 %v770, %v771
    %v773 = vsel %vm714, %v751, 0.0
    %v774 = vrot.slane %v773, 4
    %v775 = vadd.f32 %v773, %v774
    %v776 = vrot.slane %v775, 2
    %v777 = vadd.f32 %v775, %v776
    %v778 = vrot.slane %v777, 1
    %v779 = vadd.f32 %v777, %v778
    %v780 = vmul.f32 %v758, %v743
    %v781 = vmul.f32 %v765, %v743
    %v782 = vmul.f32 %v772, %v743
    %v783 = vmul.f32 %v779, %v743
    %v784 = vmul.f32 %v744, %v744
    %v785 = vmul.f32 %v745, %v745
    %v786 = vmul.f32 %v746, %v746
    %v787 = vmul.f32 %v747, %v747
    %v788 = vsub.f32 %v780, %v784
    %v789 = vsub.f32 %v781, %v785
    %v790 = vsub.f32 %v782, %v786
    %v791 = vsub.f32 %v783, %v787
    %v792 = vsub.f32 %v667, %v744
    %v793 = vsub.f32 %v669, %v745
    %v794 = vsub.f32 %v708, %v746
    %v795 = vsub.f32 %v710, %v747
    %v796 = vadd.f32 %v788, 1e-05
    %v797 = vadd.f32 %v789, 1e-05
    %v798 = vadd.f32 %v790, 1e-05
    %v799 = vadd.f32 %v791, 1e-05
    %v800 = vrsqrt.pop %v796
    %v801 = vrsqrt.pop %v797
    %v802 = vrsqrt.pop %v798
    %v803 = vrsqrt.pop %v799
    %v804 = vmul.f32 %v792, %v800
    %v805 = vmul.f32 %v793, %v801
    %v806 = vmul.f32 %v794, %v802
    %v807 = vmul.f32 %v795, %v803
    %v808 = vmax.f32 %v804, 0.0
    %v809 = vmax.f32 %v805, 0.0
    %v810 = vmax.f32 %v806, 0.0
    %v811 = vmax.f32 %v807, 0.0
    %v812 = vpack.c.bf16 %v808, %v808
    %v813 = vpack.c.bf16 %v809, %v809
    %v814 = vpack.c.bf16 %v810, %v810
    %v815 = vpack.c.bf16 %v811, %v811
    %v816 = vld [vmem:[#allocation9] sm:$0xff]
    %v817 = vld [vmem:[#allocation9 + $0x8] sm:$0xff]
    %v818 = vld [vmem:[#allocation9 + $0x10] sm:$0xff]
    %v819 = vld [vmem:[#allocation9 + $0x18] sm:$0xff]
    %v820 = vld [vmem:[#allocation9 + $0x20] sm:$0xff]
    %v821 = vld [vmem:[#allocation9 + $0x28] sm:$0xff]
    %v822 = vld [vmem:[#allocation9 + $0x30] sm:$0xff]
    %v823 = vld [vmem:[#allocation9 + $0x38] sm:$0xff]
    %v824 = vld [vmem:[#allocation9 + $0x40] sm:$0xff]
    %v825 = vld [vmem:[#allocation9 + $0x48] sm:$0xff]
    %v826 = vld [vmem:[#allocation9 + $0x50] sm:$0xff]
    %v827 = vld [vmem:[#allocation9 + $0x58] sm:$0xff]
    %v828 = vld [vmem:[#allocation9 + $0x60] sm:$0xff]
    %v829 = vld [vmem:[#allocation9 + $0x68] sm:$0xff]
    %v830 = vld [vmem:[#allocation9 + $0x70] sm:$0xff]
    %v831 = vld [vmem:[#allocation9 + $0x78] sm:$0xff]
    %v832 = vld [vmem:[#allocation9 + $0x80] sm:$0xff]
    %v833 = vld [vmem:[#allocation9 + $0x88] sm:$0xff]
    %v834 = vld [vmem:[#allocation9 + $0x90] sm:$0xff]
    %v835 = vld [vmem:[#allocation9 + $0x98] sm:$0xff]
    %v836 = vld [vmem:[#allocation9 + $0xa0] sm:$0xff]
    %v837 = vld [vmem:[#allocation9 + $0xa8] sm:$0xff]
    %v838 = vld [vmem:[#allocation9 + $0xb0] sm:$0xff]
    %v839 = vld [vmem:[#allocation9 + $0xb8] sm:$0xff]
    %v840 = vld [vmem:[#allocation9 + $0xc0] sm:$0xff]
    %v841 = vld [vmem:[#allocation9 + $0xc8] sm:$0xff]
    %v842 = vld [vmem:[#allocation9 + $0xd0] sm:$0xff]
    %v843 = vld [vmem:[#allocation9 + $0xd8] sm:$0xff]
    %v844 = vld [vmem:[#allocation9 + $0xe0] sm:$0xff]
    %v845 = vld [vmem:[#allocation9 + $0xe8] sm:$0xff]
    %v846 = vld [vmem:[#allocation9 + $0xf0] sm:$0xff]
    %v847 = vld [vmem:[#allocation9 + $0xf8] sm:$0xff]
    %v848 = vld [vmem:[#allocation9 + $0x100] sm:$0xff]
    %v849 = vld [vmem:[#allocation9 + $0x108] sm:$0xff]
    %v850 = vld [vmem:[#allocation9 + $0x110] sm:$0xff]
    %v851 = vld [vmem:[#allocation9 + $0x118] sm:$0xff]
    %v852 = vld [vmem:[#allocation9 + $0x120] sm:$0xff]
    %v853 = vld [vmem:[#allocation9 + $0x128] sm:$0xff]
    %v854 = vld [vmem:[#allocation9 + $0x130] sm:$0xff]
    %v855 = vld [vmem:[#allocation9 + $0x138] sm:$0xff]
    %v856 = vld [vmem:[#allocation9 + $0x140] sm:$0xff]
    %v857 = vld [vmem:[#allocation9 + $0x148] sm:$0xff]
    %v858 = vld [vmem:[#allocation9 + $0x150] sm:$0xff]
    %v859 = vld [vmem:[#allocation9 + $0x158] sm:$0xff]
    %v860 = vld [vmem:[#allocation9 + $0x160] sm:$0xff]
    %v861 = vld [vmem:[#allocation9 + $0x168] sm:$0xff]
    %v862 = vld [vmem:[#allocation9 + $0x170] sm:$0xff]
    %v863 = vld [vmem:[#allocation9 + $0x178] sm:$0xff]
    %v864 = vld [vmem:[#allocation9 + $0x180] sm:$0xff]
    %v865 = vld [vmem:[#allocation9 + $0x188] sm:$0xff]
    %v866 = vld [vmem:[#allocation9 + $0x190] sm:$0xff]
    %v867 = vld [vmem:[#allocation9 + $0x198] sm:$0xff]
    %v868 = vld [vmem:[#allocation9 + $0x1a0] sm:$0xff]
    %v869 = vld [vmem:[#allocation9 + $0x1a8] sm:$0xff]
    %v870 = vld [vmem:[#allocation9 + $0x1b0] sm:$0xff]
    %v871 = vld [vmem:[#allocation9 + $0x1b8] sm:$0xff]
    %v872 = vld [vmem:[#allocation9 + $0x1c0] sm:$0xff]
    %v873 = vld [vmem:[#allocation9 + $0x1c8] sm:$0xff]
    %v874 = vld [vmem:[#allocation9 + $0x1d0] sm:$0xff]
    %v875 = vld [vmem:[#allocation9 + $0x1d8] sm:$0xff]
    %v876 = vld [vmem:[#allocation9 + $0x1e0] sm:$0xff]
    %v877 = vld [vmem:[#allocation9 + $0x1e8] sm:$0xff]
    %v878 = vld [vmem:[#allocation9 + $0x1f0] sm:$0xff]
    %v879 = vld [vmem:[#allocation9 + $0x1f8] sm:$0xff]
    %v880 = vld [vmem:[#allocation9 + $0x200] sm:$0xff]
    %v881 = vld [vmem:[#allocation9 + $0x208] sm:$0xff]
    %v882 = vld [vmem:[#allocation9 + $0x210] sm:$0xff]
    %v883 = vld [vmem:[#allocation9 + $0x218] sm:$0xff]
    %v884 = vld [vmem:[#allocation9 + $0x220] sm:$0xff]
    %v885 = vld [vmem:[#allocation9 + $0x228] sm:$0xff]
    %v886 = vld [vmem:[#allocation9 + $0x230] sm:$0xff]
    %v887 = vld [vmem:[#allocation9 + $0x238] sm:$0xff]
    %v888 = vld [vmem:[#allocation9 + $0x240] sm:$0xff]
    %v889 = vld [vmem:[#allocation9 + $0x248] sm:$0xff]
    %v890 = vld [vmem:[#allocation9 + $0x250] sm:$0xff]
    %v891 = vld [vmem:[#allocation9 + $0x258] sm:$0xff]
    %v892 = vld [vmem:[#allocation9 + $0x260] sm:$0xff]
    %v893 = vld [vmem:[#allocation9 + $0x268] sm:$0xff]
    %v894 = vld [vmem:[#allocation9 + $0x270] sm:$0xff]
    %v895 = vld [vmem:[#allocation9 + $0x278] sm:$0xff]
    %v896 = vld [vmem:[#allocation9 + $0x280] sm:$0xff]
    %v897 = vld [vmem:[#allocation9 + $0x288] sm:$0xff]
    %v898 = vld [vmem:[#allocation9 + $0x290] sm:$0xff]
    %v899 = vld [vmem:[#allocation9 + $0x298] sm:$0xff]
    %v900 = vld [vmem:[#allocation9 + $0x2a0] sm:$0xff]
    %v901 = vld [vmem:[#allocation9 + $0x2a8] sm:$0xff]
    %v902 = vld [vmem:[#allocation9 + $0x2b0] sm:$0xff]
    %v903 = vld [vmem:[#allocation9 + $0x2b8] sm:$0xff]
    %v904 = vld [vmem:[#allocation9 + $0x2c0] sm:$0xff]
    %v905 = vld [vmem:[#allocation9 + $0x2c8] sm:$0xff]
    %v906 = vld [vmem:[#allocation9 + $0x2d0] sm:$0xff]
    %v907 = vld [vmem:[#allocation9 + $0x2d8] sm:$0xff]
    %v908 = vld [vmem:[#allocation9 + $0x2e0] sm:$0xff]
    %v909 = vld [vmem:[#allocation9 + $0x2e8] sm:$0xff]
    %v910 = vld [vmem:[#allocation9 + $0x2f0] sm:$0xff]
    %v911 = vld [vmem:[#allocation9 + $0x2f8] sm:$0xff]
    %v912 = vld [vmem:[#allocation9 + $0x300] sm:$0xff]
    %v913 = vld [vmem:[#allocation9 + $0x308] sm:$0xff]
    %v914 = vld [vmem:[#allocation9 + $0x310] sm:$0xff]
    %v915 = vld [vmem:[#allocation9 + $0x318] sm:$0xff]
    %v916 = vld [vmem:[#allocation9 + $0x320] sm:$0xff]
    %v917 = vld [vmem:[#allocation9 + $0x328] sm:$0xff]
    %v918 = vld [vmem:[#allocation9 + $0x330] sm:$0xff]
    %v919 = vld [vmem:[#allocation9 + $0x338] sm:$0xff]
    %v920 = vld [vmem:[#allocation9 + $0x340] sm:$0xff]
    %v921 = vld [vmem:[#allocation9 + $0x348] sm:$0xff]
    %v922 = vld [vmem:[#allocation9 + $0x350] sm:$0xff]
    %v923 = vld [vmem:[#allocation9 + $0x358] sm:$0xff]
    %v924 = vld [vmem:[#allocation9 + $0x360] sm:$0xff]
    %v925 = vld [vmem:[#allocation9 + $0x368] sm:$0xff]
    %v926 = vld [vmem:[#allocation9 + $0x370] sm:$0xff]
    %v927 = vld [vmem:[#allocation9 + $0x378] sm:$0xff]
    %v928 = vld [vmem:[#allocation9 + $0x380] sm:$0xff]
    %v929 = vld [vmem:[#allocation9 + $0x388] sm:$0xff]
    %v930 = vld [vmem:[#allocation9 + $0x390] sm:$0xff]
    %v931 = vld [vmem:[#allocation9 + $0x398] sm:$0xff]
    %v932 = vld [vmem:[#allocation9 + $0x3a0] sm:$0xff]
    %v933 = vld [vmem:[#allocation9 + $0x3a8] sm:$0xff]
    %v934 = vld [vmem:[#allocation9 + $0x3b0] sm:$0xff]
    %v935 = vld [vmem:[#allocation9 + $0x3b8] sm:$0xff]
    %v936 = vld [vmem:[#allocation9 + $0x3c0] sm:$0xff]
    %v937 = vld [vmem:[#allocation9 + $0x3c8] sm:$0xff]
    %v938 = vld [vmem:[#allocation9 + $0x3d0] sm:$0xff]
    %v939 = vld [vmem:[#allocation9 + $0x3d8] sm:$0xff]
    %v940 = vld [vmem:[#allocation9 + $0x3e0] sm:$0xff]
    %v941 = vld [vmem:[#allocation9 + $0x3e8] sm:$0xff]
    %v942 = vld [vmem:[#allocation9 + $0x3f0] sm:$0xff]
    %v943 = vld [vmem:[#allocation9 + $0x3f8] sm:$0xff]
    %v944 = vld [vmem:[#allocation11] sm:$0xf]
    %v946 = vlaneseq
    %v947 = vshrl.u32 %v946, 7
    %v948 = vsub.s32 0, %v947
    %v949 = vrot.slane %v944, %v948
    %v950 = vlaneseq
    %v951 = vshrl.u32 %v950, 7
    %v952 = vsub.s32 1, %v951
    %v953 = vrot.slane %v944, %v952
    %v954 = vlaneseq
    %v955 = vshrl.u32 %v954, 7
    %v956 = vsub.s32 2, %v955
    %v957 = vrot.slane %v944, %v956
    %v958 = vlaneseq
    %v959 = vshrl.u32 %v958, 7
    %v960 = vsub.s32 3, %v959
    %v961 = vrot.slane %v944, %v960
    %v1094 = vunpack.c.l.b16 %v816
    %v1095 = vunpack.c.h.b16 %v816
    %v1096 = vunpack.c.l.b16 %v817
    %v1097 = vunpack.c.h.b16 %v817
    %v1098 = vunpack.c.l.b16 %v818
    %v1099 = vunpack.c.h.b16 %v818
    %v1100 = vunpack.c.l.b16 %v819
    %v1101 = vunpack.c.h.b16 %v819
    %v1102 = vunpack.c.l.b16 %v820
    %v1103 = vunpack.c.h.b16 %v820
    %v1104 = vunpack.c.l.b16 %v821
    %v1105 = vunpack.c.h.b16 %v821
    %v1106 = vunpack.c.l.b16 %v822
    %v1107 = vunpack.c.h.b16 %v822
    %v1108 = vunpack.c.l.b16 %v823
    %v1109 = vunpack.c.h.b16 %v823
    %v1110 = vunpack.c.l.b16 %v824
    %v1111 = vunpack.c.h.b16 %v824
    %v1112 = vunpack.c.l.b16 %v825
    %v1113 = vunpack.c.h.b16 %v825
    %v1114 = vunpack.c.l.b16 %v826
    %v1115 = vunpack.c.h.b16 %v826
    %v1116 = vunpack.c.l.b16 %v827
    %v1117 = vunpack.c.h.b16 %v827
    %v1118 = vunpack.c.l.b16 %v828
    %v1119 = vunpack.c.h.b16 %v828
    %v1120 = vunpack.c.l.b16 %v829
    %v1121 = vunpack.c.h.b16 %v829
    %v1122 = vunpack.c.l.b16 %v830
    %v1123 = vunpack.c.h.b16 %v830
    %v1124 = vunpack.c.l.b16 %v831
    %v1125 = vunpack.c.h.b16 %v831
    %v1126 = vunpack.c.l.b16 %v832
    %v1127 = vunpack.c.h.b16 %v832
    %v1128 = vunpack.c.l.b16 %v833
    %v1129 = vunpack.c.h.b16 %v833
    %v1130 = vunpack.c.l.b16 %v834
    %v1131 = vunpack.c.h.b16 %v834
    %v1132 = vunpack.c.l.b16 %v835
    %v1133 = vunpack.c.h.b16 %v835
    %v1134 = vunpack.c.l.b16 %v836
    %v1135 = vunpack.c.h.b16 %v836
    %v1136 = vunpack.c.l.b16 %v837
    %v1137 = vunpack.c.h.b16 %v837
    %v1138 = vunpack.c.l.b16 %v838
    %v1139 = vunpack.c.h.b16 %v838
    %v1140 = vunpack.c.l.b16 %v839
    %v1141 = vunpack.c.h.b16 %v839
    %v1142 = vunpack.c.l.b16 %v840
    %v1143 = vunpack.c.h.b16 %v840
    %v1144 = vunpack.c.l.b16 %v841
    %v1145 = vunpack.c.h.b16 %v841
    %v1146 = vunpack.c.l.b16 %v842
    %v1147 = vunpack.c.h.b16 %v842
    %v1148 = vunpack.c.l.b16 %v843
    %v1149 = vunpack.c.h.b16 %v843
    %v1150 = vunpack.c.l.b16 %v844
    %v1151 = vunpack.c.h.b16 %v844
    %v1152 = vunpack.c.l.b16 %v845
    %v1153 = vunpack.c.h.b16 %v845
    %v1154 = vunpack.c.l.b16 %v846
    %v1155 = vunpack.c.h.b16 %v846
    %v1156 = vunpack.c.l.b16 %v847
    %v1157 = vunpack.c.h.b16 %v847
    %v1158 = vunpack.c.l.b16 %v848
    %v1159 = vunpack.c.h.b16 %v848
    %v1160 = vunpack.c.l.b16 %v849
    %v1161 = vunpack.c.h.b16 %v849
    %v1162 = vunpack.c.l.b16 %v850
    %v1163 = vunpack.c.h.b16 %v850
    %v1164 = vunpack.c.l.b16 %v851
    %v1165 = vunpack.c.h.b16 %v851
    %v1166 = vunpack.c.l.b16 %v852
    %v1167 = vunpack.c.h.b16 %v852
    %v1168 = vunpack.c.l.b16 %v853
    %v1169 = vunpack.c.h.b16 %v853
    %v1170 = vunpack.c.l.b16 %v854
    %v1171 = vunpack.c.h.b16 %v854
    %v1172 = vunpack.c.l.b16 %v855
    %v1173 = vunpack.c.h.b16 %v855
    %v1174 = vunpack.c.l.b16 %v856
    %v1175 = vunpack.c.h.b16 %v856
    %v1176 = vunpack.c.l.b16 %v857
    %v1177 = vunpack.c.h.b16 %v857
    %v1178 = vunpack.c.l.b16 %v858
    %v1179 = vunpack.c.h.b16 %v858
    %v1180 = vunpack.c.l.b16 %v859
    %v1181 = vunpack.c.h.b16 %v859
    %v1182 = vunpack.c.l.b16 %v860
    %v1183 = vunpack.c.h.b16 %v860
    %v1184 = vunpack.c.l.b16 %v861
    %v1185 = vunpack.c.h.b16 %v861
    %v1186 = vunpack.c.l.b16 %v862
    %v1187 = vunpack.c.h.b16 %v862
    %v1188 = vunpack.c.l.b16 %v863
    %v1189 = vunpack.c.h.b16 %v863
    %v1190 = vunpack.c.l.b16 %v864
    %v1191 = vunpack.c.h.b16 %v864
    %v1192 = vunpack.c.l.b16 %v865
    %v1193 = vunpack.c.h.b16 %v865
    %v1194 = vunpack.c.l.b16 %v866
    %v1195 = vunpack.c.h.b16 %v866
    %v1196 = vunpack.c.l.b16 %v867
    %v1197 = vunpack.c.h.b16 %v867
    %v1198 = vunpack.c.l.b16 %v868
    %v1199 = vunpack.c.h.b16 %v868
    %v1200 = vunpack.c.l.b16 %v869
    %v1201 = vunpack.c.h.b16 %v869
    %v1202 = vunpack.c.l.b16 %v870
    %v1203 = vunpack.c.h.b16 %v870
    %v1204 = vunpack.c.l.b16 %v871
    %v1205 = vunpack.c.h.b16 %v871
    %v1206 = vunpack.c.l.b16 %v872
    %v1207 = vunpack.c.h.b16 %v872
    %v1208 = vunpack.c.l.b16 %v873
    %v1209 = vunpack.c.h.b16 %v873
    %v1210 = vunpack.c.l.b16 %v874
    %v1211 = vunpack.c.h.b16 %v874
    %v1212 = vunpack.c.l.b16 %v875
    %v1213 = vunpack.c.h.b16 %v875
    %v1214 = vunpack.c.l.b16 %v876
    %v1215 = vunpack.c.h.b16 %v876
    %v1216 = vunpack.c.l.b16 %v877
    %v1217 = vunpack.c.h.b16 %v877
    %v1218 = vunpack.c.l.b16 %v878
    %v1219 = vunpack.c.h.b16 %v878
    %v1220 = vunpack.c.l.b16 %v879
    %v1221 = vunpack.c.h.b16 %v879
    %v1222 = vunpack.c.l.b16 %v880
    %v1223 = vunpack.c.h.b16 %v880
    %v1224 = vunpack.c.l.b16 %v881
    %v1225 = vunpack.c.h.b16 %v881
    %v1226 = vunpack.c.l.b16 %v882
    %v1227 = vunpack.c.h.b16 %v882
    %v1228 = vunpack.c.l.b16 %v883
    %v1229 = vunpack.c.h.b16 %v883
    %v1230 = vunpack.c.l.b16 %v884
    %v1231 = vunpack.c.h.b16 %v884
    %v1232 = vunpack.c.l.b16 %v885
    %v1233 = vunpack.c.h.b16 %v885
    %v1234 = vunpack.c.l.b16 %v886
    %v1235 = vunpack.c.h.b16 %v886
    %v1236 = vunpack.c.l.b16 %v887
    %v1237 = vunpack.c.h.b16 %v887
    %v1238 = vunpack.c.l.b16 %v888
    %v1239 = vunpack.c.h.b16 %v888
    %v1240 = vunpack.c.l.b16 %v889
    %v1241 = vunpack.c.h.b16 %v889
    %v1242 = vunpack.c.l.b16 %v890
    %v1243 = vunpack.c.h.b16 %v890
    %v1244 = vunpack.c.l.b16 %v891
    %v1245 = vunpack.c.h.b16 %v891
    %v1246 = vunpack.c.l.b16 %v892
    %v1247 = vunpack.c.h.b16 %v892
    %v1248 = vunpack.c.l.b16 %v893
    %v1249 = vunpack.c.h.b16 %v893
    %v1250 = vunpack.c.l.b16 %v894
    %v1251 = vunpack.c.h.b16 %v894
    %v1252 = vunpack.c.l.b16 %v895
    %v1253 = vunpack.c.h.b16 %v895
    %v1254 = vunpack.c.l.b16 %v896
    %v1255 = vunpack.c.h.b16 %v896
    %v1256 = vunpack.c.l.b16 %v897
    %v1257 = vunpack.c.h.b16 %v897
    %v1258 = vunpack.c.l.b16 %v898
    %v1259 = vunpack.c.h.b16 %v898
    %v1260 = vunpack.c.l.b16 %v899
    %v1261 = vunpack.c.h.b16 %v899
    %v1262 = vunpack.c.l.b16 %v900
    %v1263 = vunpack.c.h.b16 %v900
    %v1264 = vunpack.c.l.b16 %v901
    %v1265 = vunpack.c.h.b16 %v901
    %v1266 = vunpack.c.l.b16 %v902
    %v1267 = vunpack.c.h.b16 %v902
    %v1268 = vunpack.c.l.b16 %v903
    %v1269 = vunpack.c.h.b16 %v903
    %v1270 = vunpack.c.l.b16 %v904
    %v1271 = vunpack.c.h.b16 %v904
    %v1272 = vunpack.c.l.b16 %v905
    %v1273 = vunpack.c.h.b16 %v905
    %v1274 = vunpack.c.l.b16 %v906
    %v1275 = vunpack.c.h.b16 %v906
    %v1276 = vunpack.c.l.b16 %v907
    %v1277 = vunpack.c.h.b16 %v907
    %v1278 = vunpack.c.l.b16 %v908
    %v1279 = vunpack.c.h.b16 %v908
    %v1280 = vunpack.c.l.b16 %v909
    %v1281 = vunpack.c.h.b16 %v909
    %v1282 = vunpack.c.l.b16 %v910
    %v1283 = vunpack.c.h.b16 %v910
    %v1284 = vunpack.c.l.b16 %v911
    %v1285 = vunpack.c.h.b16 %v911
    %v1286 = vunpack.c.l.b16 %v912
    %v1287 = vunpack.c.h.b16 %v912
    %v1288 = vunpack.c.l.b16 %v913
    %v1289 = vunpack.c.h.b16 %v913
    %v1290 = vunpack.c.l.b16 %v914
    %v1291 = vunpack.c.h.b16 %v914
    %v1292 = vunpack.c.l.b16 %v915
    %v1293 = vunpack.c.h.b16 %v915
    %v1294 = vunpack.c.l.b16 %v916
    %v1295 = vunpack.c.h.b16 %v916
    %v1296 = vunpack.c.l.b16 %v917
    %v1297 = vunpack.c.h.b16 %v917
    %v1298 = vunpack.c.l.b16 %v918
    %v1299 = vunpack.c.h.b16 %v918
    %v1300 = vunpack.c.l.b16 %v919
    %v1301 = vunpack.c.h.b16 %v919
    %v1302 = vunpack.c.l.b16 %v920
    %v1303 = vunpack.c.h.b16 %v920
    %v1304 = vunpack.c.l.b16 %v921
    %v1305 = vunpack.c.h.b16 %v921
    %v1306 = vunpack.c.l.b16 %v922
    %v1307 = vunpack.c.h.b16 %v922
    %v1308 = vunpack.c.l.b16 %v923
    %v1309 = vunpack.c.h.b16 %v923
    %v1310 = vunpack.c.l.b16 %v924
    %v1311 = vunpack.c.h.b16 %v924
    %v1312 = vunpack.c.l.b16 %v925
    %v1313 = vunpack.c.h.b16 %v925
    %v1314 = vunpack.c.l.b16 %v926
    %v1315 = vunpack.c.h.b16 %v926
    %v1316 = vunpack.c.l.b16 %v927
    %v1317 = vunpack.c.h.b16 %v927
    %v1318 = vunpack.c.l.b16 %v928
    %v1319 = vunpack.c.h.b16 %v928
    %v1320 = vunpack.c.l.b16 %v929
    %v1321 = vunpack.c.h.b16 %v929
    %v1322 = vunpack.c.l.b16 %v930
    %v1323 = vunpack.c.h.b16 %v930
    %v1324 = vunpack.c.l.b16 %v931
    %v1325 = vunpack.c.h.b16 %v931
    %v1326 = vunpack.c.l.b16 %v932
    %v1327 = vunpack.c.h.b16 %v932
    %v1328 = vunpack.c.l.b16 %v933
    %v1329 = vunpack.c.h.b16 %v933
    %v1330 = vunpack.c.l.b16 %v934
    %v1331 = vunpack.c.h.b16 %v934
    %v1332 = vunpack.c.l.b16 %v935
    %v1333 = vunpack.c.h.b16 %v935
    %v1334 = vunpack.c.l.b16 %v936
    %v1335 = vunpack.c.h.b16 %v936
    %v1336 = vunpack.c.l.b16 %v937
    %v1337 = vunpack.c.h.b16 %v937
    %v1338 = vunpack.c.l.b16 %v938
    %v1339 = vunpack.c.h.b16 %v938
    %v1340 = vunpack.c.l.b16 %v939
    %v1341 = vunpack.c.h.b16 %v939
    %v1342 = vunpack.c.l.b16 %v940
    %v1343 = vunpack.c.h.b16 %v940
    %v1344 = vunpack.c.l.b16 %v941
    %v1345 = vunpack.c.h.b16 %v941
    %v1346 = vunpack.c.l.b16 %v942
    %v1347 = vunpack.c.h.b16 %v942
    %v1348 = vunpack.c.l.b16 %v943
    %v1349 = vunpack.c.h.b16 %v943
    %v1350 = vpack.c.b16 %v1098, %v1094
    %v1351 = vpack.c.b16 %v1099, %v1095
    %v1352 = vpack.c.b16 %v1100, %v1096
    %v1353 = vpack.c.b16 %v1101, %v1097
    %v1354 = vpack.c.b16 %v1106, %v1102
    %v1355 = vpack.c.b16 %v1107, %v1103
    %v1356 = vpack.c.b16 %v1108, %v1104
    %v1357 = vpack.c.b16 %v1109, %v1105
    %v1358 = vpack.c.b16 %v1114, %v1110
    %v1359 = vpack.c.b16 %v1115, %v1111
    %v1360 = vpack.c.b16 %v1116, %v1112
    %v1361 = vpack.c.b16 %v1117, %v1113
    %v1362 = vpack.c.b16 %v1122, %v1118
    %v1363 = vpack.c.b16 %v1123, %v1119
    %v1364 = vpack.c.b16 %v1124, %v1120
    %v1365 = vpack.c.b16 %v1125, %v1121
    %v1366 = vpack.c.b16 %v1130, %v1126
    %v1367 = vpack.c.b16 %v1131, %v1127
    %v1368 = vpack.c.b16 %v1132, %v1128
    %v1369 = vpack.c.b16 %v1133, %v1129
    %v1370 = vpack.c.b16 %v1138, %v1134
    %v1371 = vpack.c.b16 %v1139, %v1135
    %v1372 = vpack.c.b16 %v1140, %v1136
    %v1373 = vpack.c.b16 %v1141, %v1137
    %v1374 = vpack.c.b16 %v1146, %v1142
    %v1375 = vpack.c.b16 %v1147, %v1143
    %v1376 = vpack.c.b16 %v1148, %v1144
    %v1377 = vpack.c.b16 %v1149, %v1145
    %v1378 = vpack.c.b16 %v1154, %v1150
    %v1379 = vpack.c.b16 %v1155, %v1151
    %v1380 = vpack.c.b16 %v1156, %v1152
    %v1381 = vpack.c.b16 %v1157, %v1153
    %v1382 = vpack.c.b16 %v1162, %v1158
    %v1383 = vpack.c.b16 %v1163, %v1159
    %v1384 = vpack.c.b16 %v1164, %v1160
    %v1385 = vpack.c.b16 %v1165, %v1161
    %v1386 = vpack.c.b16 %v1170, %v1166
    %v1387 = vpack.c.b16 %v1171, %v1167
    %v1388 = vpack.c.b16 %v1172, %v1168
    %v1389 = vpack.c.b16 %v1173, %v1169
    %v1390 = vpack.c.b16 %v1178, %v1174
    %v1391 = vpack.c.b16 %v1179, %v1175
    %v1392 = vpack.c.b16 %v1180, %v1176
    %v1393 = vpack.c.b16 %v1181, %v1177
    %v1394 = vpack.c.b16 %v1186, %v1182
    %v1395 = vpack.c.b16 %v1187, %v1183
    %v1396 = vpack.c.b16 %v1188, %v1184
    %v1397 = vpack.c.b16 %v1189, %v1185
    %v1398 = vpack.c.b16 %v1194, %v1190
    %v1399 = vpack.c.b16 %v1195, %v1191
    %v1400 = vpack.c.b16 %v1196, %v1192
    %v1401 = vpack.c.b16 %v1197, %v1193
    %v1402 = vpack.c.b16 %v1202, %v1198
    %v1403 = vpack.c.b16 %v1203, %v1199
    %v1404 = vpack.c.b16 %v1204, %v1200
    %v1405 = vpack.c.b16 %v1205, %v1201
    %v1406 = vpack.c.b16 %v1210, %v1206
    %v1407 = vpack.c.b16 %v1211, %v1207
    %v1408 = vpack.c.b16 %v1212, %v1208
    %v1409 = vpack.c.b16 %v1213, %v1209
    %v1410 = vpack.c.b16 %v1218, %v1214
    %v1411 = vpack.c.b16 %v1219, %v1215
    %v1412 = vpack.c.b16 %v1220, %v1216
    %v1413 = vpack.c.b16 %v1221, %v1217
    %v1414 = vpack.c.b16 %v1226, %v1222
    %v1415 = vpack.c.b16 %v1227, %v1223
    %v1416 = vpack.c.b16 %v1228, %v1224
    %v1417 = vpack.c.b16 %v1229, %v1225
    %v1418 = vpack.c.b16 %v1234, %v1230
    %v1419 = vpack.c.b16 %v1235, %v1231
    %v1420 = vpack.c.b16 %v1236, %v1232
    %v1421 = vpack.c.b16 %v1237, %v1233
    %v1422 = vpack.c.b16 %v1242, %v1238
    %v1423 = vpack.c.b16 %v1243, %v1239
    %v1424 = vpack.c.b16 %v1244, %v1240
    %v1425 = vpack.c.b16 %v1245, %v1241
    %v1426 = vpack.c.b16 %v1250, %v1246
    %v1427 = vpack.c.b16 %v1251, %v1247
    %v1428 = vpack.c.b16 %v1252, %v1248
    %v1429 = vpack.c.b16 %v1253, %v1249
    %v1430 = vpack.c.b16 %v1258, %v1254
    %v1431 = vpack.c.b16 %v1259, %v1255
    %v1432 = vpack.c.b16 %v1260, %v1256
    %v1433 = vpack.c.b16 %v1261, %v1257
    %v1434 = vpack.c.b16 %v1266, %v1262
    %v1435 = vpack.c.b16 %v1267, %v1263
    %v1436 = vpack.c.b16 %v1268, %v1264
    %v1437 = vpack.c.b16 %v1269, %v1265
    %v1438 = vpack.c.b16 %v1274, %v1270
    %v1439 = vpack.c.b16 %v1275, %v1271
    %v1440 = vpack.c.b16 %v1276, %v1272
    %v1441 = vpack.c.b16 %v1277, %v1273
    %v1442 = vpack.c.b16 %v1282, %v1278
    %v1443 = vpack.c.b16 %v1283, %v1279
    %v1444 = vpack.c.b16 %v1284, %v1280
    %v1445 = vpack.c.b16 %v1285, %v1281
    %v1446 = vpack.c.b16 %v1290, %v1286
    %v1447 = vpack.c.b16 %v1291, %v1287
    %v1448 = vpack.c.b16 %v1292, %v1288
    %v1449 = vpack.c.b16 %v1293, %v1289
    %v1450 = vpack.c.b16 %v1298, %v1294
    %v1451 = vpack.c.b16 %v1299, %v1295
    %v1452 = vpack.c.b16 %v1300, %v1296
    %v1453 = vpack.c.b16 %v1301, %v1297
    %v1454 = vpack.c.b16 %v1306, %v1302
    %v1455 = vpack.c.b16 %v1307, %v1303
    %v1456 = vpack.c.b16 %v1308, %v1304
    %v1457 = vpack.c.b16 %v1309, %v1305
    %v1458 = vpack.c.b16 %v1314, %v1310
    %v1459 = vpack.c.b16 %v1315, %v1311
    %v1460 = vpack.c.b16 %v1316, %v1312
    %v1461 = vpack.c.b16 %v1317, %v1313
    %v1462 = vpack.c.b16 %v1322, %v1318
    %v1463 = vpack.c.b16 %v1323, %v1319
    %v1464 = vpack.c.b16 %v1324, %v1320
    %v1465 = vpack.c.b16 %v1325, %v1321
    %v1466 = vpack.c.b16 %v1330, %v1326
    %v1467 = vpack.c.b16 %v1331, %v1327
    %v1468 = vpack.c.b16 %v1332, %v1328
    %v1469 = vpack.c.b16 %v1333, %v1329
    %v1470 = vpack.c.b16 %v1338, %v1334
    %v1471 = vpack.c.b16 %v1339, %v1335
    %v1472 = vpack.c.b16 %v1340, %v1336
    %v1473 = vpack.c.b16 %v1341, %v1337
    %v1474 = vpack.c.b16 %v1346, %v1342
    %v1475 = vpack.c.b16 %v1347, %v1343
    %v1476 = vpack.c.b16 %v1348, %v1344
    %v1477 = vpack.c.b16 %v1349, %v1345
    %1606 = vmatprep.subr.bf16.mxu0 %v1379
    %1607 = vmatpush1.bf16.msra.mxu0 %v1378
    %1608 = vmatprep.subr.bf16.mxu0 %v1375
    %1609 = vmatpush1.bf16.msra.mxu0 %v1374
    %1610 = vmatprep.subr.bf16.mxu0 %v1371
    %1611 = vmatpush1.bf16.msra.mxu0 %v1370
    %1612 = vmatprep.subr.bf16.mxu0 %v1367
    %1613 = vmatpush1.bf16.msra.mxu0 %v1366
    %1614 = vmatprep.subr.bf16.mxu0 %v1363
    %1615 = vmatpush1.bf16.msra.mxu0 %v1362
    %1616 = vmatprep.subr.bf16.mxu0 %v1359
    %1617 = vmatpush1.bf16.msra.mxu0 %v1358
    %1618 = vmatprep.subr.bf16.mxu0 %v1355
    %1619 = vmatpush1.bf16.msra.mxu0 %v1354
    %1620 = vmatprep.subr.bf16.mxu0 %v1351
    %1621 = vmatpush1.bf16.msra.mxu0 %v1350
    %1622 = vmatprep.subr.bf16.mxu0 %v1411
    %1623 = vmatpush2.bf16.msra.mxu0 %v1410
    %1624 = vmatprep.subr.bf16.mxu0 %v1407
    %1625 = vmatpush2.bf16.msra.mxu0 %v1406
    %1626 = vmatprep.subr.bf16.mxu0 %v1403
    %1627 = vmatpush2.bf16.msra.mxu0 %v1402
    %1628 = vmatprep.subr.bf16.mxu0 %v1399
    %1629 = vmatpush2.bf16.msra.mxu0 %v1398
    %1630 = vmatprep.subr.bf16.mxu0 %v1395
    %1631 = vmatpush2.bf16.msra.mxu0 %v1394
    %1632 = vmatprep.subr.bf16.mxu0 %v1391
    %1633 = vmatpush2.bf16.msra.mxu0 %v1390
    %1634 = vmatprep.subr.bf16.mxu0 %v1387
    %1635 = vmatpush2.bf16.msra.mxu0 %v1386
    %1636 = vmatprep.subr.bf16.mxu0 %v1383
    %1637 = vmatpush2.bf16.msra.mxu0 %v1382
    %1638 = vmatprep.mubr.bf16.mxu0 %v813
    %1639 = vmatmul.mubr.bf16.gmra.mxu0 %v812
    %v1640 = vpop.f32.mrf.mxu0
    %v1641 = vadd.f32 %v949, %v1640
    %v1642 = vpop.f32.mrf.mxu0
    %v1643 = vadd.f32 %v953, %v1642
    %v1644 = vpop.f32.mrf.mxu0
    %v1645 = vpop.f32.mrf.mxu0
    %1646 = vdwg.mxu0
    %1647 = vmatprep.subr.bf16.mxu0 %v1443
    %1648 = vmatpush1.bf16.msra.mxu0 %v1442
    %1649 = vmatprep.subr.bf16.mxu0 %v1439
    %1650 = vmatpush1.bf16.msra.mxu0 %v1438
    %1651 = vmatprep.subr.bf16.mxu0 %v1435
    %1652 = vmatpush1.bf16.msra.mxu0 %v1434
    %1653 = vmatprep.subr.bf16.mxu0 %v1431
    %1654 = vmatpush1.bf16.msra.mxu0 %v1430
    %1655 = vmatprep.subr.bf16.mxu0 %v1427
    %1656 = vmatpush1.bf16.msra.mxu0 %v1426
    %1657 = vmatprep.subr.bf16.mxu0 %v1423
    %1658 = vmatpush1.bf16.msra.mxu0 %v1422
    %1659 = vmatprep.subr.bf16.mxu0 %v1419
    %1660 = vmatpush1.bf16.msra.mxu0 %v1418
    %1661 = vmatprep.subr.bf16.mxu0 %v1415
    %1662 = vmatpush1.bf16.msra.mxu0 %v1414
    %1663 = vmatprep.subr.bf16.mxu0 %v1475
    %1664 = vmatpush2.bf16.msra.mxu0 %v1474
    %1665 = vmatprep.subr.bf16.mxu0 %v1471
    %1666 = vmatpush2.bf16.msra.mxu0 %v1470
    %1667 = vmatprep.subr.bf16.mxu0 %v1467
    %1668 = vmatpush2.bf16.msra.mxu0 %v1466
    %1669 = vmatprep.subr.bf16.mxu0 %v1463
    %1670 = vmatpush2.bf16.msra.mxu0 %v1462
    %1671 = vmatprep.subr.bf16.mxu0 %v1459
    %1672 = vmatpush2.bf16.msra.mxu0 %v1458
    %1673 = vmatprep.subr.bf16.mxu0 %v1455
    %1674 = vmatpush2.bf16.msra.mxu0 %v1454
    %1675 = vmatprep.subr.bf16.mxu0 %v1451
    %1676 = vmatpush2.bf16.msra.mxu0 %v1450
    %1677 = vmatprep.subr.bf16.mxu0 %v1447
    %1678 = vmatpush2.bf16.msra.mxu0 %v1446
    %1679 = vmatprep.mubr.bf16.mxu0 %v815
    %1680 = vmatmul.mubr.bf16.gmra.mxu0 %v814
    %v1681 = vpop.f32.mrf.mxu0
    %v1682 = vadd.f32 %v1641, %v1681
    %v1683 = vpop.f32.mrf.mxu0
    %v1684 = vadd.f32 %v1643, %v1683
    %v1685 = vpop.f32.mrf.mxu0
    %v1686 = vpop.f32.mrf.mxu0
    %1687 = vdwg.mxu0
    %1688 = vmatprep.subr.bf16.mxu0 %v1381
    %1689 = vmatpush1.bf16.msra.mxu0 %v1380
    %1690 = vmatprep.subr.bf16.mxu0 %v1377
    %1691 = vmatpush1.bf16.msra.mxu0 %v1376
    %1692 = vmatprep.subr.bf16.mxu0 %v1373
    %1693 = vmatpush1.bf16.msra.mxu0 %v1372
    %1694 = vmatprep.subr.bf16.mxu0 %v1369
    %1695 = vmatpush1.bf16.msra.mxu0 %v1368
    %1696 = vmatprep.subr.bf16.mxu0 %v1365
    %1697 = vmatpush1.bf16.msra.mxu0 %v1364
    %1698 = vmatprep.subr.bf16.mxu0 %v1361
    %1699 = vmatpush1.bf16.msra.mxu0 %v1360
    %1700 = vmatprep.subr.bf16.mxu0 %v1357
    %1701 = vmatpush1.bf16.msra.mxu0 %v1356
    %1702 = vmatprep.subr.bf16.mxu0 %v1353
    %1703 = vmatpush1.bf16.msra.mxu0 %v1352
    %1704 = vmatprep.subr.bf16.mxu0 %v1413
    %1705 = vmatpush2.bf16.msra.mxu0 %v1412
    %1706 = vmatprep.subr.bf16.mxu0 %v1409
    %1707 = vmatpush2.bf16.msra.mxu0 %v1408
    %1708 = vmatprep.subr.bf16.mxu0 %v1405
    %1709 = vmatpush2.bf16.msra.mxu0 %v1404
    %1710 = vmatprep.subr.bf16.mxu0 %v1401
    %1711 = vmatpush2.bf16.msra.mxu0 %v1400
    %1712 = vmatprep.subr.bf16.mxu0 %v1397
    %1713 = vmatpush2.bf16.msra.mxu0 %v1396
    %1714 = vmatprep.subr.bf16.mxu0 %v1393
    %1715 = vmatpush2.bf16.msra.mxu0 %v1392
    %1716 = vmatprep.subr.bf16.mxu0 %v1389
    %1717 = vmatpush2.bf16.msra.mxu0 %v1388
    %1718 = vmatprep.subr.bf16.mxu0 %v1385
    %1719 = vmatpush2.bf16.msra.mxu0 %v1384
    %1720 = vmatprep.mubr.bf16.mxu0 %v813
    %1721 = vmatmul.mubr.bf16.gmra.mxu0 %v812
    %v1722 = vpop.f32.mrf.mxu0
    %v1723 = vadd.f32 %v957, %v1722
    %v1724 = vpop.f32.mrf.mxu0
    %v1725 = vadd.f32 %v961, %v1724
    %v1726 = vpop.f32.mrf.mxu0
    %v1727 = vpop.f32.mrf.mxu0
    %1728 = vdwg.mxu0
    %1729 = vmatprep.subr.bf16.mxu0 %v1445
    %1730 = vmatpush1.bf16.msra.mxu0 %v1444
    %1731 = vmatprep.subr.bf16.mxu0 %v1441
    %1732 = vmatpush1.bf16.msra.mxu0 %v1440
    %1733 = vmatprep.subr.bf16.mxu0 %v1437
    %1734 = vmatpush1.bf16.msra.mxu0 %v1436
    %1735 = vmatprep.subr.bf16.mxu0 %v1433
    %1736 = vmatpush1.bf16.msra.mxu0 %v1432
    %1737 = vmatprep.subr.bf16.mxu0 %v1429
    %1738 = vmatpush1.bf16.msra.mxu0 %v1428
    %1739 = vmatprep.subr.bf16.mxu0 %v1425
    %1740 = vmatpush1.bf16.msra.mxu0 %v1424
    %1741 = vmatprep.subr.bf16.mxu0 %v1421
    %1742 = vmatpush1.bf16.msra.mxu0 %v1420
    %1743 = vmatprep.subr.bf16.mxu0 %v1417
    %1744 = vmatpush1.bf16.msra.mxu0 %v1416
    %1745 = vmatprep.subr.bf16.mxu0 %v1477
    %1746 = vmatpush2.bf16.msra.mxu0 %v1476
    %1747 = vmatprep.subr.bf16.mxu0 %v1473
    %1748 = vmatpush2.bf16.msra.mxu0 %v1472
    %1749 = vmatprep.subr.bf16.mxu0 %v1469
    %1750 = vmatpush2.bf16.msra.mxu0 %v1468
    %1751 = vmatprep.subr.bf16.mxu0 %v1465
    %1752 = vmatpush2.bf16.msra.mxu0 %v1464
    %1753 = vmatprep.subr.bf16.mxu0 %v1461
    %1754 = vmatpush2.bf16.msra.mxu0 %v1460
    %1755 = vmatprep.subr.bf16.mxu0 %v1457
    %1756 = vmatpush2.bf16.msra.mxu0 %v1456
    %1757 = vmatprep.subr.bf16.mxu0 %v1453
    %1758 = vmatpush2.bf16.msra.mxu0 %v1452
    %1759 = vmatprep.subr.bf16.mxu0 %v1449
    %1760 = vmatpush2.bf16.msra.mxu0 %v1448
    %1761 = vmatprep.mubr.bf16.mxu0 %v815
    %1762 = vmatmul.mubr.bf16.gmra.mxu0 %v814
    %v1763 = vpop.f32.mrf.mxu0
    %v1764 = vadd.f32 %v1723, %v1763
    %v1765 = vpop.f32.mrf.mxu0
    %v1766 = vadd.f32 %v1725, %v1765
    %v1767 = vpop.f32.mrf.mxu0
    %v1768 = vpop.f32.mrf.mxu0
    %1769 = vdwg.mxu0
    %v1770 = vsel %vm714, %v1682, 0.0
    %v1771 = vrot.slane %v1770, 4
    %v1772 = vadd.f32 %v1770, %v1771
    %v1773 = vrot.slane %v1772, 2
    %v1774 = vadd.f32 %v1772, %v1773
    %v1775 = vrot.slane %v1774, 1
    %v1776 = vadd.f32 %v1774, %v1775
    %v1777 = vsel %vm714, %v1684, 0.0
    %v1778 = vrot.slane %v1777, 4
    %v1779 = vadd.f32 %v1777, %v1778
    %v1780 = vrot.slane %v1779, 2
    %v1781 = vadd.f32 %v1779, %v1780
    %v1782 = vrot.slane %v1781, 1
    %v1783 = vadd.f32 %v1781, %v1782
    %v1784 = vsel %vm714, %v1764, 0.0
    %v1785 = vrot.slane %v1784, 4
    %v1786 = vadd.f32 %v1784, %v1785
    %v1787 = vrot.slane %v1786, 2
    %v1788 = vadd.f32 %v1786, %v1787
    %v1789 = vrot.slane %v1788, 1
    %v1790 = vadd.f32 %v1788, %v1789
    %v1791 = vsel %vm714, %v1766, 0.0
    %v1792 = vrot.slane %v1791, 4
    %v1793 = vadd.f32 %v1791, %v1792
    %v1794 = vrot.slane %v1793, 2
    %v1795 = vadd.f32 %v1793, %v1794
    %v1796 = vrot.slane %v1795, 1
    %v1797 = vadd.f32 %v1795, %v1796
    %v1798 = vmul.f32 %v1776, %v743
    %v1799 = vmul.f32 %v1783, %v743
    %v1800 = vmul.f32 %v1790, %v743
    %v1801 = vmul.f32 %v1797, %v743
    %v1802 = vmul.f32 %v1682, %v1682
    %v1803 = vmul.f32 %v1684, %v1684
    %v1804 = vmul.f32 %v1764, %v1764
    %v1805 = vmul.f32 %v1766, %v1766
    %v1806 = vsel %vm714, %v1802, 0.0
    %v1807 = vrot.slane %v1806, 4
    %v1808 = vadd.f32 %v1806, %v1807
    %v1809 = vrot.slane %v1808, 2
    %v1810 = vadd.f32 %v1808, %v1809
    %v1811 = vrot.slane %v1810, 1
    %v1812 = vadd.f32 %v1810, %v1811
    %v1813 = vsel %vm714, %v1803, 0.0
    %v1814 = vrot.slane %v1813, 4
    %v1815 = vadd.f32 %v1813, %v1814
    %v1816 = vrot.slane %v1815, 2
    %v1817 = vadd.f32 %v1815, %v1816
    %v1818 = vrot.slane %v1817, 1
    %v1819 = vadd.f32 %v1817, %v1818
    %v1820 = vsel %vm714, %v1804, 0.0
    %v1821 = vrot.slane %v1820, 4
    %v1822 = vadd.f32 %v1820, %v1821
    %v1823 = vrot.slane %v1822, 2
    %v1824 = vadd.f32 %v1822, %v1823
    %v1825 = vrot.slane %v1824, 1
    %v1826 = vadd.f32 %v1824, %v1825
    %v1827 = vsel %vm714, %v1805, 0.0
    %v1828 = vrot.slane %v1827, 4
    %v1829 = vadd.f32 %v1827, %v1828
    %v1830 = vrot.slane %v1829, 2
    %v1831 = vadd.f32 %v1829, %v1830
    %v1832 = vrot.slane %v1831, 1
    %v1833 = vadd.f32 %v1831, %v1832
    %v1834 = vmul.f32 %v1812, %v743
    %v1835 = vmul.f32 %v1819, %v743
    %v1836 = vmul.f32 %v1826, %v743
    %v1837 = vmul.f32 %v1833, %v743
    %v1838 = vmul.f32 %v1798, %v1798
    %v1839 = vmul.f32 %v1799, %v1799
    %v1840 = vmul.f32 %v1800, %v1800
    %v1841 = vmul.f32 %v1801, %v1801
    %v1842 = vsub.f32 %v1834, %v1838
    %v1843 = vsub.f32 %v1835, %v1839
    %v1844 = vsub.f32 %v1836, %v1840
    %v1845 = vsub.f32 %v1837, %v1841
    %v1846 = vsub.f32 %v1682, %v1798
    %v1847 = vsub.f32 %v1684, %v1799
    %v1848 = vsub.f32 %v1764, %v1800
    %v1849 = vsub.f32 %v1766, %v1801
    %v1850 = vadd.f32 %v1842, 1e-05
    %v1851 = vadd.f32 %v1843, 1e-05
    %v1852 = vadd.f32 %v1844, 1e-05
    %v1853 = vadd.f32 %v1845, 1e-05
    %v1854 = vrsqrt.pop %v1850
    %v1855 = vrsqrt.pop %v1851
    %v1856 = vrsqrt.pop %v1852
    %v1857 = vrsqrt.pop %v1853
    %v1858 = vmul.f32 %v1846, %v1854
    %v1859 = vmul.f32 %v1847, %v1855
    %v1860 = vmul.f32 %v1848, %v1856
    %v1861 = vmul.f32 %v1849, %v1857
    %v1862 = vmax.f32 %v1858, 0.0
    %v1863 = vmax.f32 %v1859, 0.0
    %v1864 = vmax.f32 %v1860, 0.0
    %v1865 = vmax.f32 %v1861, 0.0
    %v1870 = vrot.slane %v1862, 1
    %v1871 = vrot.slane %v1863, 1
    %v1872 = vrot.slane %v1864, 1
    %v1873 = vrot.slane %v1865, 1
    %1878 = vrot.lane.b32.xlu0 %v1862, 1
    %v1879 = vpop.permute.xlu0 %1878
    %1880 = vrot.lane.b32.xlu0 %v1863, 1
    %v1881 = vpop.permute.xlu0 %1880
    %1882 = vrot.lane.b32.xlu0 %v1864, 1
    %v1883 = vpop.permute.xlu0 %1882
    %1884 = vrot.lane.b32.xlu0 %v1865, 1
    %v1885 = vpop.permute.xlu0 %1884
    %1886 = vrot.lane.b32.xlu0 %v1870, 1
    %v1887 = vpop.permute.xlu0 %1886
    %1888 = vrot.lane.b32.xlu0 %v1871, 1
    %v1889 = vpop.permute.xlu0 %1888
    %1890 = vrot.lane.b32.xlu0 %v1872, 1
    %v1891 = vpop.permute.xlu0 %1890
    %1892 = vrot.lane.b32.xlu0 %v1873, 1
    %v1893 = vpop.permute.xlu0 %1892
    %vm1894 = vcmp.lt.s32.totalorder %v148, 1
    %v1895 = vsel %vm1894, %v1891, %v1893
    %v1896 = vsel %vm1894, %v1889, %v1891
    %v1897 = vsel %vm1894, %v1887, %v1889
    %v1898 = vsel %vm1894, %v1885, %v1887
    %v1899 = vsel %vm1894, %v1883, %v1885
    %v1900 = vsel %vm1894, %v1881, %v1883
    %v1901 = vsel %vm1894, %v1879, %v1881
    %v1902 = vsel %vm1894, %v1893, %v1879
    %v1903 = vmul.f32 %v1902, %v180
    %v1904 = vmul.f32 %v1901, %v181
    %v1905 = vmul.f32 %v1900, %v182
    %v1906 = vmul.f32 %v1899, %v183
    %v1907 = vmul.f32 %v1898, %v184
    %v1908 = vmul.f32 %v1897, %v185
    %v1909 = vmul.f32 %v1896, %v186
    %v1910 = vmul.f32 %v1895, %v187
    %1911 = vrot.lane.b32.xlu0 %v1862, 127
    %v1912 = vpop.permute.xlu0 %1911
    %1913 = vrot.lane.b32.xlu0 %v1863, 127
    %v1914 = vpop.permute.xlu0 %1913
    %1915 = vrot.lane.b32.xlu0 %v1864, 127
    %v1916 = vpop.permute.xlu0 %1915
    %1917 = vrot.lane.b32.xlu0 %v1865, 127
    %v1918 = vpop.permute.xlu0 %1917
    %1919 = vrot.lane.b32.xlu0 %v1870, 127
    %v1920 = vpop.permute.xlu0 %1919
    %1921 = vrot.lane.b32.xlu0 %v1871, 127
    %v1922 = vpop.permute.xlu0 %1921
    %1923 = vrot.lane.b32.xlu0 %v1872, 127
    %v1924 = vpop.permute.xlu0 %1923
    %1925 = vrot.lane.b32.xlu0 %v1873, 127
    %v1926 = vpop.permute.xlu0 %1925
    %vm1927 = vcmp.lt.s32.totalorder %v148, 127
    %v1928 = vsel %vm1927, %v1924, %v1926
    %v1929 = vsel %vm1927, %v1922, %v1924
    %v1930 = vsel %vm1927, %v1920, %v1922
    %v1931 = vsel %vm1927, %v1918, %v1920
    %v1932 = vsel %vm1927, %v1916, %v1918
    %v1933 = vsel %vm1927, %v1914, %v1916
    %v1934 = vsel %vm1927, %v1912, %v1914
    %v1935 = vsel %vm1927, %v1926, %v1912
    %v1936 = vmul.f32 %v1934, %v204
    %v1937 = vmul.f32 %v1933, %v205
    %v1938 = vmul.f32 %v1932, %v206
    %v1939 = vmul.f32 %v1931, %v207
    %v1940 = vmul.f32 %v1930, %v208
    %v1941 = vmul.f32 %v1929, %v209
    %v1942 = vmul.f32 %v1928, %v210
    %v1943 = vmul.f32 %v1935, %v211
    %v1944 = vld [vmem:[#allocation12] sm:$0xff]
    %1946 = vset.pattern.permute.xlu0 0
    %1947 = vperm.xlu0 %1946, %v1944
    %v1948 = vpop.permute.xlu0 %1947
    %v1950 = vlaneseq
    %v1951 = vshrl.u32 %v1950, 7
    %v1952 = vsub.s32 0, %v1951
    %v1953 = vrot.slane %v1903, %v1952
    %v1954 = vlaneseq
    %v1955 = vshrl.u32 %v1954, 7
    %v1956 = vsub.s32 0, %v1955
    %v1957 = vrot.slane %v1904, %v1956
    %v1958 = vlaneseq
    %v1959 = vshrl.u32 %v1958, 7
    %v1960 = vsub.s32 0, %v1959
    %v1961 = vrot.slane %v1905, %v1960
    %v1962 = vlaneseq
    %v1963 = vshrl.u32 %v1962, 7
    %v1964 = vsub.s32 0, %v1963
    %v1965 = vrot.slane %v1906, %v1964
    %v1966 = vlaneseq
    %v1967 = vshrl.u32 %v1966, 7
    %v1968 = vsub.s32 0, %v1967
    %v1969 = vrot.slane %v1907, %v1968
    %v1970 = vlaneseq
    %v1971 = vshrl.u32 %v1970, 7
    %v1972 = vsub.s32 0, %v1971
    %v1973 = vrot.slane %v1908, %v1972
    %v1974 = vlaneseq
    %v1975 = vshrl.u32 %v1974, 7
    %v1976 = vsub.s32 0, %v1975
    %v1977 = vrot.slane %v1909, %v1976
    %v1978 = vlaneseq
    %v1979 = vshrl.u32 %v1978, 7
    %v1980 = vsub.s32 0, %v1979
    %v1981 = vrot.slane %v1910, %v1980
    %v1982 = vmul.f32 %v1948, %v1953
    %v1983 = vmul.f32 %v1948, %v1957
    %v1984 = vmul.f32 %v1948, %v1961
    %v1985 = vmul.f32 %v1948, %v1965
    %v1986 = vmul.f32 %v1948, %v1969
    %v1987 = vmul.f32 %v1948, %v1973
    %v1988 = vmul.f32 %v1948, %v1977
    %v1989 = vmul.f32 %v1948, %v1981
    %1990 = vset.pattern.permute.xlu0 1
    %1991 = vperm.xlu0 %1990, %v1944
    %v1992 = vpop.permute.xlu0 %1991
    %v1994 = vlaneseq
    %v1995 = vshrl.u32 %v1994, 7
    %v1996 = vsub.s32 0, %v1995
    %v1997 = vrot.slane %v1862, %v1996
    %v1998 = vlaneseq
    %v1999 = vshrl.u32 %v1998, 7
    %v2000 = vsub.s32 0, %v1999
    %v2001 = vrot.slane %v1863, %v2000
    %v2002 = vlaneseq
    %v2003 = vshrl.u32 %v2002, 7
    %v2004 = vsub.s32 0, %v2003
    %v2005 = vrot.slane %v1864, %v2004
    %v2006 = vlaneseq
    %v2007 = vshrl.u32 %v2006, 7
    %v2008 = vsub.s32 0, %v2007
    %v2009 = vrot.slane %v1865, %v2008
    %v2010 = vlaneseq
    %v2011 = vshrl.u32 %v2010, 7
    %v2012 = vsub.s32 0, %v2011
    %v2013 = vrot.slane %v1870, %v2012
    %v2014 = vlaneseq
    %v2015 = vshrl.u32 %v2014, 7
    %v2016 = vsub.s32 0, %v2015
    %v2017 = vrot.slane %v1871, %v2016
    %v2018 = vlaneseq
    %v2019 = vshrl.u32 %v2018, 7
    %v2020 = vsub.s32 0, %v2019
    %v2021 = vrot.slane %v1872, %v2020
    %v2022 = vlaneseq
    %v2023 = vshrl.u32 %v2022, 7
    %v2024 = vsub.s32 0, %v2023
    %v2025 = vrot.slane %v1873, %v2024
    %v2026 = vmul.f32 %v1992, %v1997
    %v2027 = vmul.f32 %v1992, %v2001
    %v2028 = vmul.f32 %v1992, %v2005
    %v2029 = vmul.f32 %v1992, %v2009
    %v2030 = vmul.f32 %v1992, %v2013
    %v2031 = vmul.f32 %v1992, %v2017
    %v2032 = vmul.f32 %v1992, %v2021
    %v2033 = vmul.f32 %v1992, %v2025
    %v2034 = vadd.f32 %v1982, %v2026
    %v2035 = vadd.f32 %v1983, %v2027
    %v2036 = vadd.f32 %v1984, %v2028
    %v2037 = vadd.f32 %v1985, %v2029
    %v2038 = vadd.f32 %v1986, %v2030
    %v2039 = vadd.f32 %v1987, %v2031
    %v2040 = vadd.f32 %v1988, %v2032
    %v2041 = vadd.f32 %v1989, %v2033
    %2042 = vset.pattern.permute.xlu0 2
    %2043 = vperm.xlu0 %2042, %v1944
    %v2044 = vpop.permute.xlu0 %2043
    %v2046 = vlaneseq
    %v2047 = vshrl.u32 %v2046, 7
    %v2048 = vsub.s32 0, %v2047
    %v2049 = vrot.slane %v1936, %v2048
    %v2050 = vlaneseq
    %v2051 = vshrl.u32 %v2050, 7
    %v2052 = vsub.s32 0, %v2051
    %v2053 = vrot.slane %v1937, %v2052
    %v2054 = vlaneseq
    %v2055 = vshrl.u32 %v2054, 7
    %v2056 = vsub.s32 0, %v2055
    %v2057 = vrot.slane %v1938, %v2056
    %v2058 = vlaneseq
    %v2059 = vshrl.u32 %v2058, 7
    %v2060 = vsub.s32 0, %v2059
    %v2061 = vrot.slane %v1939, %v2060
    %v2062 = vlaneseq
    %v2063 = vshrl.u32 %v2062, 7
    %v2064 = vsub.s32 0, %v2063
    %v2065 = vrot.slane %v1940, %v2064
    %v2066 = vlaneseq
    %v2067 = vshrl.u32 %v2066, 7
    %v2068 = vsub.s32 0, %v2067
    %v2069 = vrot.slane %v1941, %v2068
    %v2070 = vlaneseq
    %v2071 = vshrl.u32 %v2070, 7
    %v2072 = vsub.s32 0, %v2071
    %v2073 = vrot.slane %v1942, %v2072
    %v2074 = vlaneseq
    %v2075 = vshrl.u32 %v2074, 7
    %v2076 = vsub.s32 0, %v2075
    %v2077 = vrot.slane %v1943, %v2076
    %v2078 = vmul.f32 %v2044, %v2049
    %v2079 = vmul.f32 %v2044, %v2053
    %v2080 = vmul.f32 %v2044, %v2057
    %v2081 = vmul.f32 %v2044, %v2061
    %v2082 = vmul.f32 %v2044, %v2065
    %v2083 = vmul.f32 %v2044, %v2069
    %v2084 = vmul.f32 %v2044, %v2073
    %v2085 = vmul.f32 %v2044, %v2077
    %v2086 = vadd.f32 %v2034, %v2078
    %v2087 = vadd.f32 %v2035, %v2079
    %v2088 = vadd.f32 %v2036, %v2080
    %v2089 = vadd.f32 %v2037, %v2081
    %v2090 = vadd.f32 %v2038, %v2082
    %v2091 = vadd.f32 %v2039, %v2083
    %v2092 = vadd.f32 %v2040, %v2084
    %v2093 = vadd.f32 %v2041, %v2085
    %v2094 = vadd.f32 %v2086, %v2087
    %v2095 = vadd.f32 %v2094, %v2088
    %v2096 = vadd.f32 %v2095, %v2089
    %v2097 = vadd.f32 %v2096, %v2090
    %v2098 = vadd.f32 %v2097, %v2091
    %v2099 = vadd.f32 %v2098, %v2092
    %v2100 = vadd.f32 %v2099, %v2093
    %2101 = vadd.xlane.f32.xlu0 %v2100
    %v2102 = vpop.xlane.xlu0 %2101
    %v2103 = vrcp.pop 1024.0
    %v2104 = vmul.f32 %v2102, %v2103
    %v2105 = vmul.f32 %v2086, %v2086
    %v2106 = vmul.f32 %v2087, %v2087
    %v2107 = vmul.f32 %v2088, %v2088
    %v2108 = vmul.f32 %v2089, %v2089
    %v2109 = vmul.f32 %v2090, %v2090
    %v2110 = vmul.f32 %v2091, %v2091
    %v2111 = vmul.f32 %v2092, %v2092
    %v2112 = vmul.f32 %v2093, %v2093
    %v2113 = vadd.f32 %v2105, %v2106
    %v2114 = vadd.f32 %v2113, %v2107
    %v2115 = vadd.f32 %v2114, %v2108
    %v2116 = vadd.f32 %v2115, %v2109
    %v2117 = vadd.f32 %v2116, %v2110
    %v2118 = vadd.f32 %v2117, %v2111
    %v2119 = vadd.f32 %v2118, %v2112
    %2120 = vadd.xlane.f32.xlu0 %v2119
    %v2121 = vpop.xlane.xlu0 %2120
    %v2122 = vmul.f32 %v2121, %v2103
    %v2123 = vmul.f32 %v2104, %v2104
    %v2124 = vsub.f32 %v2122, %v2123
    %v2125 = vsub.f32 %v2086, %v2104
    %v2126 = vsub.f32 %v2087, %v2104
    %v2127 = vsub.f32 %v2088, %v2104
    %v2128 = vsub.f32 %v2089, %v2104
    %v2129 = vsub.f32 %v2090, %v2104
    %v2130 = vsub.f32 %v2091, %v2104
    %v2131 = vsub.f32 %v2092, %v2104
    %v2132 = vsub.f32 %v2093, %v2104
    %v2133 = vadd.f32 %v2124, 1e-05
    %v2134 = vrsqrt.pop %v2133
    %v2135 = vmul.f32 %v2125, %v2134
    %v2136 = vmul.f32 %v2126, %v2134
    %v2137 = vmul.f32 %v2127, %v2134
    %v2138 = vmul.f32 %v2128, %v2134
    %v2139 = vmul.f32 %v2129, %v2134
    %v2140 = vmul.f32 %v2130, %v2134
    %v2141 = vmul.f32 %v2131, %v2134
    %v2142 = vmul.f32 %v2132, %v2134
    %v2143 = vmax.f32 %v2135, 0.0
    %v2144 = vmax.f32 %v2136, 0.0
    %v2145 = vmax.f32 %v2137, 0.0
    %v2146 = vmax.f32 %v2138, 0.0
    %v2147 = vmax.f32 %v2139, 0.0
    %v2148 = vmax.f32 %v2140, 0.0
    %v2149 = vmax.f32 %v2141, 0.0
    %v2150 = vmax.f32 %v2142, 0.0
    %2151 = vrot.lane.b32.xlu0 %v2143, 1
    %v2152 = vpop.permute.xlu0 %2151
    %2153 = vrot.lane.b32.xlu0 %v2144, 1
    %v2154 = vpop.permute.xlu0 %2153
    %2155 = vrot.lane.b32.xlu0 %v2145, 1
    %v2156 = vpop.permute.xlu0 %2155
    %2157 = vrot.lane.b32.xlu0 %v2146, 1
    %v2158 = vpop.permute.xlu0 %2157
    %2159 = vrot.lane.b32.xlu0 %v2147, 1
    %v2160 = vpop.permute.xlu0 %2159
    %2161 = vrot.lane.b32.xlu0 %v2148, 1
    %v2162 = vpop.permute.xlu0 %2161
    %2163 = vrot.lane.b32.xlu0 %v2149, 1
    %v2164 = vpop.permute.xlu0 %2163
    %2165 = vrot.lane.b32.xlu0 %v2150, 1
    %v2166 = vpop.permute.xlu0 %2165
    %v2167 = vsel %vm1894, %v2164, %v2166
    %v2168 = vsel %vm1894, %v2162, %v2164
    %v2169 = vsel %vm1894, %v2160, %v2162
    %v2170 = vsel %vm1894, %v2158, %v2160
    %v2171 = vsel %vm1894, %v2156, %v2158
    %v2172 = vsel %vm1894, %v2154, %v2156
    %v2173 = vsel %vm1894, %v2152, %v2154
    %v2174 = vsel %vm1894, %v2166, %v2152
    %v2175 = vmul.f32 %v2174, %v180
    %v2176 = vmul.f32 %v2173, %v181
    %v2177 = vmul.f32 %v2172, %v182
    %v2178 = vmul.f32 %v2171, %v183
    %v2179 = vmul.f32 %v2170, %v184
    %v2180 = vmul.f32 %v2169, %v185
    %v2181 = vmul.f32 %v2168, %v186
    %v2182 = vmul.f32 %v2167, %v187
    %2183 = vst [vmem:[#allocation2] sm:$0xff] %v2175
    %2184 = vst [vmem:[#allocation2 + $0x8] sm:$0xff] %v2176
    %2185 = vst [vmem:[#allocation2 + $0x10] sm:$0xff] %v2177
    %2186 = vst [vmem:[#allocation2 + $0x18] sm:$0xff] %v2178
    %2187 = vst [vmem:[#allocation2 + $0x20] sm:$0xff] %v2179
    %2188 = vst [vmem:[#allocation2 + $0x28] sm:$0xff] %v2180
    %2189 = vst [vmem:[#allocation2 + $0x30] sm:$0xff] %v2181
    %2190 = vst [vmem:[#allocation2 + $0x38] sm:$0xff] %v2182
    %2191 = vst [vmem:[#allocation2 + $0x40] sm:$0xff] %v2143
    %2192 = vst [vmem:[#allocation2 + $0x48] sm:$0xff] %v2144
    %2193 = vst [vmem:[#allocation2 + $0x50] sm:$0xff] %v2145
    %2194 = vst [vmem:[#allocation2 + $0x58] sm:$0xff] %v2146
    %2195 = vst [vmem:[#allocation2 + $0x60] sm:$0xff] %v2147
    %2196 = vst [vmem:[#allocation2 + $0x68] sm:$0xff] %v2148
    %2197 = vst [vmem:[#allocation2 + $0x70] sm:$0xff] %v2149
    %2198 = vst [vmem:[#allocation2 + $0x78] sm:$0xff] %v2150
    %2199 = vrot.lane.b32.xlu0 %v2143, 127
    %v2200 = vpop.permute.xlu0 %2199
    %2201 = vrot.lane.b32.xlu0 %v2144, 127
    %v2202 = vpop.permute.xlu0 %2201
    %2203 = vrot.lane.b32.xlu0 %v2145, 127
    %v2204 = vpop.permute.xlu0 %2203
    %2205 = vrot.lane.b32.xlu0 %v2146, 127
    %v2206 = vpop.permute.xlu0 %2205
    %2207 = vrot.lane.b32.xlu0 %v2147, 127
    %v2208 = vpop.permute.xlu0 %2207
    %2209 = vrot.lane.b32.xlu0 %v2148, 127
    %v2210 = vpop.permute.xlu0 %2209
    %2211 = vrot.lane.b32.xlu0 %v2149, 127
    %v2212 = vpop.permute.xlu0 %2211
    %2213 = vrot.lane.b32.xlu0 %v2150, 127
    %v2214 = vpop.permute.xlu0 %2213
    %v2215 = vsel %vm1927, %v2212, %v2214
    %v2216 = vsel %vm1927, %v2210, %v2212
    %v2217 = vsel %vm1927, %v2208, %v2210
    %v2218 = vsel %vm1927, %v2206, %v2208
    %v2219 = vsel %vm1927, %v2204, %v2206
    %v2220 = vsel %vm1927, %v2202, %v2204
    %v2221 = vsel %vm1927, %v2200, %v2202
    %v2222 = vsel %vm1927, %v2214, %v2200
    %v2223 = vmul.f32 %v2221, %v204
    %v2224 = vmul.f32 %v2220, %v205
    %v2225 = vmul.f32 %v2219, %v206
    %v2226 = vmul.f32 %v2218, %v207
    %v2227 = vmul.f32 %v2217, %v208
    %v2228 = vmul.f32 %v2216, %v209
    %v2229 = vmul.f32 %v2215, %v210
    %v2230 = vmul.f32 %v2222, %v211
    %2231 = vst [vmem:[#allocation2 + $0x80] sm:$0xff] %v2223
    %2232 = vst [vmem:[#allocation2 + $0x88] sm:$0xff] %v2224
    %2233 = vst [vmem:[#allocation2 + $0x90] sm:$0xff] %v2225
    %2234 = vst [vmem:[#allocation2 + $0x98] sm:$0xff] %v2226
    %2235 = vst [vmem:[#allocation2 + $0xa0] sm:$0xff] %v2227
    %2236 = vst [vmem:[#allocation2 + $0xa8] sm:$0xff] %v2228
    %2237 = vst [vmem:[#allocation2 + $0xb0] sm:$0xff] %v2229
    %2238 = vst [vmem:[#allocation2 + $0xb8] sm:$0xff] %v2230
    %v2239 = vld [vmem:[#allocation2] sm:$0xff]
    %v2240 = vld [vmem:[#allocation2 + $0x8] sm:$0xff]
    %v2241 = vld [vmem:[#allocation2 + $0x10] sm:$0xff]
    %v2242 = vld [vmem:[#allocation2 + $0x18] sm:$0xff]
    %v2243 = vld [vmem:[#allocation2 + $0x20] sm:$0xff]
    %v2244 = vld [vmem:[#allocation2 + $0x28] sm:$0xff]
    %v2245 = vld [vmem:[#allocation2 + $0x30] sm:$0xff]
    %v2246 = vld [vmem:[#allocation2 + $0x38] sm:$0xff]
    %v2247 = vld [vmem:[#allocation2 + $0x40] sm:$0xff]
    %v2248 = vld [vmem:[#allocation2 + $0x48] sm:$0xff]
    %v2249 = vld [vmem:[#allocation2 + $0x50] sm:$0xff]
    %v2250 = vld [vmem:[#allocation2 + $0x58] sm:$0xff]
    %v2251 = vld [vmem:[#allocation2 + $0x60] sm:$0xff]
    %v2252 = vld [vmem:[#allocation2 + $0x68] sm:$0xff]
    %v2253 = vld [vmem:[#allocation2 + $0x70] sm:$0xff]
    %v2254 = vld [vmem:[#allocation2 + $0x78] sm:$0xff]
    %v2255 = vld [vmem:[#allocation2 + $0x80] sm:$0xff]
    %v2256 = vld [vmem:[#allocation2 + $0x88] sm:$0xff]
    %v2257 = vld [vmem:[#allocation2 + $0x90] sm:$0xff]
    %v2258 = vld [vmem:[#allocation2 + $0x98] sm:$0xff]
    %v2259 = vld [vmem:[#allocation2 + $0xa0] sm:$0xff]
    %v2260 = vld [vmem:[#allocation2 + $0xa8] sm:$0xff]
    %v2261 = vld [vmem:[#allocation2 + $0xb0] sm:$0xff]
    %v2262 = vld [vmem:[#allocation2 + $0xb8] sm:$0xff]
    %v2263 = vld [vmem:[#allocation14] sm:$0xff]
    %vm2264 = vcmask 195584
    %v2266 = vsel %vm2264, %v2263, 0
    %2268 = vmatprep.subr.mxu0 0.0
    %2269 = vmatpush1.msra.mxu0 0.0
    %2270 = vmatprep.subr.mxu0 0.0
    %2271 = vmatpush1.msra.mxu0 0.0
    %2272 = vmatprep.subr.mxu0 0.0
    %2273 = vmatpush1.msra.mxu0 0.0
    %2274 = vmatprep.subr.mxu0 0.0
    %2275 = vmatpush1.msra.mxu0 0.0
    %2276 = vmatprep.subr.mxu0 0.0
    %2277 = vmatpush1.msra.mxu0 0.0
    %2278 = vmatprep.subr.mxu0 0.0
    %2279 = vmatpush1.msra.mxu0 0.0
    %2280 = vmatprep.subr.mxu0 0.0
    %2281 = vmatpush1.msra.mxu0 0.0
    %2282 = vmatprep.subr.mxu0 0.0
    %2283 = vmatpush1.msra.mxu0 0.0
    %2284 = vmatprep.subr.mxu0 0.0
    %2285 = vmatpush1.msra.mxu0 0.0
    %2286 = vmatprep.subr.mxu0 0.0
    %2287 = vmatpush1.msra.mxu0 0.0
    %2288 = vmatprep.subr.mxu0 0.0
    %2289 = vmatpush1.msra.mxu0 0.0
    %2290 = vmatprep.subr.mxu0 0.0
    %2291 = vmatpush1.msra.mxu0 0.0
    %2292 = vmatprep.subr.mxu0 0.0
    %2293 = vmatpush1.msra.mxu0 0.0
    %2294 = vmatprep.subr.mxu0 %v2256
    %2295 = vmatpush1.msra.mxu0 %v2255
    %2296 = vmatprep.subr.mxu0 %v2248
    %2297 = vmatpush1.msra.mxu0 %v2247
    %2298 = vmatprep.subr.mxu0 %v2240
    %2299 = vmatpush1.msra.mxu0 %v2239
    %2300 = vmatprep.subr.mxu0 0.0
    %2301 = vmatpush2.msra.mxu0 0.0
    %2302 = vmatprep.subr.mxu0 0.0
    %2303 = vmatpush2.msra.mxu0 0.0
    %2304 = vmatprep.subr.mxu0 0.0
    %2305 = vmatpush2.msra.mxu0 0.0
    %2306 = vmatprep.subr.mxu0 0.0
    %2307 = vmatpush2.msra.mxu0 0.0
    %2308 = vmatprep.subr.mxu0 0.0
    %2309 = vmatpush2.msra.mxu0 0.0
    %2310 = vmatprep.subr.mxu0 0.0
    %2311 = vmatpush2.msra.mxu0 0.0
    %2312 = vmatprep.subr.mxu0 0.0
    %2313 = vmatpush2.msra.mxu0 0.0
    %2314 = vmatprep.subr.mxu0 0.0
    %2315 = vmatpush2.msra.mxu0 0.0
    %2316 = vmatprep.subr.mxu0 0.0
    %2317 = vmatpush2.msra.mxu0 0.0
    %2318 = vmatprep.subr.mxu0 0.0
    %2319 = vmatpush2.msra.mxu0 0.0
    %2320 = vmatprep.subr.mxu0 0.0
    %2321 = vmatpush2.msra.mxu0 0.0
    %2322 = vmatprep.subr.mxu0 0.0
    %2323 = vmatpush2.msra.mxu0 0.0
    %2324 = vmatprep.subr.mxu0 0.0
    %2325 = vmatpush2.msra.mxu0 0.0
    %2326 = vmatprep.subr.mxu0 0.0
    %2327 = vmatpush2.msra.mxu0 0.0
    %2328 = vmatprep.subr.mxu0 0.0
    %2329 = vmatpush2.msra.mxu0 0.0
    %2330 = vmatprep.subr.mxu0 0.0
    %2331 = vmatpush2.msra.mxu0 0.0
    %2332 = vmatprep.mubr.f32.mxu0 0.0
    %2333 = vmatmul.mubr.f32.gmra.mxu0 %v2266
    %v2334 = vpop.f32.mrf.mxu0
    %v2335 = vadd.f32 0.0, %v2334
    %v2336 = vpop.f32.mrf.mxu0
    %v2337 = vadd.f32 0.0, %v2336
    %2338 = vdwg.mxu0
    %2339 = vmatprep.subr.mxu0 0.0
    %2340 = vmatpush1.msra.mxu0 0.0
    %2341 = vmatprep.subr.mxu0 0.0
    %2342 = vmatpush1.msra.mxu0 0.0
    %2343 = vmatprep.subr.mxu0 0.0
    %2344 = vmatpush1.msra.mxu0 0.0
    %2345 = vmatprep.subr.mxu0 0.0
    %2346 = vmatpush1.msra.mxu0 0.0
    %2347 = vmatprep.subr.mxu0 0.0
    %2348 = vmatpush1.msra.mxu0 0.0
    %2349 = vmatprep.subr.mxu0 0.0
    %2350 = vmatpush1.msra.mxu0 0.0
    %2351 = vmatprep.subr.mxu0 0.0
    %2352 = vmatpush1.msra.mxu0 0.0
    %2353 = vmatprep.subr.mxu0 0.0
    %2354 = vmatpush1.msra.mxu0 0.0
    %2355 = vmatprep.subr.mxu0 0.0
    %2356 = vmatpush1.msra.mxu0 0.0
    %2357 = vmatprep.subr.mxu0 0.0
    %2358 = vmatpush1.msra.mxu0 0.0
    %2359 = vmatprep.subr.mxu0 0.0
    %2360 = vmatpush1.msra.mxu0 0.0
    %2361 = vmatprep.subr.mxu0 0.0
    %2362 = vmatpush1.msra.mxu0 0.0
    %2363 = vmatprep.subr.mxu0 0.0
    %2364 = vmatpush1.msra.mxu0 0.0
    %2365 = vmatprep.subr.mxu0 %v2258
    %2366 = vmatpush1.msra.mxu0 %v2257
    %2367 = vmatprep.subr.mxu0 %v2250
    %2368 = vmatpush1.msra.mxu0 %v2249
    %2369 = vmatprep.subr.mxu0 %v2242
    %2370 = vmatpush1.msra.mxu0 %v2241
    %2371 = vmatprep.subr.mxu0 0.0
    %2372 = vmatpush2.msra.mxu0 0.0
    %2373 = vmatprep.subr.mxu0 0.0
    %2374 = vmatpush2.msra.mxu0 0.0
    %2375 = vmatprep.subr.mxu0 0.0
    %2376 = vmatpush2.msra.mxu0 0.0
    %2377 = vmatprep.subr.mxu0 0.0
    %2378 = vmatpush2.msra.mxu0 0.0
    %2379 = vmatprep.subr.mxu0 0.0
    %2380 = vmatpush2.msra.mxu0 0.0
    %2381 = vmatprep.subr.mxu0 0.0
    %2382 = vmatpush2.msra.mxu0 0.0
    %2383 = vmatprep.subr.mxu0 0.0
    %2384 = vmatpush2.msra.mxu0 0.0
    %2385 = vmatprep.subr.mxu0 0.0
    %2386 = vmatpush2.msra.mxu0 0.0
    %2387 = vmatprep.subr.mxu0 0.0
    %2388 = vmatpush2.msra.mxu0 0.0
    %2389 = vmatprep.subr.mxu0 0.0
    %2390 = vmatpush2.msra.mxu0 0.0
    %2391 = vmatprep.subr.mxu0 0.0
    %2392 = vmatpush2.msra.mxu0 0.0
    %2393 = vmatprep.subr.mxu0 0.0
    %2394 = vmatpush2.msra.mxu0 0.0
    %2395 = vmatprep.subr.mxu0 0.0
    %2396 = vmatpush2.msra.mxu0 0.0
    %2397 = vmatprep.subr.mxu0 0.0
    %2398 = vmatpush2.msra.mxu0 0.0
    %2399 = vmatprep.subr.mxu0 0.0
    %2400 = vmatpush2.msra.mxu0 0.0
    %2401 = vmatprep.subr.mxu0 0.0
    %2402 = vmatpush2.msra.mxu0 0.0
    %2403 = vmatprep.mubr.f32.mxu0 0.0
    %2404 = vmatmul.mubr.f32.gmra.mxu0 %v2266
    %v2405 = vpop.f32.mrf.mxu0
    %v2406 = vadd.f32 0.0, %v2405
    %v2407 = vpop.f32.mrf.mxu0
    %v2408 = vadd.f32 0.0, %v2407
    %2409 = vdwg.mxu0
    %2410 = vmatprep.subr.mxu0 0.0
    %2411 = vmatpush1.msra.mxu0 0.0
    %2412 = vmatprep.subr.mxu0 0.0
    %2413 = vmatpush1.msra.mxu0 0.0
    %2414 = vmatprep.subr.mxu0 0.0
    %2415 = vmatpush1.msra.mxu0 0.0
    %2416 = vmatprep.subr.mxu0 0.0
    %2417 = vmatpush1.msra.mxu0 0.0
    %2418 = vmatprep.subr.mxu0 0.0
    %2419 = vmatpush1.msra.mxu0 0.0
    %2420 = vmatprep.subr.mxu0 0.0
    %2421 = vmatpush1.msra.mxu0 0.0
    %2422 = vmatprep.subr.mxu0 0.0
    %2423 = vmatpush1.msra.mxu0 0.0
    %2424 = vmatprep.subr.mxu0 0.0
    %2425 = vmatpush1.msra.mxu0 0.0
    %2426 = vmatprep.subr.mxu0 0.0
    %2427 = vmatpush1.msra.mxu0 0.0
    %2428 = vmatprep.subr.mxu0 0.0
    %2429 = vmatpush1.msra.mxu0 0.0
    %2430 = vmatprep.subr.mxu0 0.0
    %2431 = vmatpush1.msra.mxu0 0.0
    %2432 = vmatprep.subr.mxu0 0.0
    %2433 = vmatpush1.msra.mxu0 0.0
    %2434 = vmatprep.subr.mxu0 0.0
    %2435 = vmatpush1.msra.mxu0 0.0
    %2436 = vmatprep.subr.mxu0 %v2260
    %2437 = vmatpush1.msra.mxu0 %v2259
    %2438 = vmatprep.subr.mxu0 %v2252
    %2439 = vmatpush1.msra.mxu0 %v2251
    %2440 = vmatprep.subr.mxu0 %v2244
    %2441 = vmatpush1.msra.mxu0 %v2243
    %2442 = vmatprep.subr.mxu0 0.0
    %2443 = vmatpush2.msra.mxu0 0.0
    %2444 = vmatprep.subr.mxu0 0.0
    %2445 = vmatpush2.msra.mxu0 0.0
    %2446 = vmatprep.subr.mxu0 0.0
    %2447 = vmatpush2.msra.mxu0 0.0
    %2448 = vmatprep.subr.mxu0 0.0
    %2449 = vmatpush2.msra.mxu0 0.0
    %2450 = vmatprep.subr.mxu0 0.0
    %2451 = vmatpush2.msra.mxu0 0.0
    %2452 = vmatprep.subr.mxu0 0.0
    %2453 = vmatpush2.msra.mxu0 0.0
    %2454 = vmatprep.subr.mxu0 0.0
    %2455 = vmatpush2.msra.mxu0 0.0
    %2456 = vmatprep.subr.mxu0 0.0
    %2457 = vmatpush2.msra.mxu0 0.0
    %2458 = vmatprep.subr.mxu0 0.0
    %2459 = vmatpush2.msra.mxu0 0.0
    %2460 = vmatprep.subr.mxu0 0.0
    %2461 = vmatpush2.msra.mxu0 0.0
    %2462 = vmatprep.subr.mxu0 0.0
    %2463 = vmatpush2.msra.mxu0 0.0
    %2464 = vmatprep.subr.mxu0 0.0
    %2465 = vmatpush2.msra.mxu0 0.0
    %2466 = vmatprep.subr.mxu0 0.0
    %2467 = vmatpush2.msra.mxu0 0.0
    %2468 = vmatprep.subr.mxu0 0.0
    %2469 = vmatpush2.msra.mxu0 0.0
    %2470 = vmatprep.subr.mxu0 0.0
    %2471 = vmatpush2.msra.mxu0 0.0
    %2472 = vmatprep.subr.mxu0 0.0
    %2473 = vmatpush2.msra.mxu0 0.0
    %2474 = vmatprep.mubr.f32.mxu0 0.0
    %2475 = vmatmul.mubr.f32.gmra.mxu0 %v2266
    %v2476 = vpop.f32.mrf.mxu0
    %v2477 = vadd.f32 0.0, %v2476
    %v2478 = vpop.f32.mrf.mxu0
    %v2479 = vadd.f32 0.0, %v2478
    %2480 = vdwg.mxu0
    %2481 = vmatprep.subr.mxu0 0.0
    %2482 = vmatpush1.msra.mxu0 0.0
    %2483 = vmatprep.subr.mxu0 0.0
    %2484 = vmatpush1.msra.mxu0 0.0
    %2485 = vmatprep.subr.mxu0 0.0
    %2486 = vmatpush1.msra.mxu0 0.0
    %2487 = vmatprep.subr.mxu0 0.0
    %2488 = vmatpush1.msra.mxu0 0.0
    %2489 = vmatprep.subr.mxu0 0.0
    %2490 = vmatpush1.msra.mxu0 0.0
    %2491 = vmatprep.subr.mxu0 0.0
    %2492 = vmatpush1.msra.mxu0 0.0
    %2493 = vmatprep.subr.mxu0 0.0
    %2494 = vmatpush1.msra.mxu0 0.0
    %2495 = vmatprep.subr.mxu0 0.0
    %2496 = vmatpush1.msra.mxu0 0.0
    %2497 = vmatprep.subr.mxu0 0.0
    %2498 = vmatpush1.msra.mxu0 0.0
    %2499 = vmatprep.subr.mxu0 0.0
    %2500 = vmatpush1.msra.mxu0 0.0
    %2501 = vmatprep.subr.mxu0 0.0
    %2502 = vmatpush1.msra.mxu0 0.0
    %2503 = vmatprep.subr.mxu0 0.0
    %2504 = vmatpush1.msra.mxu0 0.0
    %2505 = vmatprep.subr.mxu0 0.0
    %2506 = vmatpush1.msra.mxu0 0.0
    %2507 = vmatprep.subr.mxu0 %v2262
    %2508 = vmatpush1.msra.mxu0 %v2261
    %2509 = vmatprep.subr.mxu0 %v2254
    %2510 = vmatpush1.msra.mxu0 %v2253
    %2511 = vmatprep.subr.mxu0 %v2246
    %2512 = vmatpush1.msra.mxu0 %v2245
    %2513 = vmatprep.subr.mxu0 0.0
    %2514 = vmatpush2.msra.mxu0 0.0
    %2515 = vmatprep.subr.mxu0 0.0
    %2516 = vmatpush2.msra.mxu0 0.0
    %2517 = vmatprep.subr.mxu0 0.0
    %2518 = vmatpush2.msra.mxu0 0.0
    %2519 = vmatprep.subr.mxu0 0.0
    %2520 = vmatpush2.msra.mxu0 0.0
    %2521 = vmatprep.subr.mxu0 0.0
    %2522 = vmatpush2.msra.mxu0 0.0
    %2523 = vmatprep.subr.mxu0 0.0
    %2524 = vmatpush2.msra.mxu0 0.0
    %2525 = vmatprep.subr.mxu0 0.0
    %2526 = vmatpush2.msra.mxu0 0.0
    %2527 = vmatprep.subr.mxu0 0.0
    %2528 = vmatpush2.msra.mxu0 0.0
    %2529 = vmatprep.subr.mxu0 0.0
    %2530 = vmatpush2.msra.mxu0 0.0
    %2531 = vmatprep.subr.mxu0 0.0
    %2532 = vmatpush2.msra.mxu0 0.0
    %2533 = vmatprep.subr.mxu0 0.0
    %2534 = vmatpush2.msra.mxu0 0.0
    %2535 = vmatprep.subr.mxu0 0.0
    %2536 = vmatpush2.msra.mxu0 0.0
    %2537 = vmatprep.subr.mxu0 0.0
    %2538 = vmatpush2.msra.mxu0 0.0
    %2539 = vmatprep.subr.mxu0 0.0
    %2540 = vmatpush2.msra.mxu0 0.0
    %2541 = vmatprep.subr.mxu0 0.0
    %2542 = vmatpush2.msra.mxu0 0.0
    %2543 = vmatprep.subr.mxu0 0.0
    %2544 = vmatpush2.msra.mxu0 0.0
    %2545 = vmatprep.mubr.f32.mxu0 0.0
    %2546 = vmatmul.mubr.f32.gmra.mxu0 %v2266
    %v2547 = vpop.f32.mrf.mxu0
    %v2548 = vadd.f32 0.0, %v2547
    %v2549 = vpop.f32.mrf.mxu0
    %v2550 = vadd.f32 0.0, %v2549
    %2551 = vdwg.mxu0
    %v2552 = vadd.f32 %v2335, %v2337
    %v2553 = vadd.f32 %v2552, %v2406
    %v2554 = vadd.f32 %v2553, %v2408
    %v2555 = vadd.f32 %v2554, %v2477
    %v2556 = vadd.f32 %v2555, %v2479
    %v2557 = vadd.f32 %v2556, %v2548
    %v2558 = vadd.f32 %v2557, %v2550
    %2559 = vadd.xlane.f32.xlu0 %v2558
    %v2560 = vpop.xlane.xlu0 %2559
    %v2561 = vmul.f32 %v2560, %v2103
    %v2562 = vmul.f32 %v2335, %v2335
    %v2563 = vmul.f32 %v2337, %v2337
    %v2564 = vmul.f32 %v2406, %v2406
    %v2565 = vmul.f32 %v2408, %v2408
    %v2566 = vmul.f32 %v2477, %v2477
    %v2567 = vmul.f32 %v2479, %v2479
    %v2568 = vmul.f32 %v2548, %v2548
    %v2569 = vmul.f32 %v2550, %v2550
    %v2570 = vadd.f32 %v2562, %v2563
    %v2571 = vadd.f32 %v2570, %v2564
    %v2572 = vadd.f32 %v2571, %v2565
    %v2573 = vadd.f32 %v2572, %v2566
    %v2574 = vadd.f32 %v2573, %v2567
    %v2575 = vadd.f32 %v2574, %v2568
    %v2576 = vadd.f32 %v2575, %v2569
    %2577 = vadd.xlane.f32.xlu0 %v2576
    %v2578 = vpop.xlane.xlu0 %2577
    %v2579 = vmul.f32 %v2578, %v2103
    %v2580 = vmul.f32 %v2561, %v2561
    %v2581 = vsub.f32 %v2579, %v2580
    %v2582 = vsub.f32 %v2335, %v2561
    %v2583 = vsub.f32 %v2337, %v2561
    %v2584 = vsub.f32 %v2406, %v2561
    %v2585 = vsub.f32 %v2408, %v2561
    %v2586 = vsub.f32 %v2477, %v2561
    %v2587 = vsub.f32 %v2479, %v2561
    %v2588 = vsub.f32 %v2548, %v2561
    %v2589 = vsub.f32 %v2550, %v2561
    %v2590 = vadd.f32 %v2581, 1e-05
    %v2591 = vrsqrt.pop %v2590
    %v2592 = vmul.f32 %v2582, %v2591
    %v2593 = vmul.f32 %v2583, %v2591
    %v2594 = vmul.f32 %v2584, %v2591
    %v2595 = vmul.f32 %v2585, %v2591
    %v2596 = vmul.f32 %v2586, %v2591
    %v2597 = vmul.f32 %v2587, %v2591
    %v2598 = vmul.f32 %v2588, %v2591
    %v2599 = vmul.f32 %v2589, %v2591
    %v2600 = vmax.f32 %v2592, 0.0
    %v2601 = vmax.f32 %v2593, 0.0
    %v2602 = vmax.f32 %v2594, 0.0
    %v2603 = vmax.f32 %v2595, 0.0
    %v2604 = vmax.f32 %v2596, 0.0
    %v2605 = vmax.f32 %v2597, 0.0
    %v2606 = vmax.f32 %v2598, 0.0
    %v2607 = vmax.f32 %v2599, 0.0
    %2608 = vrot.lane.b32.xlu0 %v2600, 1
    %v2609 = vpop.permute.xlu0 %2608
    %2610 = vrot.lane.b32.xlu0 %v2601, 1
    %v2611 = vpop.permute.xlu0 %2610
    %2612 = vrot.lane.b32.xlu0 %v2602, 1
    %v2613 = vpop.permute.xlu0 %2612
    %2614 = vrot.lane.b32.xlu0 %v2603, 1
    %v2615 = vpop.permute.xlu0 %2614
    %2616 = vrot.lane.b32.xlu0 %v2604, 1
    %v2617 = vpop.permute.xlu0 %2616
    %2618 = vrot.lane.b32.xlu0 %v2605, 1
    %v2619 = vpop.permute.xlu0 %2618
    %2620 = vrot.lane.b32.xlu0 %v2606, 1
    %v2621 = vpop.permute.xlu0 %2620
    %2622 = vrot.lane.b32.xlu0 %v2607, 1
    %v2623 = vpop.permute.xlu0 %2622
    %v2624 = vsel %vm1894, %v2621, %v2623
    %v2625 = vsel %vm1894, %v2619, %v2621
    %v2626 = vsel %vm1894, %v2617, %v2619
    %v2627 = vsel %vm1894, %v2615, %v2617
    %v2628 = vsel %vm1894, %v2613, %v2615
    %v2629 = vsel %vm1894, %v2611, %v2613
    %v2630 = vsel %vm1894, %v2609, %v2611
    %v2631 = vsel %vm1894, %v2623, %v2609
    %v2632 = vmul.f32 %v2631, %v180
    %v2633 = vmul.f32 %v2630, %v181
    %v2634 = vmul.f32 %v2629, %v182
    %v2635 = vmul.f32 %v2628, %v183
    %v2636 = vmul.f32 %v2627, %v184
    %v2637 = vmul.f32 %v2626, %v185
    %v2638 = vmul.f32 %v2625, %v186
    %v2639 = vmul.f32 %v2624, %v187
    %2640 = vst [vmem:[#allocation2 + $0xc0] sm:$0xff] %v2632
    %2641 = vst [vmem:[#allocation2 + $0xc8] sm:$0xff] %v2633
    %2642 = vst [vmem:[#allocation2 + $0xd0] sm:$0xff] %v2634
    %2643 = vst [vmem:[#allocation2 + $0xd8] sm:$0xff] %v2635
    %2644 = vst [vmem:[#allocation2 + $0xe0] sm:$0xff] %v2636
    %2645 = vst [vmem:[#allocation2 + $0xe8] sm:$0xff] %v2637
    %2646 = vst [vmem:[#allocation2 + $0xf0] sm:$0xff] %v2638
    %2647 = vst [vmem:[#allocation2 + $0xf8] sm:$0xff] %v2639
    %2648 = vst [vmem:[#allocation2 + $0x100] sm:$0xff] %v2600
    %2649 = vst [vmem:[#allocation2 + $0x108] sm:$0xff] %v2601
    %2650 = vst [vmem:[#allocation2 + $0x110] sm:$0xff] %v2602
    %2651 = vst [vmem:[#allocation2 + $0x118] sm:$0xff] %v2603
    %2652 = vst [vmem:[#allocation2 + $0x120] sm:$0xff] %v2604
    %2653 = vst [vmem:[#allocation2 + $0x128] sm:$0xff] %v2605
    %2654 = vst [vmem:[#allocation2 + $0x130] sm:$0xff] %v2606
    %2655 = vst [vmem:[#allocation2 + $0x138] sm:$0xff] %v2607
    %2656 = vrot.lane.b32.xlu0 %v2600, 127
    %v2657 = vpop.permute.xlu0 %2656
    %2658 = vrot.lane.b32.xlu0 %v2601, 127
    %v2659 = vpop.permute.xlu0 %2658
    %2660 = vrot.lane.b32.xlu0 %v2602, 127
    %v2661 = vpop.permute.xlu0 %2660
    %2662 = vrot.lane.b32.xlu0 %v2603, 127
    %v2663 = vpop.permute.xlu0 %2662
    %2664 = vrot.lane.b32.xlu0 %v2604, 127
    %v2665 = vpop.permute.xlu0 %2664
    %2666 = vrot.lane.b32.xlu0 %v2605, 127
    %v2667 = vpop.permute.xlu0 %2666
    %2668 = vrot.lane.b32.xlu0 %v2606, 127
    %v2669 = vpop.permute.xlu0 %2668
    %2670 = vrot.lane.b32.xlu0 %v2607, 127
    %v2671 = vpop.permute.xlu0 %2670
    %v2672 = vsel %vm1927, %v2669, %v2671
    %v2673 = vsel %vm1927, %v2667, %v2669
    %v2674 = vsel %vm1927, %v2665, %v2667
    %v2675 = vsel %vm1927, %v2663, %v2665
    %v2676 = vsel %vm1927, %v2661, %v2663
    %v2677 = vsel %vm1927, %v2659, %v2661
    %v2678 = vsel %vm1927, %v2657, %v2659
    %v2679 = vsel %vm1927, %v2671, %v2657
    %v2680 = vmul.f32 %v2678, %v204
    %v2681 = vmul.f32 %v2677, %v205
    %v2682 = vmul.f32 %v2676, %v206
    %v2683 = vmul.f32 %v2675, %v207
    %v2684 = vmul.f32 %v2674, %v208
    %v2685 = vmul.f32 %v2673, %v209
    %v2686 = vmul.f32 %v2672, %v210
    %v2687 = vmul.f32 %v2679, %v211
    %2688 = vst [vmem:[#allocation2 + $0x140] sm:$0xff] %v2680
    %2689 = vst [vmem:[#allocation2 + $0x148] sm:$0xff] %v2681
    %2690 = vst [vmem:[#allocation2 + $0x150] sm:$0xff] %v2682
    %2691 = vst [vmem:[#allocation2 + $0x158] sm:$0xff] %v2683
    %2692 = vst [vmem:[#allocation2 + $0x160] sm:$0xff] %v2684
    %2693 = vst [vmem:[#allocation2 + $0x168] sm:$0xff] %v2685
    %2694 = vst [vmem:[#allocation2 + $0x170] sm:$0xff] %v2686
    %2695 = vst [vmem:[#allocation2 + $0x178] sm:$0xff] %v2687
    %v2696 = vld [vmem:[#allocation2] sm:$0xff]
    %v2697 = vld [vmem:[#allocation2 + $0x8] sm:$0xff]
    %v2698 = vld [vmem:[#allocation2 + $0x10] sm:$0xff]
    %v2699 = vld [vmem:[#allocation2 + $0x18] sm:$0xff]
    %v2700 = vld [vmem:[#allocation2 + $0x20] sm:$0xff]
    %v2701 = vld [vmem:[#allocation2 + $0x28] sm:$0xff]
    %v2702 = vld [vmem:[#allocation2 + $0x30] sm:$0xff]
    %v2703 = vld [vmem:[#allocation2 + $0x38] sm:$0xff]
    %v2704 = vld [vmem:[#allocation2 + $0x40] sm:$0xff]
    %v2705 = vld [vmem:[#allocation2 + $0x48] sm:$0xff]
    %v2706 = vld [vmem:[#allocation2 + $0x50] sm:$0xff]
    %v2707 = vld [vmem:[#allocation2 + $0x58] sm:$0xff]
    %v2708 = vld [vmem:[#allocation2 + $0x60] sm:$0xff]
    %v2709 = vld [vmem:[#allocation2 + $0x68] sm:$0xff]
    %v2710 = vld [vmem:[#allocation2 + $0x70] sm:$0xff]
    %v2711 = vld [vmem:[#allocation2 + $0x78] sm:$0xff]
    %v2712 = vld [vmem:[#allocation2 + $0x80] sm:$0xff]
    %v2713 = vld [vmem:[#allocation2 + $0x88] sm:$0xff]
    %v2714 = vld [vmem:[#allocation2 + $0x90] sm:$0xff]
    %v2715 = vld [vmem:[#allocation2 + $0x98] sm:$0xff]
    %v2716 = vld [vmem:[#allocation2 + $0xa0] sm:$0xff]
    %v2717 = vld [vmem:[#allocation2 + $0xa8] sm:$0xff]
    %v2718 = vld [vmem:[#allocation2 + $0xb0] sm:$0xff]
    %v2719 = vld [vmem:[#allocation2 + $0xb8] sm:$0xff]
    %v2720 = vld [vmem:[#allocation2 + $0xc0] sm:$0xff]
    %v2721 = vld [vmem:[#allocation2 + $0xc8] sm:$0xff]
    %v2722 = vld [vmem:[#allocation2 + $0xd0] sm:$0xff]
    %v2723 = vld [vmem:[#allocation2 + $0xd8] sm:$0xff]
    %v2724 = vld [vmem:[#allocation2 + $0xe0] sm:$0xff]
    %v2725 = vld [vmem:[#allocation2 + $0xe8] sm:$0xff]
    %v2726 = vld [vmem:[#allocation2 + $0xf0] sm:$0xff]
    %v2727 = vld [vmem:[#allocation2 + $0xf8] sm:$0xff]
    %v2728 = vld [vmem:[#allocation2 + $0x100] sm:$0xff]
    %v2729 = vld [vmem:[#allocation2 + $0x108] sm:$0xff]
    %v2730 = vld [vmem:[#allocation2 + $0x110] sm:$0xff]
    %v2731 = vld [vmem:[#allocation2 + $0x118] sm:$0xff]
    %v2732 = vld [vmem:[#allocation2 + $0x120] sm:$0xff]
    %v2733 = vld [vmem:[#allocation2 + $0x128] sm:$0xff]
    %v2734 = vld [vmem:[#allocation2 + $0x130] sm:$0xff]
    %v2735 = vld [vmem:[#allocation2 + $0x138] sm:$0xff]
    %v2736 = vld [vmem:[#allocation2 + $0x140] sm:$0xff]
    %v2737 = vld [vmem:[#allocation2 + $0x148] sm:$0xff]
    %v2738 = vld [vmem:[#allocation2 + $0x150] sm:$0xff]
    %v2739 = vld [vmem:[#allocation2 + $0x158] sm:$0xff]
    %v2740 = vld [vmem:[#allocation2 + $0x160] sm:$0xff]
    %v2741 = vld [vmem:[#allocation2 + $0x168] sm:$0xff]
    %v2742 = vld [vmem:[#allocation2 + $0x170] sm:$0xff]
    %v2743 = vld [vmem:[#allocation2 + $0x178] sm:$0xff]
    %v2744 = vld [vmem:[#allocation15] sm:$0xff]
    %vm2745 = vcmask 392192
    %v2747 = vsel %vm2745, %v2744, 0
    %2749 = vmatprep.subr.mxu0 0.0
    %2750 = vmatpush1.msra.mxu0 0.0
    %2751 = vmatprep.subr.mxu0 0.0
    %2752 = vmatpush1.msra.mxu0 0.0
    %2753 = vmatprep.subr.mxu0 0.0
    %2754 = vmatpush1.msra.mxu0 0.0
    %2755 = vmatprep.subr.mxu0 0.0
    %2756 = vmatpush1.msra.mxu0 0.0
    %2757 = vmatprep.subr.mxu0 0.0
    %2758 = vmatpush1.msra.mxu0 0.0
    %2759 = vmatprep.subr.mxu0 0.0
    %2760 = vmatpush1.msra.mxu0 0.0
    %2761 = vmatprep.subr.mxu0 0.0
    %2762 = vmatpush1.msra.mxu0 0.0
    %2763 = vmatprep.subr.mxu0 0.0
    %2764 = vmatpush1.msra.mxu0 0.0
    %2765 = vmatprep.subr.mxu0 0.0
    %2766 = vmatpush1.msra.mxu0 0.0
    %2767 = vmatprep.subr.mxu0 0.0
    %2768 = vmatpush1.msra.mxu0 0.0
    %2769 = vmatprep.subr.mxu0 %v2737
    %2770 = vmatpush1.msra.mxu0 %v2736
    %2771 = vmatprep.subr.mxu0 %v2729
    %2772 = vmatpush1.msra.mxu0 %v2728
    %2773 = vmatprep.subr.mxu0 %v2721
    %2774 = vmatpush1.msra.mxu0 %v2720
    %2775 = vmatprep.subr.mxu0 %v2713
    %2776 = vmatpush1.msra.mxu0 %v2712
    %2777 = vmatprep.subr.mxu0 %v2705
    %2778 = vmatpush1.msra.mxu0 %v2704
    %2779 = vmatprep.subr.mxu0 %v2697
    %2780 = vmatpush1.msra.mxu0 %v2696
    %2781 = vmatprep.subr.mxu0 0.0
    %2782 = vmatpush2.msra.mxu0 0.0
    %2783 = vmatprep.subr.mxu0 0.0
    %2784 = vmatpush2.msra.mxu0 0.0
    %2785 = vmatprep.subr.mxu0 0.0
    %2786 = vmatpush2.msra.mxu0 0.0
    %2787 = vmatprep.subr.mxu0 0.0
    %2788 = vmatpush2.msra.mxu0 0.0
    %2789 = vmatprep.subr.mxu0 0.0
    %2790 = vmatpush2.msra.mxu0 0.0
    %2791 = vmatprep.subr.mxu0 0.0
    %2792 = vmatpush2.msra.mxu0 0.0
    %2793 = vmatprep.subr.mxu0 0.0
    %2794 = vmatpush2.msra.mxu0 0.0
    %2795 = vmatprep.subr.mxu0 0.0
    %2796 = vmatpush2.msra.mxu0 0.0
    %2797 = vmatprep.subr.mxu0 0.0
    %2798 = vmatpush2.msra.mxu0 0.0
    %2799 = vmatprep.subr.mxu0 0.0
    %2800 = vmatpush2.msra.mxu0 0.0
    %2801 = vmatprep.subr.mxu0 0.0
    %2802 = vmatpush2.msra.mxu0 0.0
    %2803 = vmatprep.subr.mxu0 0.0
    %2804 = vmatpush2.msra.mxu0 0.0
    %2805 = vmatprep.subr.mxu0 0.0
    %2806 = vmatpush2.msra.mxu0 0.0
    %2807 = vmatprep.subr.mxu0 0.0
    %2808 = vmatpush2.msra.mxu0 0.0
    %2809 = vmatprep.subr.mxu0 0.0
    %2810 = vmatpush2.msra.mxu0 0.0
    %2811 = vmatprep.subr.mxu0 0.0
    %2812 = vmatpush2.msra.mxu0 0.0
    %2813 = vmatprep.mubr.f32.mxu0 0.0
    %2814 = vmatmul.mubr.f32.gmra.mxu0 %v2747
    %v2815 = vpop.f32.mrf.mxu0
    %v2816 = vadd.f32 0.0, %v2815
    %v2817 = vpop.f32.mrf.mxu0
    %v2818 = vadd.f32 0.0, %v2817
    %2819 = vdwg.mxu0
    %2820 = vmatprep.subr.mxu0 0.0
    %2821 = vmatpush1.msra.mxu0 0.0
    %2822 = vmatprep.subr.mxu0 0.0
    %2823 = vmatpush1.msra.mxu0 0.0
    %2824 = vmatprep.subr.mxu0 0.0
    %2825 = vmatpush1.msra.mxu0 0.0
    %2826 = vmatprep.subr.mxu0 0.0
    %2827 = vmatpush1.msra.mxu0 0.0
    %2828 = vmatprep.subr.mxu0 0.0
    %2829 = vmatpush1.msra.mxu0 0.0
    %2830 = vmatprep.subr.mxu0 0.0
    %2831 = vmatpush1.msra.mxu0 0.0
    %2832 = vmatprep.subr.mxu0 0.0
    %2833 = vmatpush1.msra.mxu0 0.0
    %2834 = vmatprep.subr.mxu0 0.0
    %2835 = vmatpush1.msra.mxu0 0.0
    %2836 = vmatprep.subr.mxu0 0.0
    %2837 = vmatpush1.msra.mxu0 0.0
    %2838 = vmatprep.subr.mxu0 0.0
    %2839 = vmatpush1.msra.mxu0 0.0
    %2840 = vmatprep.subr.mxu0 %v2739
    %2841 = vmatpush1.msra.mxu0 %v2738
    %2842 = vmatprep.subr.mxu0 %v2731
    %2843 = vmatpush1.msra.mxu0 %v2730
    %2844 = vmatprep.subr.mxu0 %v2723
    %2845 = vmatpush1.msra.mxu0 %v2722
    %2846 = vmatprep.subr.mxu0 %v2715
    %2847 = vmatpush1.msra.mxu0 %v2714
    %2848 = vmatprep.subr.mxu0 %v2707
    %2849 = vmatpush1.msra.mxu0 %v2706
    %2850 = vmatprep.subr.mxu0 %v2699
    %2851 = vmatpush1.msra.mxu0 %v2698
    %2852 = vmatprep.subr.mxu0 0.0
    %2853 = vmatpush2.msra.mxu0 0.0
    %2854 = vmatprep.subr.mxu0 0.0
    %2855 = vmatpush2.msra.mxu0 0.0
    %2856 = vmatprep.subr.mxu0 0.0
    %2857 = vmatpush2.msra.mxu0 0.0
    %2858 = vmatprep.subr.mxu0 0.0
    %2859 = vmatpush2.msra.mxu0 0.0
    %2860 = vmatprep.subr.mxu0 0.0
    %2861 = vmatpush2.msra.mxu0 0.0
    %2862 = vmatprep.subr.mxu0 0.0
    %2863 = vmatpush2.msra.mxu0 0.0
    %2864 = vmatprep.subr.mxu0 0.0
    %2865 = vmatpush2.msra.mxu0 0.0
    %2866 = vmatprep.subr.mxu0 0.0
    %2867 = vmatpush2.msra.mxu0 0.0
    %2868 = vmatprep.subr.mxu0 0.0
    %2869 = vmatpush2.msra.mxu0 0.0
    %2870 = vmatprep.subr.mxu0 0.0
    %2871 = vmatpush2.msra.mxu0 0.0
    %2872 = vmatprep.subr.mxu0 0.0
    %2873 = vmatpush2.msra.mxu0 0.0
    %2874 = vmatprep.subr.mxu0 0.0
    %2875 = vmatpush2.msra.mxu0 0.0
    %2876 = vmatprep.subr.mxu0 0.0
    %2877 = vmatpush2.msra.mxu0 0.0
    %2878 = vmatprep.subr.mxu0 0.0
    %2879 = vmatpush2.msra.mxu0 0.0
    %2880 = vmatprep.subr.mxu0 0.0
    %2881 = vmatpush2.msra.mxu0 0.0
    %2882 = vmatprep.subr.mxu0 0.0
    %2883 = vmatpush2.msra.mxu0 0.0
    %2884 = vmatprep.mubr.f32.mxu0 0.0
    %2885 = vmatmul.mubr.f32.gmra.mxu0 %v2747
    %v2886 = vpop.f32.mrf.mxu0
    %v2887 = vadd.f32 0.0, %v2886
    %v2888 = vpop.f32.mrf.mxu0
    %v2889 = vadd.f32 0.0, %v2888
    %2890 = vdwg.mxu0
    %2891 = vmatprep.subr.mxu0 0.0
    %2892 = vmatpush1.msra.mxu0 0.0
    %2893 = vmatprep.subr.mxu0 0.0
    %2894 = vmatpush1.msra.mxu0 0.0
    %2895 = vmatprep.subr.mxu0 0.0
    %2896 = vmatpush1.msra.mxu0 0.0
    %2897 = vmatprep.subr.mxu0 0.0
    %2898 = vmatpush1.msra.mxu0 0.0
    %2899 = vmatprep.subr.mxu0 0.0
    %2900 = vmatpush1.msra.mxu0 0.0
    %2901 = vmatprep.subr.mxu0 0.0
    %2902 = vmatpush1.msra.mxu0 0.0
    %2903 = vmatprep.subr.mxu0 0.0
    %2904 = vmatpush1.msra.mxu0 0.0
    %2905 = vmatprep.subr.mxu0 0.0
    %2906 = vmatpush1.msra.mxu0 0.0
    %2907 = vmatprep.subr.mxu0 0.0
    %2908 = vmatpush1.msra.mxu0 0.0
    %2909 = vmatprep.subr.mxu0 0.0
    %2910 = vmatpush1.msra.mxu0 0.0
    %2911 = vmatprep.subr.mxu0 %v2741
    %2912 = vmatpush1.msra.mxu0 %v2740
    %2913 = vmatprep.subr.mxu0 %v2733
    %2914 = vmatpush1.msra.mxu0 %v2732
    %2915 = vmatprep.subr.mxu0 %v2725
    %2916 = vmatpush1.msra.mxu0 %v2724
    %2917 = vmatprep.subr.mxu0 %v2717
    %2918 = vmatpush1.msra.mxu0 %v2716
    %2919 = vmatprep.subr.mxu0 %v2709
    %2920 = vmatpush1.msra.mxu0 %v2708
    %2921 = vmatprep.subr.mxu0 %v2701
    %2922 = vmatpush1.msra.mxu0 %v2700
    %2923 = vmatprep.subr.mxu0 0.0
    %2924 = vmatpush2.msra.mxu0 0.0
    %2925 = vmatprep.subr.mxu0 0.0
    %2926 = vmatpush2.msra.mxu0 0.0
    %2927 = vmatprep.subr.mxu0 0.0
    %2928 = vmatpush2.msra.mxu0 0.0
    %2929 = vmatprep.subr.mxu0 0.0
    %2930 = vmatpush2.msra.mxu0 0.0
    %2931 = vmatprep.subr.mxu0 0.0
    %2932 = vmatpush2.msra.mxu0 0.0
    %2933 = vmatprep.subr.mxu0 0.0
    %2934 = vmatpush2.msra.mxu0 0.0
    %2935 = vmatprep.subr.mxu0 0.0
    %2936 = vmatpush2.msra.mxu0 0.0
    %2937 = vmatprep.subr.mxu0 0.0
    %2938 = vmatpush2.msra.mxu0 0.0
    %2939 = vmatprep.subr.mxu0 0.0
    %2940 = vmatpush2.msra.mxu0 0.0
    %2941 = vmatprep.subr.mxu0 0.0
    %2942 = vmatpush2.msra.mxu0 0.0
    %2943 = vmatprep.subr.mxu0 0.0
    %2944 = vmatpush2.msra.mxu0 0.0
    %2945 = vmatprep.subr.mxu0 0.0
    %2946 = vmatpush2.msra.mxu0 0.0
    %2947 = vmatprep.subr.mxu0 0.0
    %2948 = vmatpush2.msra.mxu0 0.0
    %2949 = vmatprep.subr.mxu0 0.0
    %2950 = vmatpush2.msra.mxu0 0.0
    %2951 = vmatprep.subr.mxu0 0.0
    %2952 = vmatpush2.msra.mxu0 0.0
    %2953 = vmatprep.subr.mxu0 0.0
    %2954 = vmatpush2.msra.mxu0 0.0
    %2955 = vmatprep.mubr.f32.mxu0 0.0
    %2956 = vmatmul.mubr.f32.gmra.mxu0 %v2747
    %v2957 = vpop.f32.mrf.mxu0
    %v2958 = vadd.f32 0.0, %v2957
    %v2959 = vpop.f32.mrf.mxu0
    %v2960 = vadd.f32 0.0, %v2959
    %2961 = vdwg.mxu0
    %2962 = vmatprep.subr.mxu0 0.0
    %2963 = vmatpush1.msra.mxu0 0.0
    %2964 = vmatprep.subr.mxu0 0.0
    %2965 = vmatpush1.msra.mxu0 0.0
    %2966 = vmatprep.subr.mxu0 0.0
    %2967 = vmatpush1.msra.mxu0 0.0
    %2968 = vmatprep.subr.mxu0 0.0
    %2969 = vmatpush1.msra.mxu0 0.0
    %2970 = vmatprep.subr.mxu0 0.0
    %2971 = vmatpush1.msra.mxu0 0.0
    %2972 = vmatprep.subr.mxu0 0.0
    %2973 = vmatpush1.msra.mxu0 0.0
    %2974 = vmatprep.subr.mxu0 0.0
    %2975 = vmatpush1.msra.mxu0 0.0
    %2976 = vmatprep.subr.mxu0 0.0
    %2977 = vmatpush1.msra.mxu0 0.0
    %2978 = vmatprep.subr.mxu0 0.0
    %2979 = vmatpush1.msra.mxu0 0.0
    %2980 = vmatprep.subr.mxu0 0.0
    %2981 = vmatpush1.msra.mxu0 0.0
    %2982 = vmatprep.subr.mxu0 %v2743
    %2983 = vmatpush1.msra.mxu0 %v2742
    %2984 = vmatprep.subr.mxu0 %v2735
    %2985 = vmatpush1.msra.mxu0 %v2734
    %2986 = vmatprep.subr.mxu0 %v2727
    %2987 = vmatpush1.msra.mxu0 %v2726
    %2988 = vmatprep.subr.mxu0 %v2719
    %2989 = vmatpush1.msra.mxu0 %v2718
    %2990 = vmatprep.subr.mxu0 %v2711
    %2991 = vmatpush1.msra.mxu0 %v2710
    %2992 = vmatprep.subr.mxu0 %v2703
    %2993 = vmatpush1.msra.mxu0 %v2702
    %2994 = vmatprep.subr.mxu0 0.0
    %2995 = vmatpush2.msra.mxu0 0.0
    %2996 = vmatprep.subr.mxu0 0.0
    %2997 = vmatpush2.msra.mxu0 0.0
    %2998 = vmatprep.subr.mxu0 0.0
    %2999 = vmatpush2.msra.mxu0 0.0
    %3000 = vmatprep.subr.mxu0 0.0
    %3001 = vmatpush2.msra.mxu0 0.0
    %3002 = vmatprep.subr.mxu0 0.0
    %3003 = vmatpush2.msra.mxu0 0.0
    %3004 = vmatprep.subr.mxu0 0.0
    %3005 = vmatpush2.msra.mxu0 0.0
    %3006 = vmatprep.subr.mxu0 0.0
    %3007 = vmatpush2.msra.mxu0 0.0
    %3008 = vmatprep.subr.mxu0 0.0
    %3009 = vmatpush2.msra.mxu0 0.0
    %3010 = vmatprep.subr.mxu0 0.0
    %3011 = vmatpush2.msra.mxu0 0.0
    %3012 = vmatprep.subr.mxu0 0.0
    %3013 = vmatpush2.msra.mxu0 0.0
    %3014 = vmatprep.subr.mxu0 0.0
    %3015 = vmatpush2.msra.mxu0 0.0
    %3016 = vmatprep.subr.mxu0 0.0
    %3017 = vmatpush2.msra.mxu0 0.0
    %3018 = vmatprep.subr.mxu0 0.0
    %3019 = vmatpush2.msra.mxu0 0.0
    %3020 = vmatprep.subr.mxu0 0.0
    %3021 = vmatpush2.msra.mxu0 0.0
    %3022 = vmatprep.subr.mxu0 0.0
    %3023 = vmatpush2.msra.mxu0 0.0
    %3024 = vmatprep.subr.mxu0 0.0
    %3025 = vmatpush2.msra.mxu0 0.0
    %3026 = vmatprep.mubr.f32.mxu0 0.0
    %3027 = vmatmul.mubr.f32.gmra.mxu0 %v2747
    %v3028 = vpop.f32.mrf.mxu0
    %v3029 = vadd.f32 0.0, %v3028
    %v3030 = vpop.f32.mrf.mxu0
    %v3031 = vadd.f32 0.0, %v3030
    %3032 = vdwg.mxu0
    %v3033 = vadd.f32 %v2816, %v2818
    %v3034 = vadd.f32 %v3033, %v2887
    %v3035 = vadd.f32 %v3034, %v2889
    %v3036 = vadd.f32 %v3035, %v2958
    %v3037 = vadd.f32 %v3036, %v2960
    %v3038 = vadd.f32 %v3037, %v3029
    %v3039 = vadd.f32 %v3038, %v3031
    %3040 = vadd.xlane.f32.xlu0 %v3039
    %v3041 = vpop.xlane.xlu0 %3040
    %v3042 = vmul.f32 %v3041, %v2103
    %v3043 = vmul.f32 %v2816, %v2816
    %v3044 = vmul.f32 %v2818, %v2818
    %v3045 = vmul.f32 %v2887, %v2887
    %v3046 = vmul.f32 %v2889, %v2889
    %v3047 = vmul.f32 %v2958, %v2958
    %v3048 = vmul.f32 %v2960, %v2960
    %v3049 = vmul.f32 %v3029, %v3029
    %v3050 = vmul.f32 %v3031, %v3031
    %v3051 = vadd.f32 %v3043, %v3044
    %v3052 = vadd.f32 %v3051, %v3045
    %v3053 = vadd.f32 %v3052, %v3046
    %v3054 = vadd.f32 %v3053, %v3047
    %v3055 = vadd.f32 %v3054, %v3048
    %v3056 = vadd.f32 %v3055, %v3049
    %v3057 = vadd.f32 %v3056, %v3050
    %3058 = vadd.xlane.f32.xlu0 %v3057
    %v3059 = vpop.xlane.xlu0 %3058
    %v3060 = vmul.f32 %v3059, %v2103
    %v3061 = vmul.f32 %v3042, %v3042
    %v3062 = vsub.f32 %v3060, %v3061
    %v3063 = vsub.f32 %v2816, %v3042
    %v3064 = vsub.f32 %v2818, %v3042
    %v3065 = vsub.f32 %v2887, %v3042
    %v3066 = vsub.f32 %v2889, %v3042
    %v3067 = vsub.f32 %v2958, %v3042
    %v3068 = vsub.f32 %v2960, %v3042
    %v3069 = vsub.f32 %v3029, %v3042
    %v3070 = vsub.f32 %v3031, %v3042
    %v3071 = vadd.f32 %v3062, 1e-05
    %v3072 = vrsqrt.pop %v3071
    %v3073 = vmul.f32 %v3063, %v3072
    %v3074 = vmul.f32 %v3064, %v3072
    %v3075 = vmul.f32 %v3065, %v3072
    %v3076 = vmul.f32 %v3066, %v3072
    %v3077 = vmul.f32 %v3067, %v3072
    %v3078 = vmul.f32 %v3068, %v3072
    %v3079 = vmul.f32 %v3069, %v3072
    %v3080 = vmul.f32 %v3070, %v3072
    %v3081 = vmax.f32 %v3073, 0.0
    %v3082 = vmax.f32 %v3074, 0.0
    %v3083 = vmax.f32 %v3075, 0.0
    %v3084 = vmax.f32 %v3076, 0.0
    %v3085 = vmax.f32 %v3077, 0.0
    %v3086 = vmax.f32 %v3078, 0.0
    %v3087 = vmax.f32 %v3079, 0.0
    %v3088 = vmax.f32 %v3080, 0.0
    %3089 = vrot.lane.b32.xlu0 %v3081, 1
    %v3090 = vpop.permute.xlu0 %3089
    %3091 = vrot.lane.b32.xlu0 %v3082, 1
    %v3092 = vpop.permute.xlu0 %3091
    %3093 = vrot.lane.b32.xlu0 %v3083, 1
    %v3094 = vpop.permute.xlu0 %3093
    %3095 = vrot.lane.b32.xlu0 %v3084, 1
    %v3096 = vpop.permute.xlu0 %3095
    %3097 = vrot.lane.b32.xlu0 %v3085, 1
    %v3098 = vpop.permute.xlu0 %3097
    %3099 = vrot.lane.b32.xlu0 %v3086, 1
    %v3100 = vpop.permute.xlu0 %3099
    %3101 = vrot.lane.b32.xlu0 %v3087, 1
    %v3102 = vpop.permute.xlu0 %3101
    %3103 = vrot.lane.b32.xlu0 %v3088, 1
    %v3104 = vpop.permute.xlu0 %3103
    %v3105 = vsel %vm1894, %v3102, %v3104
    %v3106 = vsel %vm1894, %v3100, %v3102
    %v3107 = vsel %vm1894, %v3098, %v3100
    %v3108 = vsel %vm1894, %v3096, %v3098
    %v3109 = vsel %vm1894, %v3094, %v3096
    %v3110 = vsel %vm1894, %v3092, %v3094
    %v3111 = vsel %vm1894, %v3090, %v3092
    %v3112 = vsel %vm1894, %v3104, %v3090
    %v3113 = vmul.f32 %v3112, %v180
    %v3114 = vmul.f32 %v3111, %v181
    %v3115 = vmul.f32 %v3110, %v182
    %v3116 = vmul.f32 %v3109, %v183
    %v3117 = vmul.f32 %v3108, %v184
    %v3118 = vmul.f32 %v3107, %v185
    %v3119 = vmul.f32 %v3106, %v186
    %v3120 = vmul.f32 %v3105, %v187
    %3121 = vst [vmem:[#allocation2 + $0x180] sm:$0xff] %v3113
    %3122 = vst [vmem:[#allocation2 + $0x188] sm:$0xff] %v3114
    %3123 = vst [vmem:[#allocation2 + $0x190] sm:$0xff] %v3115
    %3124 = vst [vmem:[#allocation2 + $0x198] sm:$0xff] %v3116
    %3125 = vst [vmem:[#allocation2 + $0x1a0] sm:$0xff] %v3117
    %3126 = vst [vmem:[#allocation2 + $0x1a8] sm:$0xff] %v3118
    %3127 = vst [vmem:[#allocation2 + $0x1b0] sm:$0xff] %v3119
    %3128 = vst [vmem:[#allocation2 + $0x1b8] sm:$0xff] %v3120
    %3129 = vst [vmem:[#allocation2 + $0x1c0] sm:$0xff] %v3081
    %3130 = vst [vmem:[#allocation2 + $0x1c8] sm:$0xff] %v3082
    %3131 = vst [vmem:[#allocation2 + $0x1d0] sm:$0xff] %v3083
    %3132 = vst [vmem:[#allocation2 + $0x1d8] sm:$0xff] %v3084
    %3133 = vst [vmem:[#allocation2 + $0x1e0] sm:$0xff] %v3085
    %3134 = vst [vmem:[#allocation2 + $0x1e8] sm:$0xff] %v3086
    %3135 = vst [vmem:[#allocation2 + $0x1f0] sm:$0xff] %v3087
    %3136 = vst [vmem:[#allocation2 + $0x1f8] sm:$0xff] %v3088
    %3137 = vrot.lane.b32.xlu0 %v3081, 127
    %v3138 = vpop.permute.xlu0 %3137
    %3139 = vrot.lane.b32.xlu0 %v3082, 127
    %v3140 = vpop.permute.xlu0 %3139
    %3141 = vrot.lane.b32.xlu0 %v3083, 127
    %v3142 = vpop.permute.xlu0 %3141
    %3143 = vrot.lane.b32.xlu0 %v3084, 127
    %v3144 = vpop.permute.xlu0 %3143
    %3145 = vrot.lane.b32.xlu0 %v3085, 127
    %v3146 = vpop.permute.xlu0 %3145
    %3147 = vrot.lane.b32.xlu0 %v3086, 127
    %v3148 = vpop.permute.xlu0 %3147
    %3149 = vrot.lane.b32.xlu0 %v3087, 127
    %v3150 = vpop.permute.xlu0 %3149
    %3151 = vrot.lane.b32.xlu0 %v3088, 127
    %v3152 = vpop.permute.xlu0 %3151
    %v3153 = vsel %vm1927, %v3150, %v3152
    %v3154 = vsel %vm1927, %v3148, %v3150
    %v3155 = vsel %vm1927, %v3146, %v3148
    %v3156 = vsel %vm1927, %v3144, %v3146
    %v3157 = vsel %vm1927, %v3142, %v3144
    %v3158 = vsel %vm1927, %v3140, %v3142
    %v3159 = vsel %vm1927, %v3138, %v3140
    %v3160 = vsel %vm1927, %v3152, %v3138
    %v3161 = vmul.f32 %v3159, %v204
    %v3162 = vmul.f32 %v3158, %v205
    %v3163 = vmul.f32 %v3157, %v206
    %v3164 = vmul.f32 %v3156, %v207
    %v3165 = vmul.f32 %v3155, %v208
    %v3166 = vmul.f32 %v3154, %v209
    %v3167 = vmul.f32 %v3153, %v210
    %v3168 = vmul.f32 %v3160, %v211
    %3169 = vst [vmem:[#allocation2 + $0x200] sm:$0xff] %v3161
    %3170 = vst [vmem:[#allocation2 + $0x208] sm:$0xff] %v3162
    %3171 = vst [vmem:[#allocation2 + $0x210] sm:$0xff] %v3163
    %3172 = vst [vmem:[#allocation2 + $0x218] sm:$0xff] %v3164
    %3173 = vst [vmem:[#allocation2 + $0x220] sm:$0xff] %v3165
    %3174 = vst [vmem:[#allocation2 + $0x228] sm:$0xff] %v3166
    %3175 = vst [vmem:[#allocation2 + $0x230] sm:$0xff] %v3167
    %3176 = vst [vmem:[#allocation2 + $0x238] sm:$0xff] %v3168
    %v3177 = vld [vmem:[#allocation2] sm:$0xff]
    %v3178 = vld [vmem:[#allocation2 + $0x8] sm:$0xff]
    %v3179 = vld [vmem:[#allocation2 + $0x10] sm:$0xff]
    %v3180 = vld [vmem:[#allocation2 + $0x18] sm:$0xff]
    %v3181 = vld [vmem:[#allocation2 + $0x20] sm:$0xff]
    %v3182 = vld [vmem:[#allocation2 + $0x28] sm:$0xff]
    %v3183 = vld [vmem:[#allocation2 + $0x30] sm:$0xff]
    %v3184 = vld [vmem:[#allocation2 + $0x38] sm:$0xff]
    %v3185 = vld [vmem:[#allocation2 + $0x40] sm:$0xff]
    %v3186 = vld [vmem:[#allocation2 + $0x48] sm:$0xff]
    %v3187 = vld [vmem:[#allocation2 + $0x50] sm:$0xff]
    %v3188 = vld [vmem:[#allocation2 + $0x58] sm:$0xff]
    %v3189 = vld [vmem:[#allocation2 + $0x60] sm:$0xff]
    %v3190 = vld [vmem:[#allocation2 + $0x68] sm:$0xff]
    %v3191 = vld [vmem:[#allocation2 + $0x70] sm:$0xff]
    %v3192 = vld [vmem:[#allocation2 + $0x78] sm:$0xff]
    %v3193 = vld [vmem:[#allocation2 + $0x80] sm:$0xff]
    %v3194 = vld [vmem:[#allocation2 + $0x88] sm:$0xff]
    %v3195 = vld [vmem:[#allocation2 + $0x90] sm:$0xff]
    %v3196 = vld [vmem:[#allocation2 + $0x98] sm:$0xff]
    %v3197 = vld [vmem:[#allocation2 + $0xa0] sm:$0xff]
    %v3198 = vld [vmem:[#allocation2 + $0xa8] sm:$0xff]
    %v3199 = vld [vmem:[#allocation2 + $0xb0] sm:$0xff]
    %v3200 = vld [vmem:[#allocation2 + $0xb8] sm:$0xff]
    %v3201 = vld [vmem:[#allocation2 + $0xc0] sm:$0xff]
    %v3202 = vld [vmem:[#allocation2 + $0xc8] sm:$0xff]
    %v3203 = vld [vmem:[#allocation2 + $0xd0] sm:$0xff]
    %v3204 = vld [vmem:[#allocation2 + $0xd8] sm:$0xff]
    %v3205 = vld [vmem:[#allocation2 + $0xe0] sm:$0xff]
    %v3206 = vld [vmem:[#allocation2 + $0xe8] sm:$0xff]
    %v3207 = vld [vmem:[#allocation2 + $0xf0] sm:$0xff]
    %v3208 = vld [vmem:[#allocation2 + $0xf8] sm:$0xff]
    %v3209 = vld [vmem:[#allocation2 + $0x100] sm:$0xff]
    %v3210 = vld [vmem:[#allocation2 + $0x108] sm:$0xff]
    %v3211 = vld [vmem:[#allocation2 + $0x110] sm:$0xff]
    %v3212 = vld [vmem:[#allocation2 + $0x118] sm:$0xff]
    %v3213 = vld [vmem:[#allocation2 + $0x120] sm:$0xff]
    %v3214 = vld [vmem:[#allocation2 + $0x128] sm:$0xff]
    %v3215 = vld [vmem:[#allocation2 + $0x130] sm:$0xff]
    %v3216 = vld [vmem:[#allocation2 + $0x138] sm:$0xff]
    %v3217 = vld [vmem:[#allocation2 + $0x140] sm:$0xff]
    %v3218 = vld [vmem:[#allocation2 + $0x148] sm:$0xff]
    %v3219 = vld [vmem:[#allocation2 + $0x150] sm:$0xff]
    %v3220 = vld [vmem:[#allocation2 + $0x158] sm:$0xff]
    %v3221 = vld [vmem:[#allocation2 + $0x160] sm:$0xff]
    %v3222 = vld [vmem:[#allocation2 + $0x168] sm:$0xff]
    %v3223 = vld [vmem:[#allocation2 + $0x170] sm:$0xff]
    %v3224 = vld [vmem:[#allocation2 + $0x178] sm:$0xff]
    %v3225 = vld [vmem:[#allocation2 + $0x180] sm:$0xff]
    %v3226 = vld [vmem:[#allocation2 + $0x188] sm:$0xff]
    %v3227 = vld [vmem:[#allocation2 + $0x190] sm:$0xff]
    %v3228 = vld [vmem:[#allocation2 + $0x198] sm:$0xff]
    %v3229 = vld [vmem:[#allocation2 + $0x1a0] sm:$0xff]
    %v3230 = vld [vmem:[#allocation2 + $0x1a8] sm:$0xff]
    %v3231 = vld [vmem:[#allocation2 + $0x1b0] sm:$0xff]
    %v3232 = vld [vmem:[#allocation2 + $0x1b8] sm:$0xff]
    %v3233 = vld [vmem:[#allocation2 + $0x1c0] sm:$0xff]
    %v3234 = vld [vmem:[#allocation2 + $0x1c8] sm:$0xff]
    %v3235 = vld [vmem:[#allocation2 + $0x1d0] sm:$0xff]
    %v3236 = vld [vmem:[#allocation2 + $0x1d8] sm:$0xff]
    %v3237 = vld [vmem:[#allocation2 + $0x1e0] sm:$0xff]
    %v3238 = vld [vmem:[#allocation2 + $0x1e8] sm:$0xff]
    %v3239 = vld [vmem:[#allocation2 + $0x1f0] sm:$0xff]
    %v3240 = vld [vmem:[#allocation2 + $0x1f8] sm:$0xff]
    %v3241 = vld [vmem:[#allocation2 + $0x200] sm:$0xff]
    %v3242 = vld [vmem:[#allocation2 + $0x208] sm:$0xff]
    %v3243 = vld [vmem:[#allocation2 + $0x210] sm:$0xff]
    %v3244 = vld [vmem:[#allocation2 + $0x218] sm:$0xff]
    %v3245 = vld [vmem:[#allocation2 + $0x220] sm:$0xff]
    %v3246 = vld [vmem:[#allocation2 + $0x228] sm:$0xff]
    %v3247 = vld [vmem:[#allocation2 + $0x230] sm:$0xff]
    %v3248 = vld [vmem:[#allocation2 + $0x238] sm:$0xff]
    %v3249 = vld [vmem:[#allocation17] sm:$0xff]
    %vm3250 = vcmask 588800
    %v3252 = vsel %vm3250, %v3249, 0
    %3254 = vmatprep.subr.mxu0 0.0
    %3255 = vmatpush1.msra.mxu0 0.0
    %3256 = vmatprep.subr.mxu0 0.0
    %3257 = vmatpush1.msra.mxu0 0.0
    %3258 = vmatprep.subr.mxu0 0.0
    %3259 = vmatpush1.msra.mxu0 0.0
    %3260 = vmatprep.subr.mxu0 0.0
    %3261 = vmatpush1.msra.mxu0 0.0
    %3262 = vmatprep.subr.mxu0 0.0
    %3263 = vmatpush1.msra.mxu0 0.0
    %3264 = vmatprep.subr.mxu0 0.0
    %3265 = vmatpush1.msra.mxu0 0.0
    %3266 = vmatprep.subr.mxu0 0.0
    %3267 = vmatpush1.msra.mxu0 0.0
    %3268 = vmatprep.subr.mxu0 %v3242
    %3269 = vmatpush1.msra.mxu0 %v3241
    %3270 = vmatprep.subr.mxu0 %v3234
    %3271 = vmatpush1.msra.mxu0 %v3233
    %3272 = vmatprep.subr.mxu0 %v3226
    %3273 = vmatpush1.msra.mxu0 %v3225
    %3274 = vmatprep.subr.mxu0 %v3218
    %3275 = vmatpush1.msra.mxu0 %v3217
    %3276 = vmatprep.subr.mxu0 %v3210
    %3277 = vmatpush1.msra.mxu0 %v3209
    %3278 = vmatprep.subr.mxu0 %v3202
    %3279 = vmatpush1.msra.mxu0 %v3201
    %3280 = vmatprep.subr.mxu0 %v3194
    %3281 = vmatpush1.msra.mxu0 %v3193
    %3282 = vmatprep.subr.mxu0 %v3186
    %3283 = vmatpush1.msra.mxu0 %v3185
    %3284 = vmatprep.subr.mxu0 %v3178
    %3285 = vmatpush1.msra.mxu0 %v3177
    %3286 = vmatprep.subr.mxu0 0.0
    %3287 = vmatpush2.msra.mxu0 0.0
    %3288 = vmatprep.subr.mxu0 0.0
    %3289 = vmatpush2.msra.mxu0 0.0
    %3290 = vmatprep.subr.mxu0 0.0
    %3291 = vmatpush2.msra.mxu0 0.0
    %3292 = vmatprep.subr.mxu0 0.0
    %3293 = vmatpush2.msra.mxu0 0.0
    %3294 = vmatprep.subr.mxu0 0.0
    %3295 = vmatpush2.msra.mxu0 0.0
    %3296 = vmatprep.subr.mxu0 0.0
    %3297 = vmatpush2.msra.mxu0 0.0
    %3298 = vmatprep.subr.mxu0 0.0
    %3299 = vmatpush2.msra.mxu0 0.0
    %3300 = vmatprep.subr.mxu0 0.0
    %3301 = vmatpush2.msra.mxu0 0.0
    %3302 = vmatprep.subr.mxu0 0.0
    %3303 = vmatpush2.msra.mxu0 0.0
    %3304 = vmatprep.subr.mxu0 0.0
    %3305 = vmatpush2.msra.mxu0 0.0
    %3306 = vmatprep.subr.mxu0 0.0
    %3307 = vmatpush2.msra.mxu0 0.0
    %3308 = vmatprep.subr.mxu0 0.0
    %3309 = vmatpush2.msra.mxu0 0.0
    %3310 = vmatprep.subr.mxu0 0.0
    %3311 = vmatpush2.msra.mxu0 0.0
    %3312 = vmatprep.subr.mxu0 0.0
    %3313 = vmatpush2.msra.mxu0 0.0
    %3314 = vmatprep.subr.mxu0 0.0
    %3315 = vmatpush2.msra.mxu0 0.0
    %3316 = vmatprep.subr.mxu0 0.0
    %3317 = vmatpush2.msra.mxu0 0.0
    %3318 = vmatprep.mubr.f32.mxu0 0.0
    %3319 = vmatmul.mubr.f32.gmra.mxu0 %v3252
    %v3320 = vpop.f32.mrf.mxu0
    %v3321 = vadd.f32 0.0, %v3320
    %v3322 = vpop.f32.mrf.mxu0
    %v3323 = vadd.f32 0.0, %v3322
    %3324 = vdwg.mxu0
    %3325 = vmatprep.subr.mxu0 0.0
    %3326 = vmatpush1.msra.mxu0 0.0
    %3327 = vmatprep.subr.mxu0 0.0
    %3328 = vmatpush1.msra.mxu0 0.0
    %3329 = vmatprep.subr.mxu0 0.0
    %3330 = vmatpush1.msra.mxu0 0.0
    %3331 = vmatprep.subr.mxu0 0.0
    %3332 = vmatpush1.msra.mxu0 0.0
    %3333 = vmatprep.subr.mxu0 0.0
    %3334 = vmatpush1.msra.mxu0 0.0
    %3335 = vmatprep.subr.mxu0 0.0
    %3336 = vmatpush1.msra.mxu0 0.0
    %3337 = vmatprep.subr.mxu0 0.0
    %3338 = vmatpush1.msra.mxu0 0.0
    %3339 = vmatprep.subr.mxu0 %v3244
    %3340 = vmatpush1.msra.mxu0 %v3243
    %3341 = vmatprep.subr.mxu0 %v3236
    %3342 = vmatpush1.msra.mxu0 %v3235
    %3343 = vmatprep.subr.mxu0 %v3228
    %3344 = vmatpush1.msra.mxu0 %v3227
    %3345 = vmatprep.subr.mxu0 %v3220
    %3346 = vmatpush1.msra.mxu0 %v3219
    %3347 = vmatprep.subr.mxu0 %v3212
    %3348 = vmatpush1.msra.mxu0 %v3211
    %3349 = vmatprep.subr.mxu0 %v3204
    %3350 = vmatpush1.msra.mxu0 %v3203
    %3351 = vmatprep.subr.mxu0 %v3196
    %3352 = vmatpush1.msra.mxu0 %v3195
    %3353 = vmatprep.subr.mxu0 %v3188
    %3354 = vmatpush1.msra.mxu0 %v3187
    %3355 = vmatprep.subr.mxu0 %v3180
    %3356 = vmatpush1.msra.mxu0 %v3179
    %3357 = vmatprep.subr.mxu0 0.0
    %3358 = vmatpush2.msra.mxu0 0.0
    %3359 = vmatprep.subr.mxu0 0.0
    %3360 = vmatpush2.msra.mxu0 0.0
    %3361 = vmatprep.subr.mxu0 0.0
    %3362 = vmatpush2.msra.mxu0 0.0
    %3363 = vmatprep.subr.mxu0 0.0
    %3364 = vmatpush2.msra.mxu0 0.0
    %3365 = vmatprep.subr.mxu0 0.0
    %3366 = vmatpush2.msra.mxu0 0.0
    %3367 = vmatprep.subr.mxu0 0.0
    %3368 = vmatpush2.msra.mxu0 0.0
    %3369 = vmatprep.subr.mxu0 0.0
    %3370 = vmatpush2.msra.mxu0 0.0
    %3371 = vmatprep.subr.mxu0 0.0
    %3372 = vmatpush2.msra.mxu0 0.0
    %3373 = vmatprep.subr.mxu0 0.0
    %3374 = vmatpush2.msra.mxu0 0.0
    %3375 = vmatprep.subr.mxu0 0.0
    %3376 = vmatpush2.msra.mxu0 0.0
    %3377 = vmatprep.subr.mxu0 0.0
    %3378 = vmatpush2.msra.mxu0 0.0
    %3379 = vmatprep.subr.mxu0 0.0
    %3380 = vmatpush2.msra.mxu0 0.0
    %3381 = vmatprep.subr.mxu0 0.0
    %3382 = vmatpush2.msra.mxu0 0.0
    %3383 = vmatprep.subr.mxu0 0.0
    %3384 = vmatpush2.msra.mxu0 0.0
    %3385 = vmatprep.subr.mxu0 0.0
    %3386 = vmatpush2.msra.mxu0 0.0
    %3387 = vmatprep.subr.mxu0 0.0
    %3388 = vmatpush2.msra.mxu0 0.0
    %3389 = vmatprep.mubr.f32.mxu0 0.0
    %3390 = vmatmul.mubr.f32.gmra.mxu0 %v3252
    %v3391 = vpop.f32.mrf.mxu0
    %v3392 = vadd.f32 0.0, %v3391
    %v3393 = vpop.f32.mrf.mxu0
    %v3394 = vadd.f32 0.0, %v3393
    %3395 = vdwg.mxu0
    %3396 = vmatprep.subr.mxu0 0.0
    %3397 = vmatpush1.msra.mxu0 0.0
    %3398 = vmatprep.subr.mxu0 0.0
    %3399 = vmatpush1.msra.mxu0 0.0
    %3400 = vmatprep.subr.mxu0 0.0
    %3401 = vmatpush1.msra.mxu0 0.0
    %3402 = vmatprep.subr.mxu0 0.0
    %3403 = vmatpush1.msra.mxu0 0.0
    %3404 = vmatprep.subr.mxu0 0.0
    %3405 = vmatpush1.msra.mxu0 0.0
    %3406 = vmatprep.subr.mxu0 0.0
    %3407 = vmatpush1.msra.mxu0 0.0
    %3408 = vmatprep.subr.mxu0 0.0
    %3409 = vmatpush1.msra.mxu0 0.0
    %3410 = vmatprep.subr.mxu0 %v3246
    %3411 = vmatpush1.msra.mxu0 %v3245
    %3412 = vmatprep.subr.mxu0 %v3238
    %3413 = vmatpush1.msra.mxu0 %v3237
    %3414 = vmatprep.subr.mxu0 %v3230
    %3415 = vmatpush1.msra.mxu0 %v3229
    %3416 = vmatprep.subr.mxu0 %v3222
    %3417 = vmatpush1.msra.mxu0 %v3221
    %3418 = vmatprep.subr.mxu0 %v3214
    %3419 = vmatpush1.msra.mxu0 %v3213
    %3420 = vmatprep.subr.mxu0 %v3206
    %3421 = vmatpush1.msra.mxu0 %v3205
    %3422 = vmatprep.subr.mxu0 %v3198
    %3423 = vmatpush1.msra.mxu0 %v3197
    %3424 = vmatprep.subr.mxu0 %v3190
    %3425 = vmatpush1.msra.mxu0 %v3189
    %3426 = vmatprep.subr.mxu0 %v3182
    %3427 = vmatpush1.msra.mxu0 %v3181
    %3428 = vmatprep.subr.mxu0 0.0
    %3429 = vmatpush2.msra.mxu0 0.0
    %3430 = vmatprep.subr.mxu0 0.0
    %3431 = vmatpush2.msra.mxu0 0.0
    %3432 = vmatprep.subr.mxu0 0.0
    %3433 = vmatpush2.msra.mxu0 0.0
    %3434 = vmatprep.subr.mxu0 0.0
    %3435 = vmatpush2.msra.mxu0 0.0
    %3436 = vmatprep.subr.mxu0 0.0
    %3437 = vmatpush2.msra.mxu0 0.0
    %3438 = vmatprep.subr.mxu0 0.0
    %3439 = vmatpush2.msra.mxu0 0.0
    %3440 = vmatprep.subr.mxu0 0.0
    %3441 = vmatpush2.msra.mxu0 0.0
    %3442 = vmatprep.subr.mxu0 0.0
    %3443 = vmatpush2.msra.mxu0 0.0
    %3444 = vmatprep.subr.mxu0 0.0
    %3445 = vmatpush2.msra.mxu0 0.0
    %3446 = vmatprep.subr.mxu0 0.0
    %3447 = vmatpush2.msra.mxu0 0.0
    %3448 = vmatprep.subr.mxu0 0.0
    %3449 = vmatpush2.msra.mxu0 0.0
    %3450 = vmatprep.subr.mxu0 0.0
    %3451 = vmatpush2.msra.mxu0 0.0
    %3452 = vmatprep.subr.mxu0 0.0
    %3453 = vmatpush2.msra.mxu0 0.0
    %3454 = vmatprep.subr.mxu0 0.0
    %3455 = vmatpush2.msra.mxu0 0.0
    %3456 = vmatprep.subr.mxu0 0.0
    %3457 = vmatpush2.msra.mxu0 0.0
    %3458 = vmatprep.subr.mxu0 0.0
    %3459 = vmatpush2.msra.mxu0 0.0
    %3460 = vmatprep.mubr.f32.mxu0 0.0
    %3461 = vmatmul.mubr.f32.gmra.mxu0 %v3252
    %v3462 = vpop.f32.mrf.mxu0
    %v3463 = vadd.f32 0.0, %v3462
    %v3464 = vpop.f32.mrf.mxu0
    %v3465 = vadd.f32 0.0, %v3464
    %3466 = vdwg.mxu0
    %3467 = vmatprep.subr.mxu0 0.0
    %3468 = vmatpush1.msra.mxu0 0.0
    %3469 = vmatprep.subr.mxu0 0.0
    %3470 = vmatpush1.msra.mxu0 0.0
    %3471 = vmatprep.subr.mxu0 0.0
    %3472 = vmatpush1.msra.mxu0 0.0
    %3473 = vmatprep.subr.mxu0 0.0
    %3474 = vmatpush1.msra.mxu0 0.0
    %3475 = vmatprep.subr.mxu0 0.0
    %3476 = vmatpush1.msra.mxu0 0.0
    %3477 = vmatprep.subr.mxu0 0.0
    %3478 = vmatpush1.msra.mxu0 0.0
    %3479 = vmatprep.subr.mxu0 0.0
    %3480 = vmatpush1.msra.mxu0 0.0
    %3481 = vmatprep.subr.mxu0 %v3248
    %3482 = vmatpush1.msra.mxu0 %v3247
    %3483 = vmatprep.subr.mxu0 %v3240
    %3484 = vmatpush1.msra.mxu0 %v3239
    %3485 = vmatprep.subr.mxu0 %v3232
    %3486 = vmatpush1.msra.mxu0 %v3231
    %3487 = vmatprep.subr.mxu0 %v3224
    %3488 = vmatpush1.msra.mxu0 %v3223
    %3489 = vmatprep.subr.mxu0 %v3216
    %3490 = vmatpush1.msra.mxu0 %v3215
    %3491 = vmatprep.subr.mxu0 %v3208
    %3492 = vmatpush1.msra.mxu0 %v3207
    %3493 = vmatprep.subr.mxu0 %v3200
    %3494 = vmatpush1.msra.mxu0 %v3199
    %3495 = vmatprep.subr.mxu0 %v3192
    %3496 = vmatpush1.msra.mxu0 %v3191
    %3497 = vmatprep.subr.mxu0 %v3184
    %3498 = vmatpush1.msra.mxu0 %v3183
    %3499 = vmatprep.subr.mxu0 0.0
    %3500 = vmatpush2.msra.mxu0 0.0
    %3501 = vmatprep.subr.mxu0 0.0
    %3502 = vmatpush2.msra.mxu0 0.0
    %3503 = vmatprep.subr.mxu0 0.0
    %3504 = vmatpush2.msra.mxu0 0.0
    %3505 = vmatprep.subr.mxu0 0.0
    %3506 = vmatpush2.msra.mxu0 0.0
    %3507 = vmatprep.subr.mxu0 0.0
    %3508 = vmatpush2.msra.mxu0 0.0
    %3509 = vmatprep.subr.mxu0 0.0
    %3510 = vmatpush2.msra.mxu0 0.0
    %3511 = vmatprep.subr.mxu0 0.0
    %3512 = vmatpush2.msra.mxu0 0.0
    %3513 = vmatprep.subr.mxu0 0.0
    %3514 = vmatpush2.msra.mxu0 0.0
    %3515 = vmatprep.subr.mxu0 0.0
    %3516 = vmatpush2.msra.mxu0 0.0
    %3517 = vmatprep.subr.mxu0 0.0
    %3518 = vmatpush2.msra.mxu0 0.0
    %3519 = vmatprep.subr.mxu0 0.0
    %3520 = vmatpush2.msra.mxu0 0.0
    %3521 = vmatprep.subr.mxu0 0.0
    %3522 = vmatpush2.msra.mxu0 0.0
    %3523 = vmatprep.subr.mxu0 0.0
    %3524 = vmatpush2.msra.mxu0 0.0
    %3525 = vmatprep.subr.mxu0 0.0
    %3526 = vmatpush2.msra.mxu0 0.0
    %3527 = vmatprep.subr.mxu0 0.0
    %3528 = vmatpush2.msra.mxu0 0.0
    %3529 = vmatprep.subr.mxu0 0.0
    %3530 = vmatpush2.msra.mxu0 0.0
    %3531 = vmatprep.mubr.f32.mxu0 0.0
    %3532 = vmatmul.mubr.f32.gmra.mxu0 %v3252
    %v3533 = vpop.f32.mrf.mxu0
    %v3534 = vadd.f32 0.0, %v3533
    %v3535 = vpop.f32.mrf.mxu0
    %v3536 = vadd.f32 0.0, %v3535
    %3537 = vdwg.mxu0
    %v3538 = vadd.f32 %v3321, %v3323
    %v3539 = vadd.f32 %v3538, %v3392
    %v3540 = vadd.f32 %v3539, %v3394
    %v3541 = vadd.f32 %v3540, %v3463
    %v3542 = vadd.f32 %v3541, %v3465
    %v3543 = vadd.f32 %v3542, %v3534
    %v3544 = vadd.f32 %v3543, %v3536
    %3545 = vadd.xlane.f32.xlu0 %v3544
    %v3546 = vpop.xlane.xlu0 %3545
    %v3547 = vmul.f32 %v3546, %v2103
    %v3548 = vmul.f32 %v3321, %v3321
    %v3549 = vmul.f32 %v3323, %v3323
    %v3550 = vmul.f32 %v3392, %v3392
    %v3551 = vmul.f32 %v3394, %v3394
    %v3552 = vmul.f32 %v3463, %v3463
    %v3553 = vmul.f32 %v3465, %v3465
    %v3554 = vmul.f32 %v3534, %v3534
    %v3555 = vmul.f32 %v3536, %v3536
    %v3556 = vadd.f32 %v3548, %v3549
    %v3557 = vadd.f32 %v3556, %v3550
    %v3558 = vadd.f32 %v3557, %v3551
    %v3559 = vadd.f32 %v3558, %v3552
    %v3560 = vadd.f32 %v3559, %v3553
    %v3561 = vadd.f32 %v3560, %v3554
    %v3562 = vadd.f32 %v3561, %v3555
    %3563 = vadd.xlane.f32.xlu0 %v3562
    %v3564 = vpop.xlane.xlu0 %3563
    %v3565 = vmul.f32 %v3564, %v2103
    %v3566 = vmul.f32 %v3547, %v3547
    %v3567 = vsub.f32 %v3565, %v3566
    %v3568 = vsub.f32 %v3321, %v3547
    %v3569 = vsub.f32 %v3323, %v3547
    %v3570 = vsub.f32 %v3392, %v3547
    %v3571 = vsub.f32 %v3394, %v3547
    %v3572 = vsub.f32 %v3463, %v3547
    %v3573 = vsub.f32 %v3465, %v3547
    %v3574 = vsub.f32 %v3534, %v3547
    %v3575 = vsub.f32 %v3536, %v3547
    %v3576 = vadd.f32 %v3567, 1e-05
    %v3577 = vrsqrt.pop %v3576
    %v3578 = vmul.f32 %v3568, %v3577
    %v3579 = vmul.f32 %v3569, %v3577
    %v3580 = vmul.f32 %v3570, %v3577
    %v3581 = vmul.f32 %v3571, %v3577
    %v3582 = vmul.f32 %v3572, %v3577
    %v3583 = vmul.f32 %v3573, %v3577
    %v3584 = vmul.f32 %v3574, %v3577
    %v3585 = vmul.f32 %v3575, %v3577
    %v3586 = vmax.f32 %v3578, 0.0
    %v3587 = vmax.f32 %v3579, 0.0
    %v3588 = vmax.f32 %v3580, 0.0
    %v3589 = vmax.f32 %v3581, 0.0
    %v3590 = vmax.f32 %v3582, 0.0
    %v3591 = vmax.f32 %v3583, 0.0
    %v3592 = vmax.f32 %v3584, 0.0
    %v3593 = vmax.f32 %v3585, 0.0
    %3594 = vrot.lane.b32.xlu0 %v3586, 1
    %v3595 = vpop.permute.xlu0 %3594
    %3596 = vrot.lane.b32.xlu0 %v3587, 1
    %v3597 = vpop.permute.xlu0 %3596
    %3598 = vrot.lane.b32.xlu0 %v3588, 1
    %v3599 = vpop.permute.xlu0 %3598
    %3600 = vrot.lane.b32.xlu0 %v3589, 1
    %v3601 = vpop.permute.xlu0 %3600
    %3602 = vrot.lane.b32.xlu0 %v3590, 1
    %v3603 = vpop.permute.xlu0 %3602
    %3604 = vrot.lane.b32.xlu0 %v3591, 1
    %v3605 = vpop.permute.xlu0 %3604
    %3606 = vrot.lane.b32.xlu0 %v3592, 1
    %v3607 = vpop.permute.xlu0 %3606
    %3608 = vrot.lane.b32.xlu0 %v3593, 1
    %v3609 = vpop.permute.xlu0 %3608
    %v3610 = vsel %vm1894, %v3607, %v3609
    %v3611 = vsel %vm1894, %v3605, %v3607
    %v3612 = vsel %vm1894, %v3603, %v3605
    %v3613 = vsel %vm1894, %v3601, %v3603
    %v3614 = vsel %vm1894, %v3599, %v3601
    %v3615 = vsel %vm1894, %v3597, %v3599
    %v3616 = vsel %vm1894, %v3595, %v3597
    %v3617 = vsel %vm1894, %v3609, %v3595
    %v3618 = vmul.f32 %v3617, %v180
    %v3619 = vmul.f32 %v3616, %v181
    %v3620 = vmul.f32 %v3615, %v182
    %v3621 = vmul.f32 %v3614, %v183
    %v3622 = vmul.f32 %v3613, %v184
    %v3623 = vmul.f32 %v3612, %v185
    %v3624 = vmul.f32 %v3611, %v186
    %v3625 = vmul.f32 %v3610, %v187
    %3626 = vst [vmem:[#allocation2 + $0x240] sm:$0xff] %v3618
    %3627 = vst [vmem:[#allocation2 + $0x248] sm:$0xff] %v3619
    %3628 = vst [vmem:[#allocation2 + $0x250] sm:$0xff] %v3620
    %3629 = vst [vmem:[#allocation2 + $0x258] sm:$0xff] %v3621
    %3630 = vst [vmem:[#allocation2 + $0x260] sm:$0xff] %v3622
    %3631 = vst [vmem:[#allocation2 + $0x268] sm:$0xff] %v3623
    %3632 = vst [vmem:[#allocation2 + $0x270] sm:$0xff] %v3624
    %3633 = vst [vmem:[#allocation2 + $0x278] sm:$0xff] %v3625
    %3634 = vst [vmem:[#allocation2 + $0x280] sm:$0xff] %v3586
    %3635 = vst [vmem:[#allocation2 + $0x288] sm:$0xff] %v3587
    %3636 = vst [vmem:[#allocation2 + $0x290] sm:$0xff] %v3588
    %3637 = vst [vmem:[#allocation2 + $0x298] sm:$0xff] %v3589
    %3638 = vst [vmem:[#allocation2 + $0x2a0] sm:$0xff] %v3590
    %3639 = vst [vmem:[#allocation2 + $0x2a8] sm:$0xff] %v3591
    %3640 = vst [vmem:[#allocation2 + $0x2b0] sm:$0xff] %v3592
    %3641 = vst [vmem:[#allocation2 + $0x2b8] sm:$0xff] %v3593
    %3642 = vrot.lane.b32.xlu0 %v3586, 127
    %v3643 = vpop.permute.xlu0 %3642
    %3644 = vrot.lane.b32.xlu0 %v3587, 127
    %v3645 = vpop.permute.xlu0 %3644
    %3646 = vrot.lane.b32.xlu0 %v3588, 127
    %v3647 = vpop.permute.xlu0 %3646
    %3648 = vrot.lane.b32.xlu0 %v3589, 127
    %v3649 = vpop.permute.xlu0 %3648
    %3650 = vrot.lane.b32.xlu0 %v3590, 127
    %v3651 = vpop.permute.xlu0 %3650
    %3652 = vrot.lane.b32.xlu0 %v3591, 127
    %v3653 = vpop.permute.xlu0 %3652
    %3654 = vrot.lane.b32.xlu0 %v3592, 127
    %v3655 = vpop.permute.xlu0 %3654
    %3656 = vrot.lane.b32.xlu0 %v3593, 127
    %v3657 = vpop.permute.xlu0 %3656
    %v3658 = vsel %vm1927, %v3655, %v3657
    %v3659 = vsel %vm1927, %v3653, %v3655
    %v3660 = vsel %vm1927, %v3651, %v3653
    %v3661 = vsel %vm1927, %v3649, %v3651
    %v3662 = vsel %vm1927, %v3647, %v3649
    %v3663 = vsel %vm1927, %v3645, %v3647
    %v3664 = vsel %vm1927, %v3643, %v3645
    %v3665 = vsel %vm1927, %v3657, %v3643
    %v3666 = vmul.f32 %v3664, %v204
    %v3667 = vmul.f32 %v3663, %v205
    %v3668 = vmul.f32 %v3662, %v206
    %v3669 = vmul.f32 %v3661, %v207
    %v3670 = vmul.f32 %v3660, %v208
    %v3671 = vmul.f32 %v3659, %v209
    %v3672 = vmul.f32 %v3658, %v210
    %v3673 = vmul.f32 %v3665, %v211
    %3674 = vst [vmem:[#allocation2 + $0x2c0] sm:$0xff] %v3666
    %3675 = vst [vmem:[#allocation2 + $0x2c8] sm:$0xff] %v3667
    %3676 = vst [vmem:[#allocation2 + $0x2d0] sm:$0xff] %v3668
    %3677 = vst [vmem:[#allocation2 + $0x2d8] sm:$0xff] %v3669
    %3678 = vst [vmem:[#allocation2 + $0x2e0] sm:$0xff] %v3670
    %3679 = vst [vmem:[#allocation2 + $0x2e8] sm:$0xff] %v3671
    %3680 = vst [vmem:[#allocation2 + $0x2f0] sm:$0xff] %v3672
    %3681 = vst [vmem:[#allocation2 + $0x2f8] sm:$0xff] %v3673
    %v3682 = vld [vmem:[#allocation2] sm:$0xff]
    %v3683 = vld [vmem:[#allocation2 + $0x8] sm:$0xff]
    %v3684 = vld [vmem:[#allocation2 + $0x10] sm:$0xff]
    %v3685 = vld [vmem:[#allocation2 + $0x18] sm:$0xff]
    %v3686 = vld [vmem:[#allocation2 + $0x20] sm:$0xff]
    %v3687 = vld [vmem:[#allocation2 + $0x28] sm:$0xff]
    %v3688 = vld [vmem:[#allocation2 + $0x30] sm:$0xff]
    %v3689 = vld [vmem:[#allocation2 + $0x38] sm:$0xff]
    %v3690 = vld [vmem:[#allocation2 + $0x40] sm:$0xff]
    %v3691 = vld [vmem:[#allocation2 + $0x48] sm:$0xff]
    %v3692 = vld [vmem:[#allocation2 + $0x50] sm:$0xff]
    %v3693 = vld [vmem:[#allocation2 + $0x58] sm:$0xff]
    %v3694 = vld [vmem:[#allocation2 + $0x60] sm:$0xff]
    %v3695 = vld [vmem:[#allocation2 + $0x68] sm:$0xff]
    %v3696 = vld [vmem:[#allocation2 + $0x70] sm:$0xff]
    %v3697 = vld [vmem:[#allocation2 + $0x78] sm:$0xff]
    %v3698 = vld [vmem:[#allocation2 + $0x80] sm:$0xff]
    %v3699 = vld [vmem:[#allocation2 + $0x88] sm:$0xff]
    %v3700 = vld [vmem:[#allocation2 + $0x90] sm:$0xff]
    %v3701 = vld [vmem:[#allocation2 + $0x98] sm:$0xff]
    %v3702 = vld [vmem:[#allocation2 + $0xa0] sm:$0xff]
    %v3703 = vld [vmem:[#allocation2 + $0xa8] sm:$0xff]
    %v3704 = vld [vmem:[#allocation2 + $0xb0] sm:$0xff]
    %v3705 = vld [vmem:[#allocation2 + $0xb8] sm:$0xff]
    %v3706 = vld [vmem:[#allocation2 + $0xc0] sm:$0xff]
    %v3707 = vld [vmem:[#allocation2 + $0xc8] sm:$0xff]
    %v3708 = vld [vmem:[#allocation2 + $0xd0] sm:$0xff]
    %v3709 = vld [vmem:[#allocation2 + $0xd8] sm:$0xff]
    %v3710 = vld [vmem:[#allocation2 + $0xe0] sm:$0xff]
    %v3711 = vld [vmem:[#allocation2 + $0xe8] sm:$0xff]
    %v3712 = vld [vmem:[#allocation2 + $0xf0] sm:$0xff]
    %v3713 = vld [vmem:[#allocation2 + $0xf8] sm:$0xff]
    %v3714 = vld [vmem:[#allocation2 + $0x100] sm:$0xff]
    %v3715 = vld [vmem:[#allocation2 + $0x108] sm:$0xff]
    %v3716 = vld [vmem:[#allocation2 + $0x110] sm:$0xff]
    %v3717 = vld [vmem:[#allocation2 + $0x118] sm:$0xff]
    %v3718 = vld [vmem:[#allocation2 + $0x120] sm:$0xff]
    %v3719 = vld [vmem:[#allocation2 + $0x128] sm:$0xff]
    %v3720 = vld [vmem:[#allocation2 + $0x130] sm:$0xff]
    %v3721 = vld [vmem:[#allocation2 + $0x138] sm:$0xff]
    %v3722 = vld [vmem:[#allocation2 + $0x140] sm:$0xff]
    %v3723 = vld [vmem:[#allocation2 + $0x148] sm:$0xff]
    %v3724 = vld [vmem:[#allocation2 + $0x150] sm:$0xff]
    %v3725 = vld [vmem:[#allocation2 + $0x158] sm:$0xff]
    %v3726 = vld [vmem:[#allocation2 + $0x160] sm:$0xff]
    %v3727 = vld [vmem:[#allocation2 + $0x168] sm:$0xff]
    %v3728 = vld [vmem:[#allocation2 + $0x170] sm:$0xff]
    %v3729 = vld [vmem:[#allocation2 + $0x178] sm:$0xff]
    %v3730 = vld [vmem:[#allocation2 + $0x180] sm:$0xff]
    %v3731 = vld [vmem:[#allocation2 + $0x188] sm:$0xff]
    %v3732 = vld [vmem:[#allocation2 + $0x190] sm:$0xff]
    %v3733 = vld [vmem:[#allocation2 + $0x198] sm:$0xff]
    %v3734 = vld [vmem:[#allocation2 + $0x1a0] sm:$0xff]
    %v3735 = vld [vmem:[#allocation2 + $0x1a8] sm:$0xff]
    %v3736 = vld [vmem:[#allocation2 + $0x1b0] sm:$0xff]
    %v3737 = vld [vmem:[#allocation2 + $0x1b8] sm:$0xff]
    %v3738 = vld [vmem:[#allocation2 + $0x1c0] sm:$0xff]
    %v3739 = vld [vmem:[#allocation2 + $0x1c8] sm:$0xff]
    %v3740 = vld [vmem:[#allocation2 + $0x1d0] sm:$0xff]
    %v3741 = vld [vmem:[#allocation2 + $0x1d8] sm:$0xff]
    %v3742 = vld [vmem:[#allocation2 + $0x1e0] sm:$0xff]
    %v3743 = vld [vmem:[#allocation2 + $0x1e8] sm:$0xff]
    %v3744 = vld [vmem:[#allocation2 + $0x1f0] sm:$0xff]
    %v3745 = vld [vmem:[#allocation2 + $0x1f8] sm:$0xff]
    %v3746 = vld [vmem:[#allocation2 + $0x200] sm:$0xff]
    %v3747 = vld [vmem:[#allocation2 + $0x208] sm:$0xff]
    %v3748 = vld [vmem:[#allocation2 + $0x210] sm:$0xff]
    %v3749 = vld [vmem:[#allocation2 + $0x218] sm:$0xff]
    %v3750 = vld [vmem:[#allocation2 + $0x220] sm:$0xff]
    %v3751 = vld [vmem:[#allocation2 + $0x228] sm:$0xff]
    %v3752 = vld [vmem:[#allocation2 + $0x230] sm:$0xff]
    %v3753 = vld [vmem:[#allocation2 + $0x238] sm:$0xff]
    %v3754 = vld [vmem:[#allocation2 + $0x240] sm:$0xff]
    %v3755 = vld [vmem:[#allocation2 + $0x248] sm:$0xff]
    %v3756 = vld [vmem:[#allocation2 + $0x250] sm:$0xff]
    %v3757 = vld [vmem:[#allocation2 + $0x258] sm:$0xff]
    %v3758 = vld [vmem:[#allocation2 + $0x260] sm:$0xff]
    %v3759 = vld [vmem:[#allocation2 + $0x268] sm:$0xff]
    %v3760 = vld [vmem:[#allocation2 + $0x270] sm:$0xff]
    %v3761 = vld [vmem:[#allocation2 + $0x278] sm:$0xff]
    %v3762 = vld [vmem:[#allocation2 + $0x280] sm:$0xff]
    %v3763 = vld [vmem:[#allocation2 + $0x288] sm:$0xff]
    %v3764 = vld [vmem:[#allocation2 + $0x290] sm:$0xff]
    %v3765 = vld [vmem:[#allocation2 + $0x298] sm:$0xff]
    %v3766 = vld [vmem:[#allocation2 + $0x2a0] sm:$0xff]
    %v3767 = vld [vmem:[#allocation2 + $0x2a8] sm:$0xff]
    %v3768 = vld [vmem:[#allocation2 + $0x2b0] sm:$0xff]
    %v3769 = vld [vmem:[#allocation2 + $0x2b8] sm:$0xff]
    %v3770 = vld [vmem:[#allocation2 + $0x2c0] sm:$0xff]
    %v3771 = vld [vmem:[#allocation2 + $0x2c8] sm:$0xff]
    %v3772 = vld [vmem:[#allocation2 + $0x2d0] sm:$0xff]
    %v3773 = vld [vmem:[#allocation2 + $0x2d8] sm:$0xff]
    %v3774 = vld [vmem:[#allocation2 + $0x2e0] sm:$0xff]
    %v3775 = vld [vmem:[#allocation2 + $0x2e8] sm:$0xff]
    %v3776 = vld [vmem:[#allocation2 + $0x2f0] sm:$0xff]
    %v3777 = vld [vmem:[#allocation2 + $0x2f8] sm:$0xff]
    %v3778 = vld [vmem:[%s9] sm:$0xff]
    %vm3779 = vcmask 785408
    %v3781 = vsel %vm3779, %v3778, 0
    %3783 = vmatprep.subr.mxu0 0.0
    %3784 = vmatpush1.msra.mxu0 0.0
    %3785 = vmatprep.subr.mxu0 0.0
    %3786 = vmatpush1.msra.mxu0 0.0
    %3787 = vmatprep.subr.mxu0 0.0
    %3788 = vmatpush1.msra.mxu0 0.0
    %3789 = vmatprep.subr.mxu0 0.0
    %3790 = vmatpush1.msra.mxu0 0.0
    %3791 = vmatprep.subr.mxu0 %v3771
    %3792 = vmatpush1.msra.mxu0 %v3770
    %3793 = vmatprep.subr.mxu0 %v3763
    %3794 = vmatpush1.msra.mxu0 %v3762
    %3795 = vmatprep.subr.mxu0 %v3755
    %3796 = vmatpush1.msra.mxu0 %v3754
    %3797 = vmatprep.subr.mxu0 %v3747
    %3798 = vmatpush1.msra.mxu0 %v3746
    %3799 = vmatprep.subr.mxu0 %v3739
    %3800 = vmatpush1.msra.mxu0 %v3738
    %3801 = vmatprep.subr.mxu0 %v3731
    %3802 = vmatpush1.msra.mxu0 %v3730
    %3803 = vmatprep.subr.mxu0 %v3723
    %3804 = vmatpush1.msra.mxu0 %v3722
    %3805 = vmatprep.subr.mxu0 %v3715
    %3806 = vmatpush1.msra.mxu0 %v3714
    %3807 = vmatprep.subr.mxu0 %v3707
    %3808 = vmatpush1.msra.mxu0 %v3706
    %3809 = vmatprep.subr.mxu0 %v3699
    %3810 = vmatpush1.msra.mxu0 %v3698
    %3811 = vmatprep.subr.mxu0 %v3691
    %3812 = vmatpush1.msra.mxu0 %v3690
    %3813 = vmatprep.subr.mxu0 %v3683
    %3814 = vmatpush1.msra.mxu0 %v3682
    %3815 = vmatprep.subr.mxu0 0.0
    %3816 = vmatpush2.msra.mxu0 0.0
    %3817 = vmatprep.subr.mxu0 0.0
    %3818 = vmatpush2.msra.mxu0 0.0
    %3819 = vmatprep.subr.mxu0 0.0
    %3820 = vmatpush2.msra.mxu0 0.0
    %3821 = vmatprep.subr.mxu0 0.0
    %3822 = vmatpush2.msra.mxu0 0.0
    %3823 = vmatprep.subr.mxu0 0.0
    %3824 = vmatpush2.msra.mxu0 0.0
    %3825 = vmatprep.subr.mxu0 0.0
    %3826 = vmatpush2.msra.mxu0 0.0
    %3827 = vmatprep.subr.mxu0 0.0
    %3828 = vmatpush2.msra.mxu0 0.0
    %3829 = vmatprep.subr.mxu0 0.0
    %3830 = vmatpush2.msra.mxu0 0.0
    %3831 = vmatprep.subr.mxu0 0.0
    %3832 = vmatpush2.msra.mxu0 0.0
    %3833 = vmatprep.subr.mxu0 0.0
    %3834 = vmatpush2.msra.mxu0 0.0
    %3835 = vmatprep.subr.mxu0 0.0
    %3836 = vmatpush2.msra.mxu0 0.0
    %3837 = vmatprep.subr.mxu0 0.0
    %3838 = vmatpush2.msra.mxu0 0.0
    %3839 = vmatprep.subr.mxu0 0.0
    %3840 = vmatpush2.msra.mxu0 0.0
    %3841 = vmatprep.subr.mxu0 0.0
    %3842 = vmatpush2.msra.mxu0 0.0
    %3843 = vmatprep.subr.mxu0 0.0
    %3844 = vmatpush2.msra.mxu0 0.0
    %3845 = vmatprep.subr.mxu0 0.0
    %3846 = vmatpush2.msra.mxu0 0.0
    %3847 = vmatprep.mubr.f32.mxu0 0.0
    %3848 = vmatmul.mubr.f32.gmra.mxu0 %v3781
    %v3849 = vpop.f32.mrf.mxu0
    %v3850 = vadd.f32 0.0, %v3849
    %v3851 = vpop.f32.mrf.mxu0
    %v3852 = vadd.f32 0.0, %v3851
    %3853 = vdwg.mxu0
    %3854 = vmatprep.subr.mxu0 0.0
    %3855 = vmatpush1.msra.mxu0 0.0
    %3856 = vmatprep.subr.mxu0 0.0
    %3857 = vmatpush1.msra.mxu0 0.0
    %3858 = vmatprep.subr.mxu0 0.0
    %3859 = vmatpush1.msra.mxu0 0.0
    %3860 = vmatprep.subr.mxu0 0.0
    %3861 = vmatpush1.msra.mxu0 0.0
    %3862 = vmatprep.subr.mxu0 %v3773
    %3863 = vmatpush1.msra.mxu0 %v3772
    %3864 = vmatprep.subr.mxu0 %v3765
    %3865 = vmatpush1.msra.mxu0 %v3764
    %3866 = vmatprep.subr.mxu0 %v3757
    %3867 = vmatpush1.msra.mxu0 %v3756
    %3868 = vmatprep.subr.mxu0 %v3749
    %3869 = vmatpush1.msra.mxu0 %v3748
    %3870 = vmatprep.subr.mxu0 %v3741
    %3871 = vmatpush1.msra.mxu0 %v3740
    %3872 = vmatprep.subr.mxu0 %v3733
    %3873 = vmatpush1.msra.mxu0 %v3732
    %3874 = vmatprep.subr.mxu0 %v3725
    %3875 = vmatpush1.msra.mxu0 %v3724
    %3876 = vmatprep.subr.mxu0 %v3717
    %3877 = vmatpush1.msra.mxu0 %v3716
    %3878 = vmatprep.subr.mxu0 %v3709
    %3879 = vmatpush1.msra.mxu0 %v3708
    %3880 = vmatprep.subr.mxu0 %v3701
    %3881 = vmatpush1.msra.mxu0 %v3700
    %3882 = vmatprep.subr.mxu0 %v3693
    %3883 = vmatpush1.msra.mxu0 %v3692
    %3884 = vmatprep.subr.mxu0 %v3685
    %3885 = vmatpush1.msra.mxu0 %v3684
    %3886 = vmatprep.subr.mxu0 0.0
    %3887 = vmatpush2.msra.mxu0 0.0
    %3888 = vmatprep.subr.mxu0 0.0
    %3889 = vmatpush2.msra.mxu0 0.0
    %3890 = vmatprep.subr.mxu0 0.0
    %3891 = vmatpush2.msra.mxu0 0.0
    %3892 = vmatprep.subr.mxu0 0.0
    %3893 = vmatpush2.msra.mxu0 0.0
    %3894 = vmatprep.subr.mxu0 0.0
    %3895 = vmatpush2.msra.mxu0 0.0
    %3896 = vmatprep.subr.mxu0 0.0
    %3897 = vmatpush2.msra.mxu0 0.0
    %3898 = vmatprep.subr.mxu0 0.0
    %3899 = vmatpush2.msra.mxu0 0.0
    %3900 = vmatprep.subr.mxu0 0.0
    %3901 = vmatpush2.msra.mxu0 0.0
    %3902 = vmatprep.subr.mxu0 0.0
    %3903 = vmatpush2.msra.mxu0 0.0
    %3904 = vmatprep.subr.mxu0 0.0
    %3905 = vmatpush2.msra.mxu0 0.0
    %3906 = vmatprep.subr.mxu0 0.0
    %3907 = vmatpush2.msra.mxu0 0.0
    %3908 = vmatprep.subr.mxu0 0.0
    %3909 = vmatpush2.msra.mxu0 0.0
    %3910 = vmatprep.subr.mxu0 0.0
    %3911 = vmatpush2.msra.mxu0 0.0
    %3912 = vmatprep.subr.mxu0 0.0
    %3913 = vmatpush2.msra.mxu0 0.0
    %3914 = vmatprep.subr.mxu0 0.0
    %3915 = vmatpush2.msra.mxu0 0.0
    %3916 = vmatprep.subr.mxu0 0.0
    %3917 = vmatpush2.msra.mxu0 0.0
    %3918 = vmatprep.mubr.f32.mxu0 0.0
    %3919 = vmatmul.mubr.f32.gmra.mxu0 %v3781
    %v3920 = vpop.f32.mrf.mxu0
    %v3921 = vadd.f32 0.0, %v3920
    %v3922 = vpop.f32.mrf.mxu0
    %v3923 = vadd.f32 0.0, %v3922
    %3924 = vdwg.mxu0
    %3925 = vmatprep.subr.mxu0 0.0
    %3926 = vmatpush1.msra.mxu0 0.0
    %3927 = vmatprep.subr.mxu0 0.0
    %3928 = vmatpush1.msra.mxu0 0.0
    %3929 = vmatprep.subr.mxu0 0.0
    %3930 = vmatpush1.msra.mxu0 0.0
    %3931 = vmatprep.subr.mxu0 0.0
    %3932 = vmatpush1.msra.mxu0 0.0
    %3933 = vmatprep.subr.mxu0 %v3775
    %3934 = vmatpush1.msra.mxu0 %v3774
    %3935 = vmatprep.subr.mxu0 %v3767
    %3936 = vmatpush1.msra.mxu0 %v3766
    %3937 = vmatprep.subr.mxu0 %v3759
    %3938 = vmatpush1.msra.mxu0 %v3758
    %3939 = vmatprep.subr.mxu0 %v3751
    %3940 = vmatpush1.msra.mxu0 %v3750
    %3941 = vmatprep.subr.mxu0 %v3743
    %3942 = vmatpush1.msra.mxu0 %v3742
    %3943 = vmatprep.subr.mxu0 %v3735
    %3944 = vmatpush1.msra.mxu0 %v3734
    %3945 = vmatprep.subr.mxu0 %v3727
    %3946 = vmatpush1.msra.mxu0 %v3726
    %3947 = vmatprep.subr.mxu0 %v3719
    %3948 = vmatpush1.msra.mxu0 %v3718
    %3949 = vmatprep.subr.mxu0 %v3711
    %3950 = vmatpush1.msra.mxu0 %v3710
    %3951 = vmatprep.subr.mxu0 %v3703
    %3952 = vmatpush1.msra.mxu0 %v3702
    %3953 = vmatprep.subr.mxu0 %v3695
    %3954 = vmatpush1.msra.mxu0 %v3694
    %3955 = vmatprep.subr.mxu0 %v3687
    %3956 = vmatpush1.msra.mxu0 %v3686
    %3957 = vmatprep.subr.mxu0 0.0
    %3958 = vmatpush2.msra.mxu0 0.0
    %3959 = vmatprep.subr.mxu0 0.0
    %3960 = vmatpush2.msra.mxu0 0.0
    %3961 = vmatprep.subr.mxu0 0.0
    %3962 = vmatpush2.msra.mxu0 0.0
    %3963 = vmatprep.subr.mxu0 0.0
    %3964 = vmatpush2.msra.mxu0 0.0
    %3965 = vmatprep.subr.mxu0 0.0
    %3966 = vmatpush2.msra.mxu0 0.0
    %3967 = vmatprep.subr.mxu0 0.0
    %3968 = vmatpush2.msra.mxu0 0.0
    %3969 = vmatprep.subr.mxu0 0.0
    %3970 = vmatpush2.msra.mxu0 0.0
    %3971 = vmatprep.subr.mxu0 0.0
    %3972 = vmatpush2.msra.mxu0 0.0
    %3973 = vmatprep.subr.mxu0 0.0
    %3974 = vmatpush2.msra.mxu0 0.0
    %3975 = vmatprep.subr.mxu0 0.0
    %3976 = vmatpush2.msra.mxu0 0.0
    %3977 = vmatprep.subr.mxu0 0.0
    %3978 = vmatpush2.msra.mxu0 0.0
    %3979 = vmatprep.subr.mxu0 0.0
    %3980 = vmatpush2.msra.mxu0 0.0
    %3981 = vmatprep.subr.mxu0 0.0
    %3982 = vmatpush2.msra.mxu0 0.0
    %3983 = vmatprep.subr.mxu0 0.0
    %3984 = vmatpush2.msra.mxu0 0.0
    %3985 = vmatprep.subr.mxu0 0.0
    %3986 = vmatpush2.msra.mxu0 0.0
    %3987 = vmatprep.subr.mxu0 0.0
    %3988 = vmatpush2.msra.mxu0 0.0
    %3989 = vmatprep.mubr.f32.mxu0 0.0
    %3990 = vmatmul.mubr.f32.gmra.mxu0 %v3781
    %v3991 = vpop.f32.mrf.mxu0
    %v3992 = vadd.f32 0.0, %v3991
    %v3993 = vpop.f32.mrf.mxu0
    %v3994 = vadd.f32 0.0, %v3993
    %3995 = vdwg.mxu0
    %3996 = vmatprep.subr.mxu0 0.0
    %3997 = vmatpush1.msra.mxu0 0.0
    %3998 = vmatprep.subr.mxu0 0.0
    %3999 = vmatpush1.msra.mxu0 0.0
    %4000 = vmatprep.subr.mxu0 0.0
    %4001 = vmatpush1.msra.mxu0 0.0
    %4002 = vmatprep.subr.mxu0 0.0
    %4003 = vmatpush1.msra.mxu0 0.0
    %4004 = vmatprep.subr.mxu0 %v3777
    %4005 = vmatpush1.msra.mxu0 %v3776
    %4006 = vmatprep.subr.mxu0 %v3769
    %4007 = vmatpush1.msra.mxu0 %v3768
    %4008 = vmatprep.subr.mxu0 %v3761
    %4009 = vmatpush1.msra.mxu0 %v3760
    %4010 = vmatprep.subr.mxu0 %v3753
    %4011 = vmatpush1.msra.mxu0 %v3752
    %4012 = vmatprep.subr.mxu0 %v3745
    %4013 = vmatpush1.msra.mxu0 %v3744
    %4014 = vmatprep.subr.mxu0 %v3737
    %4015 = vmatpush1.msra.mxu0 %v3736
    %4016 = vmatprep.subr.mxu0 %v3729
    %4017 = vmatpush1.msra.mxu0 %v3728
    %4018 = vmatprep.subr.mxu0 %v3721
    %4019 = vmatpush1.msra.mxu0 %v3720
    %4020 = vmatprep.subr.mxu0 %v3713
    %4021 = vmatpush1.msra.mxu0 %v3712
    %4022 = vmatprep.subr.mxu0 %v3705
    %4023 = vmatpush1.msra.mxu0 %v3704
    %4024 = vmatprep.subr.mxu0 %v3697
    %4025 = vmatpush1.msra.mxu0 %v3696
    %4026 = vmatprep.subr.mxu0 %v3689
    %4027 = vmatpush1.msra.mxu0 %v3688
    %4028 = vmatprep.subr.mxu0 0.0
    %4029 = vmatpush2.msra.mxu0 0.0
    %4030 = vmatprep.subr.mxu0 0.0
    %4031 = vmatpush2.msra.mxu0 0.0
    %4032 = vmatprep.subr.mxu0 0.0
    %4033 = vmatpush2.msra.mxu0 0.0
    %4034 = vmatprep.subr.mxu0 0.0
    %4035 = vmatpush2.msra.mxu0 0.0
    %4036 = vmatprep.subr.mxu0 0.0
    %4037 = vmatpush2.msra.mxu0 0.0
    %4038 = vmatprep.subr.mxu0 0.0
    %4039 = vmatpush2.msra.mxu0 0.0
    %4040 = vmatprep.subr.mxu0 0.0
    %4041 = vmatpush2.msra.mxu0 0.0
    %4042 = vmatprep.subr.mxu0 0.0
    %4043 = vmatpush2.msra.mxu0 0.0
    %4044 = vmatprep.subr.mxu0 0.0
    %4045 = vmatpush2.msra.mxu0 0.0
    %4046 = vmatprep.subr.mxu0 0.0
    %4047 = vmatpush2.msra.mxu0 0.0
    %4048 = vmatprep.subr.mxu0 0.0
    %4049 = vmatpush2.msra.mxu0 0.0
    %4050 = vmatprep.subr.mxu0 0.0
    %4051 = vmatpush2.msra.mxu0 0.0
    %4052 = vmatprep.subr.mxu0 0.0
    %4053 = vmatpush2.msra.mxu0 0.0
    %4054 = vmatprep.subr.mxu0 0.0
    %4055 = vmatpush2.msra.mxu0 0.0
    %4056 = vmatprep.subr.mxu0 0.0
    %4057 = vmatpush2.msra.mxu0 0.0
    %4058 = vmatprep.subr.mxu0 0.0
    %4059 = vmatpush2.msra.mxu0 0.0
    %4060 = vmatprep.mubr.f32.mxu0 0.0
    %4061 = vmatmul.mubr.f32.gmra.mxu0 %v3781
    %v4062 = vpop.f32.mrf.mxu0
    %v4063 = vadd.f32 0.0, %v4062
    %v4064 = vpop.f32.mrf.mxu0
    %v4065 = vadd.f32 0.0, %v4064
    %4066 = vdwg.mxu0
    %v4067 = vadd.f32 %v3850, %v3852
    %v4068 = vadd.f32 %v4067, %v3921
    %v4069 = vadd.f32 %v4068, %v3923
    %v4070 = vadd.f32 %v4069, %v3992
    %v4071 = vadd.f32 %v4070, %v3994
    %v4072 = vadd.f32 %v4071, %v4063
    %v4073 = vadd.f32 %v4072, %v4065
    %4074 = vadd.xlane.f32.xlu0 %v4073
    %v4075 = vpop.xlane.xlu0 %4074
    %v4076 = vmul.f32 %v4075, %v2103
    %v4077 = vmul.f32 %v3850, %v3850
    %v4078 = vmul.f32 %v3852, %v3852
    %v4079 = vmul.f32 %v3921, %v3921
    %v4080 = vmul.f32 %v3923, %v3923
    %v4081 = vmul.f32 %v3992, %v3992
    %v4082 = vmul.f32 %v3994, %v3994
    %v4083 = vmul.f32 %v4063, %v4063
    %v4084 = vmul.f32 %v4065, %v4065
    %v4085 = vadd.f32 %v4077, %v4078
    %v4086 = vadd.f32 %v4085, %v4079
    %v4087 = vadd.f32 %v4086, %v4080
    %v4088 = vadd.f32 %v4087, %v4081
    %v4089 = vadd.f32 %v4088, %v4082
    %v4090 = vadd.f32 %v4089, %v4083
    %v4091 = vadd.f32 %v4090, %v4084
    %4092 = vadd.xlane.f32.xlu0 %v4091
    %v4093 = vpop.xlane.xlu0 %4092
    %v4094 = vmul.f32 %v4093, %v2103
    %v4095 = vmul.f32 %v4076, %v4076
    %v4096 = vsub.f32 %v4094, %v4095
    %v4097 = vsub.f32 %v3850, %v4076
    %v4098 = vsub.f32 %v3852, %v4076
    %v4099 = vsub.f32 %v3921, %v4076
    %v4100 = vsub.f32 %v3923, %v4076
    %v4101 = vsub.f32 %v3992, %v4076
    %v4102 = vsub.f32 %v3994, %v4076
    %v4103 = vsub.f32 %v4063, %v4076
    %v4104 = vsub.f32 %v4065, %v4076
    %v4105 = vadd.f32 %v4096, 1e-05
    %v4106 = vrsqrt.pop %v4105
    %v4107 = vmul.f32 %v4097, %v4106
    %v4108 = vmul.f32 %v4098, %v4106
    %v4109 = vmul.f32 %v4099, %v4106
    %v4110 = vmul.f32 %v4100, %v4106
    %v4111 = vmul.f32 %v4101, %v4106
    %v4112 = vmul.f32 %v4102, %v4106
    %v4113 = vmul.f32 %v4103, %v4106
    %v4114 = vmul.f32 %v4104, %v4106
    %v4115 = vmax.f32 %v4107, 0.0
    %v4116 = vmax.f32 %v4108, 0.0
    %v4117 = vmax.f32 %v4109, 0.0
    %v4118 = vmax.f32 %v4110, 0.0
    %v4119 = vmax.f32 %v4111, 0.0
    %v4120 = vmax.f32 %v4112, 0.0
    %v4121 = vmax.f32 %v4113, 0.0
    %v4122 = vmax.f32 %v4114, 0.0
    %4123 = vrot.lane.b32.xlu0 %v4115, 1
    %v4124 = vpop.permute.xlu0 %4123
    %4125 = vrot.lane.b32.xlu0 %v4116, 1
    %v4126 = vpop.permute.xlu0 %4125
    %4127 = vrot.lane.b32.xlu0 %v4117, 1
    %v4128 = vpop.permute.xlu0 %4127
    %4129 = vrot.lane.b32.xlu0 %v4118, 1
    %v4130 = vpop.permute.xlu0 %4129
    %4131 = vrot.lane.b32.xlu0 %v4119, 1
    %v4132 = vpop.permute.xlu0 %4131
    %4133 = vrot.lane.b32.xlu0 %v4120, 1
    %v4134 = vpop.permute.xlu0 %4133
    %4135 = vrot.lane.b32.xlu0 %v4121, 1
    %v4136 = vpop.permute.xlu0 %4135
    %4137 = vrot.lane.b32.xlu0 %v4122, 1
    %v4138 = vpop.permute.xlu0 %4137
    %v4139 = vsel %vm1894, %v4136, %v4138
    %v4140 = vsel %vm1894, %v4134, %v4136
    %v4141 = vsel %vm1894, %v4132, %v4134
    %v4142 = vsel %vm1894, %v4130, %v4132
    %v4143 = vsel %vm1894, %v4128, %v4130
    %v4144 = vsel %vm1894, %v4126, %v4128
    %v4145 = vsel %vm1894, %v4124, %v4126
    %v4146 = vsel %vm1894, %v4138, %v4124
    %v4147 = vmul.f32 %v4146, %v180
    %v4148 = vmul.f32 %v4145, %v181
    %v4149 = vmul.f32 %v4144, %v182
    %v4150 = vmul.f32 %v4143, %v183
    %v4151 = vmul.f32 %v4142, %v184
    %v4152 = vmul.f32 %v4141, %v185
    %v4153 = vmul.f32 %v4140, %v186
    %v4154 = vmul.f32 %v4139, %v187
    %4155 = vrot.lane.b32.xlu0 %v4115, 127
    %v4156 = vpop.permute.xlu0 %4155
    %4157 = vrot.lane.b32.xlu0 %v4116, 127
    %v4158 = vpop.permute.xlu0 %4157
    %4159 = vrot.lane.b32.xlu0 %v4117, 127
    %v4160 = vpop.permute.xlu0 %4159
    %4161 = vrot.lane.b32.xlu0 %v4118, 127
    %v4162 = vpop.permute.xlu0 %4161
    %4163 = vrot.lane.b32.xlu0 %v4119, 127
    %v4164 = vpop.permute.xlu0 %4163
    %4165 = vrot.lane.b32.xlu0 %v4120, 127
    %v4166 = vpop.permute.xlu0 %4165
    %4167 = vrot.lane.b32.xlu0 %v4121, 127
    %v4168 = vpop.permute.xlu0 %4167
    %4169 = vrot.lane.b32.xlu0 %v4122, 127
    %v4170 = vpop.permute.xlu0 %4169
    %v4171 = vsel %vm1927, %v4168, %v4170
    %v4172 = vsel %vm1927, %v4166, %v4168
    %v4173 = vsel %vm1927, %v4164, %v4166
    %v4174 = vsel %vm1927, %v4162, %v4164
    %v4175 = vsel %vm1927, %v4160, %v4162
    %v4176 = vsel %vm1927, %v4158, %v4160
    %v4177 = vsel %vm1927, %v4156, %v4158
    %v4178 = vsel %vm1927, %v4170, %v4156
    %v4179 = vmul.f32 %v4177, %v204
    %v4180 = vmul.f32 %v4176, %v205
    %v4181 = vmul.f32 %v4175, %v206
    %v4182 = vmul.f32 %v4174, %v207
    %v4183 = vmul.f32 %v4173, %v208
    %v4184 = vmul.f32 %v4172, %v209
    %v4185 = vmul.f32 %v4171, %v210
    %v4186 = vmul.f32 %v4178, %v211
    %v4187 = vld [vmem:[%s10] sm:$0xff]
    %4189 = vset.pattern.permute.xlu0 0
    %4190 = vperm.xlu0 %4189, %v4187
    %v4191 = vpop.permute.xlu0 %4190
    %v4193 = vmul.f32 %v4191, %v4147
    %v4194 = vmul.f32 %v4191, %v4148
    %v4195 = vmul.f32 %v4191, %v4149
    %v4196 = vmul.f32 %v4191, %v4150
    %v4197 = vmul.f32 %v4191, %v4151
    %v4198 = vmul.f32 %v4191, %v4152
    %v4199 = vmul.f32 %v4191, %v4153
    %v4200 = vmul.f32 %v4191, %v4154
    %4201 = vset.pattern.permute.xlu0 1
    %4202 = vperm.xlu0 %4201, %v4187
    %v4203 = vpop.permute.xlu0 %4202
    %v4205 = vmul.f32 %v4203, %v4115
    %v4206 = vmul.f32 %v4203, %v4116
    %v4207 = vmul.f32 %v4203, %v4117
    %v4208 = vmul.f32 %v4203, %v4118
    %v4209 = vmul.f32 %v4203, %v4119
    %v4210 = vmul.f32 %v4203, %v4120
    %v4211 = vmul.f32 %v4203, %v4121
    %v4212 = vmul.f32 %v4203, %v4122
    %v4213 = vadd.f32 %v4193, %v4205
    %v4214 = vadd.f32 %v4194, %v4206
    %v4215 = vadd.f32 %v4195, %v4207
    %v4216 = vadd.f32 %v4196, %v4208
    %v4217 = vadd.f32 %v4197, %v4209
    %v4218 = vadd.f32 %v4198, %v4210
    %v4219 = vadd.f32 %v4199, %v4211
    %v4220 = vadd.f32 %v4200, %v4212
    %4221 = vset.pattern.permute.xlu0 2
    %4222 = vperm.xlu0 %4221, %v4187
    %v4223 = vpop.permute.xlu0 %4222
    %v4225 = vmul.f32 %v4223, %v4179
    %v4226 = vmul.f32 %v4223, %v4180
    %v4227 = vmul.f32 %v4223, %v4181
    %v4228 = vmul.f32 %v4223, %v4182
    %v4229 = vmul.f32 %v4223, %v4183
    %v4230 = vmul.f32 %v4223, %v4184
    %v4231 = vmul.f32 %v4223, %v4185
    %v4232 = vmul.f32 %v4223, %v4186
    %v4233 = vadd.f32 %v4213, %v4225
    %v4234 = vadd.f32 %v4214, %v4226
    %v4235 = vadd.f32 %v4215, %v4227
    %v4236 = vadd.f32 %v4216, %v4228
    %v4237 = vadd.f32 %v4217, %v4229
    %v4238 = vadd.f32 %v4218, %v4230
    %v4239 = vadd.f32 %v4219, %v4231
    %v4240 = vadd.f32 %v4220, %v4232
    %v4241 = vrot.slane %v4233, 4
    %v4242 = vadd.f32 %v4233, %v4241
    %v4243 = vrot.slane %v4242, 2
    %v4244 = vadd.f32 %v4242, %v4243
    %v4245 = vrot.slane %v4244, 1
    %v4246 = vadd.f32 %v4244, %v4245
    %v4247 = vrot.slane %v4234, 4
    %v4248 = vadd.f32 %v4234, %v4247
    %v4249 = vrot.slane %v4248, 2
    %v4250 = vadd.f32 %v4248, %v4249
    %v4251 = vrot.slane %v4250, 1
    %v4252 = vadd.f32 %v4250, %v4251
    %v4253 = vrot.slane %v4235, 4
    %v4254 = vadd.f32 %v4235, %v4253
    %v4255 = vrot.slane %v4254, 2
    %v4256 = vadd.f32 %v4254, %v4255
    %v4257 = vrot.slane %v4256, 1
    %v4258 = vadd.f32 %v4256, %v4257
    %v4259 = vrot.slane %v4236, 4
    %v4260 = vadd.f32 %v4236, %v4259
    %v4261 = vrot.slane %v4260, 2
    %v4262 = vadd.f32 %v4260, %v4261
    %v4263 = vrot.slane %v4262, 1
    %v4264 = vadd.f32 %v4262, %v4263
    %v4265 = vrot.slane %v4237, 4
    %v4266 = vadd.f32 %v4237, %v4265
    %v4267 = vrot.slane %v4266, 2
    %v4268 = vadd.f32 %v4266, %v4267
    %v4269 = vrot.slane %v4268, 1
    %v4270 = vadd.f32 %v4268, %v4269
    %v4271 = vrot.slane %v4238, 4
    %v4272 = vadd.f32 %v4238, %v4271
    %v4273 = vrot.slane %v4272, 2
    %v4274 = vadd.f32 %v4272, %v4273
    %v4275 = vrot.slane %v4274, 1
    %v4276 = vadd.f32 %v4274, %v4275
    %v4277 = vrot.slane %v4239, 4
    %v4278 = vadd.f32 %v4239, %v4277
    %v4279 = vrot.slane %v4278, 2
    %v4280 = vadd.f32 %v4278, %v4279
    %v4281 = vrot.slane %v4280, 1
    %v4282 = vadd.f32 %v4280, %v4281
    %v4283 = vrot.slane %v4240, 4
    %v4284 = vadd.f32 %v4240, %v4283
    %v4285 = vrot.slane %v4284, 2
    %v4286 = vadd.f32 %v4284, %v4285
    %v4287 = vrot.slane %v4286, 1
    %v4288 = vadd.f32 %v4286, %v4287
    %vm4289 = vcmask 1040384
    %v4290 = vsel %vm4289, %v4246, %v4270
    %v4291 = vsel %vm4289, %v4252, %v4276
    %v4292 = vsel %vm4289, %v4258, %v4282
    %v4293 = vsel %vm4289, %v4264, %v4288
    %v4294 = vsel %vm714, %v4290, -inf
    %v4295 = vsel %vm714, %v4291, -inf
    %v4296 = vsel %vm714, %v4292, -inf
    %v4297 = vsel %vm714, %v4293, -inf
    %v4298 = vmax.f32 %v4294, %v4295
    %v4299 = vmax.f32 %v4296, %v4297
    %v4300 = vmax.f32 %v4298, %v4299
    %4301 = vmax.xlane.f32.xlu0 %v4300
    %v4302 = vpop.xlane.xlu0 %4301
    %v4303 = vsel %vm714, %v4290, inf
    %v4304 = vsel %vm714, %v4291, inf
    %v4305 = vsel %vm714, %v4292, inf
    %v4306 = vsel %vm714, %v4293, inf
    %v4307 = vmin.f32 %v4303, %v4304
    %v4308 = vmin.f32 %v4305, %v4306
    %v4309 = vmin.f32 %v4307, %v4308
    %4310 = vmin.xlane.f32.xlu0 %v4309
    %v4311 = vpop.xlane.xlu0 %4310
    %v4312 = vsub.f32 %v4290, %v4311
    %v4313 = vsub.f32 %v4291, %v4311
    %v4314 = vsub.f32 %v4292, %v4311
    %v4315 = vsub.f32 %v4293, %v4311
    %v4316 = vsub.f32 %v4302, %v4311
    %v4317 = vrcp.pop %v4316
    %v4318 = vmul.f32 %v4312, %v4317
    %v4319 = vmul.f32 %v4313, %v4317
    %v4320 = vmul.f32 %v4314, %v4317
    %v4321 = vmul.f32 %v4315, %v4317
    %v4326 = vcombine.low %v4318, %v4319
    %v4327 = vcombine.low %v4320, %v4321
    %v4329 = vunpack.c.l.s4 1983009808
    %v4330 = vunpack.c.0.s8 %v4329
    %v4331 = vlaneseq
    %v4332 = vshrl.u32 %v4331, 7
    %v4333 = vsub.s32 %v4330, %v4332
    %v4334 = vrot.slane %v4326, %v4333
    %v4336 = vunpack.c.l.s4 1983009808
    %v4337 = vunpack.c.0.s8 %v4336
    %v4338 = vlaneseq
    %v4339 = vshrl.u32 %v4338, 7
    %v4340 = vsub.s32 %v4337, %v4339
    %v4341 = vrot.slane %v4327, %v4340
    %v4342 = vcombine.low %v4334, %v4341
    %4344 = vst [vmem:[#allocation18] sm:$0xff] %v4342
    // Predicated region
    $region82: #{_lambda_.1} parent=1 // pred_check
      _
    $region83: #{_lambda_.1} parent=1 // pred_check_branch
      %4346 = sbr.rel (0) target = $region85
    $region84: #{_lambda_.1} parent=1 // pred_region
      %s4348 = ssub.s32 128, 128
      %4349 = vsyncadd [#allocation5], %s4348
      %s4351 = sshll.u32 [#allocation18], 4
      %s4352 = int_to_ptr.vmem [resolvable:$true] %s4351
      %4354 = dma.vmem_to_hbm [thread:$0]  %s4352, 128, %s11, [#allocation5]
    $region85: #{_lambda_.1} parent=1 // pred_fallthru
      _
    // Predicated region
    $region86: #{_lambda_.1} parent=1 // pred_check
      _
    $region87: #{_lambda_.1} parent=1 // pred_check_branch
      %4356 = sbr.rel (0) target = $region89
    $region88: #{_lambda_.1} parent=1 // pred_region
      %4357 = dma.done [#allocation5], 128
    $region89: #{_lambda_.1} parent=1 // pred_fallthru
      _
    %4358 = vsyncpa [#allocation4], 1
    %4359 = vsyncpa [#allocation7], 1
    %4360 = vsyncpa [#allocation10], 1
    %4361 = vsyncpa [#allocation13], 1
    %4362 = vsyncpa [#allocation16], 1
    %4363 = vsyncpa [#allocation5], 1

</llo_original>
